<compile_context>
chip_gen: v6e
topology: v6e:2x2x1
jax: 0.10.0
libtpu: 0.0.40
codegen_flags: <defaults>
</compile_context>

<pallas_src>
import functools

import jax
import jax.numpy as jnp
from jax.experimental import pallas as pl
from jax.experimental.pallas import tpu as pltpu

EXPANSION = 4
BN_EPS = 1e-5
LANE = 128     # channel padding unit (full lane width)
_TM = 256      # row-tile size; bump toward 512-1024 for large production shapes


# ------------------------------ small helpers -------------------------------

def _round_up(v, m):
    return (v + m - 1) // m * m


def _pick_tm(rows):
    return min(_TM, _round_up(rows, 128))


def _pad_rows(a, tm):
    rows = a.shape[0]
    rows_p = _round_up(rows, tm)
    if rows_p == rows:
        return a
    return jnp.pad(a, ((0, rows_p - rows), (0, 0)))


def _pad_mat(a, r, c):
    return jnp.pad(a, ((0, r - a.shape[0]), (0, c - a.shape[1])))


def _pad_vec(a, c):
    return jnp.pad(a, (0, c - a.shape[0]))


# ----------------------------- Pallas kernels -------------------------------

def _mm_stats_kernel(x_ref, w_ref, y_ref, sum_ref, sq_ref):
    """Row tile of y = x @ w (bf16 x bf16 -> f32) + per-channel sum / sumsq.

    sum_ref / sq_ref use a constant index_map, so they stay VMEM-resident and
    accumulate across the (sequential, 'arbitrary') row-tile axis.
    """
    y = jnp.dot(x_ref[...], w_ref[...], preferred_element_type=jnp.float32)
    y_ref[...] = y

    @pl.when(pl.program_id(0) == 0)
    def _init():
        sum_ref[...] = jnp.zeros_like(sum_ref)
        sq_ref[...] = jnp.zeros_like(sq_ref)

    sum_ref[...] += jnp.sum(y, axis=0, keepdims=True)
    sq_ref[...] += jnp.sum(y * y, axis=0, keepdims=True)


def _bn_relu_mm_stats_kernel(y_ref, s_ref, t_ref, w_ref, o_ref, sum_ref, sq_ref,
                             *, valid_rows):
    """Fused: h = relu(y*s + t)  ->  o = h_bf16 @ w  + per-channel sum/sumsq.

    Used for BN2+ReLU fused into the conv3 (1x1) matmul.  Padded rows (if any)
    are zeroed before the matmul so the BN3 statistics stay exact.
    """
    tm = y_ref.shape[0]
    h = jnp.maximum(y_ref[...] * s_ref[...] + t_ref[...], 0.0)
    if valid_rows is not None:
        row = pl.program_id(0) * tm + jax.lax.broadcasted_iota(jnp.int32, (tm, 1), 0)
        h = jnp.where(row < valid_rows, h, 0.0)
    y = jnp.dot(h.astype(jnp.bfloat16), w_ref[...],
                preferred_element_type=jnp.float32)
    o_ref[...] = y

    @pl.when(pl.program_id(0) == 0)
    def _init():
        sum_ref[...] = jnp.zeros_like(sum_ref)
        sq_ref[...] = jnp.zeros_like(sq_ref)

    sum_ref[...] += jnp.sum(y, axis=0, keepdims=True)
    sq_ref[...] += jnp.sum(y * y, axis=0, keepdims=True)


def _bn_act_kernel(y_ref, s_ref, t_ref, o_ref, *, relu):
    """out = [relu]( y * scale + shift )  (BN folded into scale/shift)."""
    v = y_ref[...] * s_ref[...] + t_ref[...]
    if relu:
        v = jnp.maximum(v, 0.0)
    o_ref[...] = v.astype(o_ref.dtype)


def _bn_add_relu_kernel(y_ref, s_ref, t_ref, sc_ref, ssc_ref, tsc_ref, o_ref):
    """out = relu( (y*s + t) + (sc*ssc + tsc) )  — fused bn3 + shortcut-bn + add."""
    a = y_ref[...] * s_ref[...] + t_ref[...]
    b = sc_ref[...] * ssc_ref[...] + tsc_ref[...]
    o_ref[...] = jnp.maximum(a + b, 0.0).astype(o_ref.dtype)


# --------------------------- pallas_call wrappers ----------------------------

def _vmem_limit(*byte_counts):
    total = 2 * sum(byte_counts) + (8 << 20)      # double-buffered + headroom
    return int(min(max(total, 16 << 20), 48 << 20))


def _matmul_stats(x_rows, w, *, tm):
    """Tiled matmul + BN statistics.  x_rows: (rows_p, K) bf16, w: (K, Cout) bf16."""
    rows_p, k = x_rows.shape
    cout = w.shape[1]
    n_tiles = rows_p // tm

    y, ssum, ssq = pl.pallas_call(
        _mm_stats_kernel,
        grid=(n_tiles,),
        in_specs=[
            pl.BlockSpec((tm, k), lambda i: (i, 0)),
            pl.BlockSpec((k, cout), lambda i: (0, 0)),     # weights stay resident
        ],
        out_specs=[
            pl.BlockSpec((tm, cout), lambda i: (i, 0)),
            pl.BlockSpec((1, cout), lambda i: (0, 0)),     # accumulators
            pl.BlockSpec((1, cout), lambda i: (0, 0)),
        ],
        out_shape=[
            jax.ShapeDtypeStruct((rows_p, cout), jnp.float32),
            jax.ShapeDtypeStruct((1, cout), jnp.float32),
            jax.ShapeDtypeStruct((1, cout), jnp.float32),
        ],
        compiler_params=pltpu.CompilerParams(
            dimension_semantics=("arbitrary",),            # stats accumulate across tiles
            vmem_limit_bytes=_vmem_limit(tm * k * 2, k * cout * 2, tm * cout * 4),
        ),
        cost_estimate=pl.CostEstimate(
            flops=2 * rows_p * k * cout,
            transcendentals=0,
            bytes_accessed=rows_p * k * 2 + k * cout * 2 + rows_p * cout * 4,
        ),
    )(x_rows, w)
    return y, ssum, ssq


def _bn_relu_matmul_stats(y_prev, scale, shift, w, *, tm, valid_rows):
    """Fused BN+ReLU apply followed by matmul + BN statistics.

    y_prev: (rows_p, K) f32 pre-BN activations; w: (K, Cout) bf16.
    """
    rows_p, k = y_prev.shape
    cout = w.shape[1]
    n_tiles = rows_p // tm

    y, ssum, ssq = pl.pallas_call(
        functools.partial(
            _bn_relu_mm_stats_kernel,
            valid_rows=None if valid_rows == rows_p else valid_rows),
        grid=(n_tiles,),
        in_specs=[
            pl.BlockSpec((tm, k), lambda i: (i, 0)),
            pl.BlockSpec((1, k), lambda i: (0, 0)),
            pl.BlockSpec((1, k), lambda i: (0, 0)),
            pl.BlockSpec((k, cout), lambda i: (0, 0)),     # weights stay resident
        ],
        out_specs=[
            pl.BlockSpec((tm, cout), lambda i: (i, 0)),
            pl.BlockSpec((1, cout), lambda i: (0, 0)),     # accumulators
            pl.BlockSpec((1, cout), lambda i: (0, 0)),
        ],
        out_shape=[
            jax.ShapeDtypeStruct((rows_p, cout), jnp.float32),
            jax.ShapeDtypeStruct((1, cout), jnp.float32),
            jax.ShapeDtypeStruct((1, cout), jnp.float32),
        ],
        compiler_params=pltpu.CompilerParams(
            dimension_semantics=("arbitrary",),
            vmem_limit_bytes=_vmem_limit(tm * k * 4, k * cout * 2, tm * cout * 4),
        ),
        cost_estimate=pl.CostEstimate(
            flops=2 * rows_p * k * cout + 3 * rows_p * k,
            transcendentals=0,
            bytes_accessed=rows_p * k * 4 + k * cout * 2 + rows_p * cout * 4,
        ),
    )(y_prev, scale, shift, w)
    return y, ssum, ssq


def _bn_apply(y, scale, shift, *, relu, out_dtype, tm):
    rows_p, cout = y.shape
    n_tiles = rows_p // tm
    return pl.pallas_call(
        functools.partial(_bn_act_kernel, relu=relu),
        grid=(n_tiles,),
        in_specs=[
            pl.BlockSpec((tm, cout), lambda i: (i, 0)),
            pl.BlockSpec((1, cout), lambda i: (0, 0)),
            pl.BlockSpec((1, cout), lambda i: (0, 0)),
        ],
        out_specs=pl.BlockSpec((tm, cout), lambda i: (i, 0)),
        out_shape=jax.ShapeDtypeStruct((rows_p, cout), out_dtype),
        compiler_params=pltpu.CompilerParams(
            dimension_semantics=("parallel",),
            vmem_limit_bytes=32 * 1024 * 1024,
        ),
    )(y, scale, shift)


def _bn_add_relu(y, scale, shift, sc, sc_scale, sc_shift, *, tm):
    rows_p, cout = y.shape
    n_tiles = rows_p // tm
    return pl.pallas_call(
        _bn_add_relu_kernel,
        grid=(n_tiles,),
        in_specs=[
            pl.BlockSpec((tm, cout), lambda i: (i, 0)),
            pl.BlockSpec((1, cout), lambda i: (0, 0)),
            pl.BlockSpec((1, cout), lambda i: (0, 0)),
            pl.BlockSpec((tm, cout), lambda i: (i, 0)),
            pl.BlockSpec((1, cout), lambda i: (0, 0)),
            pl.BlockSpec((1, cout), lambda i: (0, 0)),
        ],
        out_specs=pl.BlockSpec((tm, cout), lambda i: (i, 0)),
        out_shape=jax.ShapeDtypeStruct((rows_p, cout), jnp.float32),
        compiler_params=pltpu.CompilerParams(
            dimension_semantics=("parallel",),
            vmem_limit_bytes=32 * 1024 * 1024,
        ),
    )(y, scale, shift, sc, sc_scale, sc_shift)


def _fold_bn(ssum, ssq, rows, gamma, beta):
    """Fold training-mode BN (biased variance) into per-channel scale/shift."""
    mean = ssum[0] / rows
    var = jnp.maximum(ssq[0] / rows - mean * mean, 0.0)
    inv = jax.lax.rsqrt(var + BN_EPS)
    scale = gamma * inv
    shift = beta - mean * scale
    return scale.reshape(1, -1), shift.reshape(1, -1)


# ------------------------------- glue (JAX) ----------------------------------

def _im2col_3x3(x_nhwc, stride):
    """3x3 patches, padding=1, given stride.  Returns (N*Ho*Wo, 9*C)."""
    n, h, w, c = x_nhwc.shape
    xp = jnp.pad(x_nhwc, ((0, 0), (1, 1), (1, 1), (0, 0)))
    ho = (h + 2 - 3) // stride + 1
    wo = (w + 2 - 3) // stride + 1
    taps = []
    for kh in range(3):
        for kw in range(3):
            taps.append(xp[:, kh:kh + stride * (ho - 1) + 1:stride,
                              kw:kw + stride * (wo - 1) + 1:stride, :])
    patches = jnp.stack(taps, axis=3)                       # (N, Ho, Wo, 9, C)
    return patches.reshape(n * ho * wo, 9 * c)


def init_bottleneck_params(key, in_planes, planes, stride):
    """Deterministic synthetic weights in the PyTorch layouts."""
    cout = EXPANSION * planes
    ks = jax.random.split(key, 4)
    params = {
        "w1": 0.1 * jax.random.normal(ks[0], (planes, in_planes, 1, 1), jnp.float32),
        "g1": jnp.ones((planes,), jnp.float32),
        "b1": jnp.zeros((planes,), jnp.float32),
        "w2": 0.1 * jax.random.normal(ks[1], (planes, planes, 3, 3), jnp.float32),
        "g2": jnp.ones((planes,), jnp.float32),
        "b2": jnp.zeros((planes,), jnp.float32),
        "w3": 0.1 * jax.random.normal(ks[2], (cout, planes, 1, 1), jnp.float32),
        "g3": jnp.ones((cout,), jnp.float32),
        "b3": jnp.zeros((cout,), jnp.float32),
    }
    if stride != 1 or in_planes != cout:
        params["wsc"] = 0.1 * jax.random.normal(ks[3], (cout, in_planes, 1, 1), jnp.float32)
        params["gsc"] = jnp.ones((cout,), jnp.float32)
        params["bsc"] = jnp.zeros((cout,), jnp.float32)
    return params


def bottleneck_forward(x_nchw, params, *, stride):
    n, cin, h, w = x_nchw.shape
    planes = params["w1"].shape[0]
    cout = EXPANSION * planes
    cin_p = _round_up(cin, LANE)
    planes_p = _round_up(planes, LANE)
    cout_p = _round_up(cout, LANE)

    ho = (h + 2 - 3) // stride + 1
    wo = (w + 2 - 3) // stride + 1
    rows1 = n * h * w
    rows2 = n * ho * wo
    tm1 = _pick_tm(rows1)
    tm2 = _pick_tm(rows2)

    # NHWC, channel-padded to full 128-lane multiples (pad channels are zero
    # and get gamma=beta=0, so they stay exactly zero and are sliced off).
    x = jnp.transpose(x_nchw, (0, 2, 3, 1))
    x = jnp.pad(x, ((0, 0), (0, 0), (0, 0), (0, cin_p - cin)))
    x_bf = x.astype(jnp.bfloat16)

    # ---- conv1 (1x1) + bn1 + relu ------------------------------------------
    w1 = _pad_mat(jnp.transpose(params["w1"][:, :, 0, 0], (1, 0)), cin_p, planes_p)
    y1, s1sum, s1sq = _matmul_stats(
        _pad_rows(x_bf.reshape(rows1, cin_p), tm1), w1.astype(jnp.bfloat16), tm=tm1)
    s1, t1 = _fold_bn(s1sum, s1sq, rows1,
                      _pad_vec(params["g1"], planes_p), _pad_vec(params["b1"], planes_p))
    h1 = _bn_apply(y1, s1, t1, relu=True, out_dtype=jnp.bfloat16, tm=tm1)
    h1 = h1[:rows1].reshape(n, h, w, planes_p)

    # ---- conv2 (3x3, stride, pad=1) -> pre-BN activations y2 ----------------
    # TODO(synk): fuse im2col into the conv2 kernel (halo spatial tiles + 9
    # shifted matmuls) to avoid materializing the 9x patch tensor in HBM.
    patches = _im2col_3x3(h1, stride)                       # bf16, (rows2, 9*planes_p)
    w2 = jnp.transpose(params["w2"], (2, 3, 1, 0))          # (3,3,in,out)
    w2 = jnp.pad(w2, ((0, 0), (0, 0), (0, planes_p - planes), (0, planes_p - planes)))
    w2 = w2.reshape(9 * planes_p, planes_p)
    y2, s2sum, s2sq = _matmul_stats(_pad_rows(patches, tm2), w2.astype(jnp.bfloat16), tm=tm2)
    s2, t2 = _fold_bn(s2sum, s2sq, rows2,
                      _pad_vec(params["g2"], planes_p), _pad_vec(params["b2"], planes_p))

    # ---- shortcut branch ----------------------------------------------------
    if stride != 1 or cin != cout:
        xs = x_bf[:, ::stride, ::stride, :].reshape(rows2, cin_p)
        wsc = _pad_mat(jnp.transpose(params["wsc"][:, :, 0, 0], (1, 0)), cin_p, cout_p)
        ysc, scsum, scsq = _matmul_stats(_pad_rows(xs, tm2), wsc.astype(jnp.bfloat16), tm=tm2)
        ssc, tsc = _fold_bn(scsum, scsq, rows2,
                            _pad_vec(params["gsc"], cout_p), _pad_vec(params["bsc"], cout_p))
    else:
        ysc = _pad_rows(x.reshape(rows1, cin_p), tm2)       # identity shortcut (f32)
        ssc = jnp.ones((1, cout_p), jnp.float32)
        tsc = jnp.zeros((1, cout_p), jnp.float32)

    # ---- [bn2 + relu] fused into conv3 (1x1) matmul + bn3 stats --------------
    w3 = _pad_mat(jnp.transpose(params["w3"][:, :, 0, 0], (1, 0)), planes_p, cout_p)
    y3, s3sum, s3sq = _bn_relu_matmul_stats(
        y2, s2, t2, w3.astype(jnp.bfloat16), tm=tm2, valid_rows=rows2)
    s3, t3 = _fold_bn(s3sum, s3sq, rows2,
                      _pad_vec(params["g3"], cout_p), _pad_vec(params["b3"], cout_p))

    # ---- bn3 + shortcut-bn + residual add + relu (fused epilogue) ------------
    out = _bn_add_relu(y3, s3, t3, ysc, ssc, tsc, tm=tm2)
    out = out[:rows2, :cout].reshape(n, ho, wo, cout)
    return jnp.transpose(out, (0, 3, 1, 2))                 # back to NCHW


# ----------------------- pure-JAX reference (check) --------------------------

def _bn_ref(y, g, b):
    mean = jnp.mean(y, axis=(0, 2, 3), keepdims=True)
    var = jnp.mean(jnp.square(y - mean), axis=(0, 2, 3), keepdims=True)
    return (y - mean) / jnp.sqrt(var + BN_EPS) * g.reshape(1, -1, 1, 1) + b.reshape(1, -1, 1, 1)


def bottleneck_ref(x, params, stride, *, quantize=False):
    """Reference Bottleneck.  quantize=True rounds conv operands to bf16 at the
    same points as the Pallas path (for a matched-precision comparison)."""
    q = (lambda a: a.astype(jnp.bfloat16).astype(jnp.float32)) if quantize else (lambda a: a)
    conv = lambda a, wt, s, p: jax.lax.conv_general_dilated(
        q(a), q(wt), (s, s), p, dimension_numbers=("NCHW", "OIHW", "NCHW"))
    cin, planes = x.shape[1], params["w1"].shape[0]
    cout = EXPANSION * planes
    out = jax.nn.relu(_bn_ref(conv(x, params["w1"], 1, "VALID"), params["g1"], params["b1"]))
    out = jax.nn.relu(_bn_ref(conv(out, params["w2"], stride, [(1, 1), (1, 1)]),
                              params["g2"], params["b2"]))
    out = _bn_ref(conv(out, params["w3"], 1, "VALID"), params["g3"], params["b3"])
    if stride != 1 or cin != cout:
        sc = _bn_ref(conv(x, params["wsc"], stride, "VALID"), params["gsc"], params["bsc"])
    else:
        sc = x
    return jax.nn.relu(out + sc)


# ---------------------------------- main --------------------------------------

if __name__ == "__main__":
    forward = jax.jit(bottleneck_forward, static_argnames=("stride",))
    key = jax.random.PRNGKey(0)

    configs = [
        # (in_planes, planes, H, W, stride): projection and identity shortcuts
        (4, 4, 16, 16, 2),
        (16, 4, 8, 8, 1),
    ]
    for idx, (cin, planes, h, w, stride) in enumerate(configs):
        kx, kp = jax.random.split(jax.random.fold_in(key, idx))
        x = jax.random.normal(kx, (2, cin, h, w), jnp.float32)
        params = init_bottleneck_params(kp, cin, planes, stride)

        out = jax.block_until_ready(forward(x, params, stride=stride))
        ho = (h + 2 - 3) // stride + 1
        assert out.shape == (2, EXPANSION * planes, ho, ho), out.shape

        # tight check vs a reference using the same bf16 conv-operand rounding
        ref_q = bottleneck_ref(x, params, stride, quantize=True)
        err_q = float(jnp.max(jnp.abs(out - ref_q)))
        assert err_q < 5e-3, f"config {idx}: max abs err vs matched ref = {err_q}"

        # sanity check vs the full-f32 module semantics (bf16 MXU operands only
        # introduce a small relative error)
        ref_f = bottleneck_ref(x, params, stride, quantize=False)
        rel = float(jnp.linalg.norm(out - ref_f) / (jnp.linalg.norm(ref_f) + 1e-12))
        assert rel < 0.05, f"config {idx}: relative L2 err vs f32 ref = {rel}"

    print("KERNEL_OK")
</pallas_src>

<mosaic_0001>
module attributes {stable_mosaic.version = 11 : i64} {
  func.func @_mm_stats_kernel(%arg0: i32, %arg1: memref<256x128xbf16, #tpu.memory_space<vmem>>, %arg2: memref<128x128xbf16, #tpu.memory_space<vmem>>, %arg3: memref<256x128xf32, #tpu.memory_space<vmem>>, %arg4: memref<1x128xf32, #tpu.memory_space<vmem>>, %arg5: memref<1x128xf32, #tpu.memory_space<vmem>>) attributes {dimension_semantics = [#tpu.dimension_semantics<arbitrary>], iteration_bounds = array<i64: 2>, scalar_prefetch = 0 : i64, scratch_operands = 0 : i64, tpu.core_type = #tpu.core_type<tc>, window_params = [{transform_indices = @transform_0, window_bounds = array<i64: 256, 128>}, {pipeline_mode = #tpu.pipeline_mode<synchronous>, transform_indices = @transform_1, window_bounds = array<i64: 128, 128>}, {transform_indices = @transform_2, window_bounds = array<i64: 256, 128>}, {pipeline_mode = #tpu.pipeline_mode<synchronous>, transform_indices = @transform_3, window_bounds = array<i64: 1, 128>}, {pipeline_mode = #tpu.pipeline_mode<synchronous>, transform_indices = @transform_4, window_bounds = array<i64: 1, 128>}]} {
    %c0 = arith.constant 0 : index
    %c0_0 = arith.constant 0 : index
    %0 = vector.load %arg1[%c0, %c0_0] : memref<256x128xbf16, #tpu.memory_space<vmem>>, vector<256x128xbf16>
    %c0_1 = arith.constant 0 : index
    %c0_2 = arith.constant 0 : index
    %1 = vector.load %arg2[%c0_1, %c0_2] : memref<128x128xbf16, #tpu.memory_space<vmem>>, vector<128x128xbf16>
    %cst = arith.constant dense<0.000000e+00> : vector<256x128xf32>
    %2 = tpu.matmul %0, %1, %cst {dimension_numbers = #tpu.dot_dimension_numbers<[1], [0], [0], [1], [0, 0, 1, 1], [], []>} : vector<256x128xbf16>, vector<128x128xbf16>, vector<256x128xf32> -> vector<256x128xf32>
    %c0_3 = arith.constant 0 : index
    %c0_4 = arith.constant 0 : index
    %3 = vector.load %arg3[%c0_3, %c0_4] : memref<256x128xf32, #tpu.memory_space<vmem>>, vector<256x128xf32>
    tpu.vector_store %arg3[%c0_3, %c0_4], %2 {strides = array<i32>} : memref<256x128xf32, #tpu.memory_space<vmem>>, vector<256x128xf32>,
    %c0_i32 = arith.constant 0 : i32
    %4 = arith.cmpi eq, %arg0, %c0_i32 : i32
    %5 = arith.extui %4 : i1 to i32
    %c0_i32_5 = arith.constant 0 : i32
    %6 = arith.cmpi ne, %5, %c0_i32_5 : i32
    scf.if %6 {
      %cst_16 = arith.constant 0.000000e+00 : f32
      %18 = vector.broadcast %cst_16 : f32 to vector<1x128xf32>
      %c0_17 = arith.constant 0 : index
      %c0_18 = arith.constant 0 : index
      %19 = vector.load %arg4[%c0_17, %c0_18] : memref<1x128xf32, #tpu.memory_space<vmem>>, vector<1x128xf32>
      tpu.vector_store %arg4[%c0_17, %c0_18], %18 {strides = array<i32>} : memref<1x128xf32, #tpu.memory_space<vmem>>, vector<1x128xf32>,
      %cst_19 = arith.constant 0.000000e+00 : f32
      %20 = vector.broadcast %cst_19 : f32 to vector<1x128xf32>
      %c0_20 = arith.constant 0 : index
      %c0_21 = arith.constant 0 : index
      %21 = vector.load %arg5[%c0_20, %c0_21] : memref<1x128xf32, #tpu.memory_space<vmem>>, vector<1x128xf32>
      tpu.vector_store %arg5[%c0_20, %c0_21], %20 {strides = array<i32>} : memref<1x128xf32, #tpu.memory_space<vmem>>, vector<1x128xf32>,
    } else {
    }
    %c0_6 = arith.constant 0 : index
    %c0_7 = arith.constant 0 : index
    %7 = vector.load %arg4[%c0_6, %c0_7] : memref<1x128xf32, #tpu.memory_space<vmem>>, vector<1x128xf32>
    %cst_8 = arith.constant dense<0.000000e+00> : vector<128xf32>
    %8 = vector.multi_reduction <add>, %2, %cst_8 [0] : vector<256x128xf32> to vector<128xf32>
    %9 = vector.shape_cast %8 : vector<128xf32> to vector<1x128xf32>
    %10 = arith.addf %7, %9 : vector<1x128xf32>
    %c0_9 = arith.constant 0 : index
    %c0_10 = arith.constant 0 : index
    %11 = vector.load %arg4[%c0_9, %c0_10] : memref<1x128xf32, #tpu.memory_space<vmem>>, vector<1x128xf32>
    tpu.vector_store %arg4[%c0_9, %c0_10], %10 {strides = array<i32>} : memref<1x128xf32, #tpu.memory_space<vmem>>, vector<1x128xf32>,
    %c0_11 = arith.constant 0 : index
    %c0_12 = arith.constant 0 : index
    %12 = vector.load %arg5[%c0_11, %c0_12] : memref<1x128xf32, #tpu.memory_space<vmem>>, vector<1x128xf32>
    %13 = arith.mulf %2, %2 : vector<256x128xf32>
    %cst_13 = arith.constant dense<0.000000e+00> : vector<128xf32>
    %14 = vector.multi_reduction <add>, %13, %cst_13 [0] : vector<256x128xf32> to vector<128xf32>
    %15 = vector.shape_cast %14 : vector<128xf32> to vector<1x128xf32>
    %16 = arith.addf %12, %15 : vector<1x128xf32>
    %c0_14 = arith.constant 0 : index
    %c0_15 = arith.constant 0 : index
    %17 = vector.load %arg5[%c0_14, %c0_15] : memref<1x128xf32, #tpu.memory_space<vmem>>, vector<1x128xf32>
    tpu.vector_store %arg5[%c0_14, %c0_15], %16 {strides = array<i32>} : memref<1x128xf32, #tpu.memory_space<vmem>>, vector<1x128xf32>,
    return
  }
  func.func @transform_0(%arg0: i32) -> (i32, i32) {
    %c0_i32 = arith.constant 0 : i32
    %c0_i32_0 = arith.constant 0 : i32
    return %arg0, %c0_i32 : i32, i32
  }
  func.func @transform_1(%arg0: i32) -> (i32, i32) {
    %c0_i32 = arith.constant 0 : i32
    %c0_i32_0 = arith.constant 0 : i32
    %c0_i32_1 = arith.constant 0 : i32
    return %c0_i32, %c0_i32_0 : i32, i32
  }
  func.func @transform_2(%arg0: i32) -> (i32, i32) {
    %c0_i32 = arith.constant 0 : i32
    %c0_i32_0 = arith.constant 0 : i32
    return %arg0, %c0_i32 : i32, i32
  }
  func.func @transform_3(%arg0: i32) -> (i32, i32) {
    %c0_i32 = arith.constant 0 : i32
    %c0_i32_0 = arith.constant 0 : i32
    %c0_i32_1 = arith.constant 0 : i32
    return %c0_i32, %c0_i32_0 : i32, i32
  }
  func.func @transform_4(%arg0: i32) -> (i32, i32) {
    %c0_i32 = arith.constant 0 : i32
    %c0_i32_0 = arith.constant 0 : i32
    %c0_i32_1 = arith.constant 0 : i32
    return %c0_i32, %c0_i32_0 : i32, i32
  }
}

module attributes {stable_mosaic.version = 11 : i64} {
  func.func @_bn_act_kernel(%arg0: i32, %arg1: memref<256x128xf32, #tpu.memory_space<vmem>>, %arg2: memref<1x128xf32, #tpu.memory_space<vmem>>, %arg3: memref<1x128xf32, #tpu.memory_space<vmem>>, %arg4: memref<256x128xbf16, #tpu.memory_space<vmem>>) attributes {dimension_semantics = [#tpu.dimension_semantics<parallel>], iteration_bounds = array<i64: 2>, scalar_prefetch = 0 : i64, scratch_operands = 0 : i64, tpu.core_type = #tpu.core_type<tc>, window_params = [{transform_indices = @transform_0, window_bounds = array<i64: 256, 128>}, {pipeline_mode = #tpu.pipeline_mode<synchronous>, transform_indices = @transform_1, window_bounds = array<i64: 1, 128>}, {pipeline_mode = #tpu.pipeline_mode<synchronous>, transform_indices = @transform_2, window_bounds = array<i64: 1, 128>}, {transform_indices = @transform_3, window_bounds = array<i64: 256, 128>}]} {
    %c0 = arith.constant 0 : index
    %c0_0 = arith.constant 0 : index
    %0 = vector.load %arg1[%c0, %c0_0] : memref<256x128xf32, #tpu.memory_space<vmem>>, vector<256x128xf32>
    %c0_1 = arith.constant 0 : index
    %c0_2 = arith.constant 0 : index
    %1 = vector.load %arg2[%c0_1, %c0_2] : memref<1x128xf32, #tpu.memory_space<vmem>>, vector<1x128xf32>
    %2 = vector.broadcast %1 : vector<1x128xf32> to vector<256x128xf32>
    %3 = arith.mulf %0, %2 : vector<256x128xf32>
    %c0_3 = arith.constant 0 : index
    %c0_4 = arith.constant 0 : index
    %4 = vector.load %arg3[%c0_3, %c0_4] : memref<1x128xf32, #tpu.memory_space<vmem>>, vector<1x128xf32>
    %5 = vector.broadcast %4 : vector<1x128xf32> to vector<256x128xf32>
    %6 = arith.addf %3, %5 : vector<256x128xf32>
    %cst = arith.constant 0.000000e+00 : f32
    %7 = vector.broadcast %cst : f32 to vector<256x128xf32>
    %8 = arith.maximumf %6, %7 : vector<256x128xf32>
    %9 = arith.truncf %8 : vector<256x128xf32> to vector<256x128xbf16>
    %c0_5 = arith.constant 0 : index
    %c0_6 = arith.constant 0 : index
    %10 = vector.load %arg4[%c0_5, %c0_6] : memref<256x128xbf16, #tpu.memory_space<vmem>>, vector<256x128xbf16>
    tpu.vector_store %arg4[%c0_5, %c0_6], %9 {strides = array<i32>} : memref<256x128xbf16, #tpu.memory_space<vmem>>, vector<256x128xbf16>,
    return
  }
  func.func @transform_0(%arg0: i32) -> (i32, i32) {
    %c0_i32 = arith.constant 0 : i32
    %c0_i32_0 = arith.constant 0 : i32
    return %arg0, %c0_i32 : i32, i32
  }
  func.func @transform_1(%arg0: i32) -> (i32, i32) {
    %c0_i32 = arith.constant 0 : i32
    %c0_i32_0 = arith.constant 0 : i32
    %c0_i32_1 = arith.constant 0 : i32
    return %c0_i32, %c0_i32_0 : i32, i32
  }
  func.func @transform_2(%arg0: i32) -> (i32, i32) {
    %c0_i32 = arith.constant 0 : i32
    %c0_i32_0 = arith.constant 0 : i32
    %c0_i32_1 = arith.constant 0 : i32
    return %c0_i32, %c0_i32_0 : i32, i32
  }
  func.func @transform_3(%arg0: i32) -> (i32, i32) {
    %c0_i32 = arith.constant 0 : i32
    %c0_i32_0 = arith.constant 0 : i32
    return %arg0, %c0_i32 : i32, i32
  }
}

module attributes {stable_mosaic.version = 11 : i64} {
  func.func @_mm_stats_kernel(%arg0: i32, %arg1: memref<128x1152xbf16, #tpu.memory_space<vmem>>, %arg2: memref<1152x128xbf16, #tpu.memory_space<vmem>>, %arg3: memref<128x128xf32, #tpu.memory_space<vmem>>, %arg4: memref<1x128xf32, #tpu.memory_space<vmem>>, %arg5: memref<1x128xf32, #tpu.memory_space<vmem>>) attributes {dimension_semantics = [#tpu.dimension_semantics<arbitrary>], iteration_bounds = array<i64: 1>, scalar_prefetch = 0 : i64, scratch_operands = 0 : i64, tpu.core_type = #tpu.core_type<tc>, window_params = [{transform_indices = @transform_0, window_bounds = array<i64: 128, 1152>}, {pipeline_mode = #tpu.pipeline_mode<synchronous>, transform_indices = @transform_1, window_bounds = array<i64: 1152, 128>}, {transform_indices = @transform_2, window_bounds = array<i64: 128, 128>}, {pipeline_mode = #tpu.pipeline_mode<synchronous>, transform_indices = @transform_3, window_bounds = array<i64: 1, 128>}, {pipeline_mode = #tpu.pipeline_mode<synchronous>, transform_indices = @transform_4, window_bounds = array<i64: 1, 128>}]} {
    %c0 = arith.constant 0 : index
    %c0_0 = arith.constant 0 : index
    %0 = vector.load %arg1[%c0, %c0_0] : memref<128x1152xbf16, #tpu.memory_space<vmem>>, vector<128x1152xbf16>
    %c0_1 = arith.constant 0 : index
    %c0_2 = arith.constant 0 : index
    %1 = vector.load %arg2[%c0_1, %c0_2] : memref<1152x128xbf16, #tpu.memory_space<vmem>>, vector<1152x128xbf16>
    %cst = arith.constant dense<0.000000e+00> : vector<128x128xf32>
    %2 = tpu.matmul %0, %1, %cst {dimension_numbers = #tpu.dot_dimension_numbers<[1], [0], [0], [1], [0, 0, 1, 1], [], []>} : vector<128x1152xbf16>, vector<1152x128xbf16>, vector<128x128xf32> -> vector<128x128xf32>
    %c0_3 = arith.constant 0 : index
    %c0_4 = arith.constant 0 : index
    %3 = vector.load %arg3[%c0_3, %c0_4] : memref<128x128xf32, #tpu.memory_space<vmem>>, vector<128x128xf32>
    tpu.vector_store %arg3[%c0_3, %c0_4], %2 {strides = array<i32>} : memref<128x128xf32, #tpu.memory_space<vmem>>, vector<128x128xf32>,
    %c0_i32 = arith.constant 0 : i32
    %4 = arith.cmpi eq, %arg0, %c0_i32 : i32
    %5 = arith.extui %4 : i1 to i32
    %c0_i32_5 = arith.constant 0 : i32
    %6 = arith.cmpi ne, %5, %c0_i32_5 : i32
    scf.if %6 {
      %cst_16 = arith.constant 0.000000e+00 : f32
      %18 = vector.broadcast %cst_16 : f32 to vector<1x128xf32>
      %c0_17 = arith.constant 0 : index
      %c0_18 = arith.constant 0 : index
      %19 = vector.load %arg4[%c0_17, %c0_18] : memref<1x128xf32, #tpu.memory_space<vmem>>, vector<1x128xf32>
      tpu.vector_store %arg4[%c0_17, %c0_18], %18 {strides = array<i32>} : memref<1x128xf32, #tpu.memory_space<vmem>>, vector<1x128xf32>,
      %cst_19 = arith.constant 0.000000e+00 : f32
      %20 = vector.broadcast %cst_19 : f32 to vector<1x128xf32>
      %c0_20 = arith.constant 0 : index
      %c0_21 = arith.constant 0 : index
      %21 = vector.load %arg5[%c0_20, %c0_21] : memref<1x128xf32, #tpu.memory_space<vmem>>, vector<1x128xf32>
      tpu.vector_store %arg5[%c0_20, %c0_21], %20 {strides = array<i32>} : memref<1x128xf32, #tpu.memory_space<vmem>>, vector<1x128xf32>,
    } else {
    }
    %c0_6 = arith.constant 0 : index
    %c0_7 = arith.constant 0 : index
    %7 = vector.load %arg4[%c0_6, %c0_7] : memref<1x128xf32, #tpu.memory_space<vmem>>, vector<1x128xf32>
    %cst_8 = arith.constant dense<0.000000e+00> : vector<128xf32>
    %8 = vector.multi_reduction <add>, %2, %cst_8 [0] : vector<128x128xf32> to vector<128xf32>
    %9 = vector.shape_cast %8 : vector<128xf32> to vector<1x128xf32>
    %10 = arith.addf %7, %9 : vector<1x128xf32>
    %c0_9 = arith.constant 0 : index
    %c0_10 = arith.constant 0 : index
    %11 = vector.load %arg4[%c0_9, %c0_10] : memref<1x128xf32, #tpu.memory_space<vmem>>, vector<1x128xf32>
    tpu.vector_store %arg4[%c0_9, %c0_10], %10 {strides = array<i32>} : memref<1x128xf32, #tpu.memory_space<vmem>>, vector<1x128xf32>,
    %c0_11 = arith.constant 0 : index
    %c0_12 = arith.constant 0 : index
    %12 = vector.load %arg5[%c0_11, %c0_12] : memref<1x128xf32, #tpu.memory_space<vmem>>, vector<1x128xf32>
    %13 = arith.mulf %2, %2 : vector<128x128xf32>
    %cst_13 = arith.constant dense<0.000000e+00> : vector<128xf32>
    %14 = vector.multi_reduction <add>, %13, %cst_13 [0] : vector<128x128xf32> to vector<128xf32>
    %15 = vector.shape_cast %14 : vector<128xf32> to vector<1x128xf32>
    %16 = arith.addf %12, %15 : vector<1x128xf32>
    %c0_14 = arith.constant 0 : index
    %c0_15 = arith.constant 0 : index
    %17 = vector.load %arg5[%c0_14, %c0_15] : memref<1x128xf32, #tpu.memory_space<vmem>>, vector<1x128xf32>
    tpu.vector_store %arg5[%c0_14, %c0_15], %16 {strides = array<i32>} : memref<1x128xf32, #tpu.memory_space<vmem>>, vector<1x128xf32>,
    return
  }
  func.func @transform_0(%arg0: i32) -> (i32, i32) {
    %c0_i32 = arith.constant 0 : i32
    %c0_i32_0 = arith.constant 0 : i32
    return %arg0, %c0_i32 : i32, i32
  }
  func.func @transform_1(%arg0: i32) -> (i32, i32) {
    %c0_i32 = arith.constant 0 : i32
    %c0_i32_0 = arith.constant 0 : i32
    %c0_i32_1 = arith.constant 0 : i32
    return %c0_i32, %c0_i32_0 : i32, i32
  }
  func.func @transform_2(%arg0: i32) -> (i32, i32) {
    %c0_i32 = arith.constant 0 : i32
    %c0_i32_0 = arith.constant 0 : i32
    return %arg0, %c0_i32 : i32, i32
  }
  func.func @transform_3(%arg0: i32) -> (i32, i32) {
    %c0_i32 = arith.constant 0 : i32
    %c0_i32_0 = arith.constant 0 : i32
    %c0_i32_1 = arith.constant 0 : i32
    return %c0_i32, %c0_i32_0 : i32, i32
  }
  func.func @transform_4(%arg0: i32) -> (i32, i32) {
    %c0_i32 = arith.constant 0 : i32
    %c0_i32_0 = arith.constant 0 : i32
    %c0_i32_1 = arith.constant 0 : i32
    return %c0_i32, %c0_i32_0 : i32, i32
  }
}

module attributes {stable_mosaic.version = 11 : i64} {
  func.func @_bn_relu_mm_stats_kernel(%arg0: i32, %arg1: memref<128x128xf32, #tpu.memory_space<vmem>>, %arg2: memref<1x128xf32, #tpu.memory_space<vmem>>, %arg3: memref<1x128xf32, #tpu.memory_space<vmem>>, %arg4: memref<128x128xbf16, #tpu.memory_space<vmem>>, %arg5: memref<128x128xf32, #tpu.memory_space<vmem>>, %arg6: memref<1x128xf32, #tpu.memory_space<vmem>>, %arg7: memref<1x128xf32, #tpu.memory_space<vmem>>) attributes {dimension_semantics = [#tpu.dimension_semantics<arbitrary>], iteration_bounds = array<i64: 1>, scalar_prefetch = 0 : i64, scratch_operands = 0 : i64, tpu.core_type = #tpu.core_type<tc>, window_params = [{transform_indices = @transform_0, window_bounds = array<i64: 128, 128>}, {pipeline_mode = #tpu.pipeline_mode<synchronous>, transform_indices = @transform_1, window_bounds = array<i64: 1, 128>}, {pipeline_mode = #tpu.pipeline_mode<synchronous>, transform_indices = @transform_2, window_bounds = array<i64: 1, 128>}, {pipeline_mode = #tpu.pipeline_mode<synchronous>, transform_indices = @transform_3, window_bounds = array<i64: 128, 128>}, {transform_indices = @transform_4, window_bounds = array<i64: 128, 128>}, {pipeline_mode = #tpu.pipeline_mode<synchronous>, transform_indices = @transform_5, window_bounds = array<i64: 1, 128>}, {pipeline_mode = #tpu.pipeline_mode<synchronous>, transform_indices = @transform_6, window_bounds = array<i64: 1, 128>}]} {
    %c0 = arith.constant 0 : index
    %c0_0 = arith.constant 0 : index
    %0 = vector.load %arg1[%c0, %c0_0] : memref<128x128xf32, #tpu.memory_space<vmem>>, vector<128x128xf32>
    %c0_1 = arith.constant 0 : index
    %c0_2 = arith.constant 0 : index
    %1 = vector.load %arg2[%c0_1, %c0_2] : memref<1x128xf32, #tpu.memory_space<vmem>>, vector<1x128xf32>
    %2 = vector.broadcast %1 : vector<1x128xf32> to vector<128x128xf32>
    %3 = arith.mulf %0, %2 : vector<128x128xf32>
    %c0_3 = arith.constant 0 : index
    %c0_4 = arith.constant 0 : index
    %4 = vector.load %arg3[%c0_3, %c0_4] : memref<1x128xf32, #tpu.memory_space<vmem>>, vector<1x128xf32>
    %5 = vector.broadcast %4 : vector<1x128xf32> to vector<128x128xf32>
    %6 = arith.addf %3, %5 : vector<128x128xf32>
    %cst = arith.constant 0.000000e+00 : f32
    %7 = vector.broadcast %cst : f32 to vector<128x128xf32>
    %8 = arith.maximumf %6, %7 : vector<128x128xf32>
    %9 = arith.truncf %8 : vector<128x128xf32> to vector<128x128xbf16>
    %c0_5 = arith.constant 0 : index
    %c0_6 = arith.constant 0 : index
    %10 = vector.load %arg4[%c0_5, %c0_6] : memref<128x128xbf16, #tpu.memory_space<vmem>>, vector<128x128xbf16>
    %cst_7 = arith.constant dense<0.000000e+00> : vector<128x128xf32>
    %11 = tpu.matmul %9, %10, %cst_7 {dimension_numbers = #tpu.dot_dimension_numbers<[1], [0], [0], [1], [0, 0, 1, 1], [], []>} : vector<128x128xbf16>, vector<128x128xbf16>, vector<128x128xf32> -> vector<128x128xf32>
    %c0_8 = arith.constant 0 : index
    %c0_9 = arith.constant 0 : index
    %12 = vector.load %arg5[%c0_8, %c0_9] : memref<128x128xf32, #tpu.memory_space<vmem>>, vector<128x128xf32>
    tpu.vector_store %arg5[%c0_8, %c0_9], %11 {strides = array<i32>} : memref<128x128xf32, #tpu.memory_space<vmem>>, vector<128x128xf32>,
    %c0_i32 = arith.constant 0 : i32
    %13 = arith.cmpi eq, %arg0, %c0_i32 : i32
    %14 = arith.extui %13 : i1 to i32
    %c0_i32_10 = arith.constant 0 : i32
    %15 = arith.cmpi ne, %14, %c0_i32_10 : i32
    scf.if %15 {
      %cst_21 = arith.constant 0.000000e+00 : f32
      %27 = vector.broadcast %cst_21 : f32 to vector<1x128xf32>
      %c0_22 = arith.constant 0 : index
      %c0_23 = arith.constant 0 : index
      %28 = vector.load %arg6[%c0_22, %c0_23] : memref<1x128xf32, #tpu.memory_space<vmem>>, vector<1x128xf32>
      tpu.vector_store %arg6[%c0_22, %c0_23], %27 {strides = array<i32>} : memref<1x128xf32, #tpu.memory_space<vmem>>, vector<1x128xf32>,
      %cst_24 = arith.constant 0.000000e+00 : f32
      %29 = vector.broadcast %cst_24 : f32 to vector<1x128xf32>
      %c0_25 = arith.constant 0 : index
      %c0_26 = arith.constant 0 : index
      %30 = vector.load %arg7[%c0_25, %c0_26] : memref<1x128xf32, #tpu.memory_space<vmem>>, vector<1x128xf32>
      tpu.vector_store %arg7[%c0_25, %c0_26], %29 {strides = array<i32>} : memref<1x128xf32, #tpu.memory_space<vmem>>, vector<1x128xf32>,
    } else {
    }
    %c0_11 = arith.constant 0 : index
    %c0_12 = arith.constant 0 : index
    %16 = vector.load %arg6[%c0_11, %c0_12] : memref<1x128xf32, #tpu.memory_space<vmem>>, vector<1x128xf32>
    %cst_13 = arith.constant dense<0.000000e+00> : vector<128xf32>
    %17 = vector.multi_reduction <add>, %11, %cst_13 [0] : vector<128x128xf32> to vector<128xf32>
    %18 = vector.shape_cast %17 : vector<128xf32> to vector<1x128xf32>
    %19 = arith.addf %16, %18 : vector<1x128xf32>
    %c0_14 = arith.constant 0 : index
    %c0_15 = arith.constant 0 : index
    %20 = vector.load %arg6[%c0_14, %c0_15] : memref<1x128xf32, #tpu.memory_space<vmem>>, vector<1x128xf32>
    tpu.vector_store %arg6[%c0_14, %c0_15], %19 {strides = array<i32>} : memref<1x128xf32, #tpu.memory_space<vmem>>, vector<1x128xf32>,
    %c0_16 = arith.constant 0 : index
    %c0_17 = arith.constant 0 : index
    %21 = vector.load %arg7[%c0_16, %c0_17] : memref<1x128xf32, #tpu.memory_space<vmem>>, vector<1x128xf32>
    %22 = arith.mulf %11, %11 : vector<128x128xf32>
    %cst_18 = arith.constant dense<0.000000e+00> : vector<128xf32>
    %23 = vector.multi_reduction <add>, %22, %cst_18 [0] : vector<128x128xf32> to vector<128xf32>
    %24 = vector.shape_cast %23 : vector<128xf32> to vector<1x128xf32>
    %25 = arith.addf %21, %24 : vector<1x128xf32>
    %c0_19 = arith.constant 0 : index
    %c0_20 = arith.constant 0 : index
    %26 = vector.load %arg7[%c0_19, %c0_20] : memref<1x128xf32, #tpu.memory_space<vmem>>, vector<1x128xf32>
    tpu.vector_store %arg7[%c0_19, %c0_20], %25 {strides = array<i32>} : memref<1x128xf32, #tpu.memory_space<vmem>>, vector<1x128xf32>,
    return
  }
  func.func @transform_0(%arg0: i32) -> (i32, i32) {
    %c0_i32 = arith.constant 0 : i32
    %c0_i32_0 = arith.constant 0 : i32
    return %arg0, %c0_i32 : i32, i32
  }
  func.func @transform_1(%arg0: i32) -> (i32, i32) {
    %c0_i32 = arith.constant 0 : i32
    %c0_i32_0 = arith.constant 0 : i32
    %c0_i32_1 = arith.constant 0 : i32
    return %c0_i32, %c0_i32_0 : i32, i32
  }
  func.func @transform_2(%arg0: i32) -> (i32, i32) {
    %c0_i32 = arith.constant 0 : i32
    %c0_i32_0 = arith.constant 0 : i32
    %c0_i32_1 = arith.constant 0 : i32
    return %c0_i32, %c0_i32_0 : i32, i32
  }
  func.func @transform_3(%arg0: i32) -> (i32, i32) {
    %c0_i32 = arith.constant 0 : i32
    %c0_i32_0 = arith.constant 0 : i32
    %c0_i32_1 = arith.constant 0 : i32
    return %c0_i32, %c0_i32_0 : i32, i32
  }
  func.func @transform_4(%arg0: i32) -> (i32, i32) {
    %c0_i32 = arith.constant 0 : i32
    %c0_i32_0 = arith.constant 0 : i32
    return %arg0, %c0_i32 : i32, i32
  }
  func.func @transform_5(%arg0: i32) -> (i32, i32) {
    %c0_i32 = arith.constant 0 : i32
    %c0_i32_0 = arith.constant 0 : i32
    %c0_i32_1 = arith.constant 0 : i32
    return %c0_i32, %c0_i32_0 : i32, i32
  }
  func.func @transform_6(%arg0: i32) -> (i32, i32) {
    %c0_i32 = arith.constant 0 : i32
    %c0_i32_0 = arith.constant 0 : i32
    %c0_i32_1 = arith.constant 0 : i32
    return %c0_i32, %c0_i32_0 : i32, i32
  }
}

module attributes {stable_mosaic.version = 11 : i64} {
  func.func @_mm_stats_kernel(%arg0: i32, %arg1: memref<128x128xbf16, #tpu.memory_space<vmem>>, %arg2: memref<128x128xbf16, #tpu.memory_space<vmem>>, %arg3: memref<128x128xf32, #tpu.memory_space<vmem>>, %arg4: memref<1x128xf32, #tpu.memory_space<vmem>>, %arg5: memref<1x128xf32, #tpu.memory_space<vmem>>) attributes {dimension_semantics = [#tpu.dimension_semantics<arbitrary>], iteration_bounds = array<i64: 1>, scalar_prefetch = 0 : i64, scratch_operands = 0 : i64, tpu.core_type = #tpu.core_type<tc>, window_params = [{transform_indices = @transform_0, window_bounds = array<i64: 128, 128>}, {pipeline_mode = #tpu.pipeline_mode<synchronous>, transform_indices = @transform_1, window_bounds = array<i64: 128, 128>}, {transform_indices = @transform_2, window_bounds = array<i64: 128, 128>}, {pipeline_mode = #tpu.pipeline_mode<synchronous>, transform_indices = @transform_3, window_bounds = array<i64: 1, 128>}, {pipeline_mode = #tpu.pipeline_mode<synchronous>, transform_indices = @transform_4, window_bounds = array<i64: 1, 128>}]} {
    %c0 = arith.constant 0 : index
    %c0_0 = arith.constant 0 : index
    %0 = vector.load %arg1[%c0, %c0_0] : memref<128x128xbf16, #tpu.memory_space<vmem>>, vector<128x128xbf16>
    %c0_1 = arith.constant 0 : index
    %c0_2 = arith.constant 0 : index
    %1 = vector.load %arg2[%c0_1, %c0_2] : memref<128x128xbf16, #tpu.memory_space<vmem>>, vector<128x128xbf16>
    %cst = arith.constant dense<0.000000e+00> : vector<128x128xf32>
    %2 = tpu.matmul %0, %1, %cst {dimension_numbers = #tpu.dot_dimension_numbers<[1], [0], [0], [1], [0, 0, 1, 1], [], []>} : vector<128x128xbf16>, vector<128x128xbf16>, vector<128x128xf32> -> vector<128x128xf32>
    %c0_3 = arith.constant 0 : index
    %c0_4 = arith.constant 0 : index
    %3 = vector.load %arg3[%c0_3, %c0_4] : memref<128x128xf32, #tpu.memory_space<vmem>>, vector<128x128xf32>
    tpu.vector_store %arg3[%c0_3, %c0_4], %2 {strides = array<i32>} : memref<128x128xf32, #tpu.memory_space<vmem>>, vector<128x128xf32>,
    %c0_i32 = arith.constant 0 : i32
    %4 = arith.cmpi eq, %arg0, %c0_i32 : i32
    %5 = arith.extui %4 : i1 to i32
    %c0_i32_5 = arith.constant 0 : i32
    %6 = arith.cmpi ne, %5, %c0_i32_5 : i32
    scf.if %6 {
      %cst_16 = arith.constant 0.000000e+00 : f32
      %18 = vector.broadcast %cst_16 : f32 to vector<1x128xf32>
      %c0_17 = arith.constant 0 : index
      %c0_18 = arith.constant 0 : index
      %19 = vector.load %arg4[%c0_17, %c0_18] : memref<1x128xf32, #tpu.memory_space<vmem>>, vector<1x128xf32>
      tpu.vector_store %arg4[%c0_17, %c0_18], %18 {strides = array<i32>} : memref<1x128xf32, #tpu.memory_space<vmem>>, vector<1x128xf32>,
      %cst_19 = arith.constant 0.000000e+00 : f32
      %20 = vector.broadcast %cst_19 : f32 to vector<1x128xf32>
      %c0_20 = arith.constant 0 : index
      %c0_21 = arith.constant 0 : index
      %21 = vector.load %arg5[%c0_20, %c0_21] : memref<1x128xf32, #tpu.memory_space<vmem>>, vector<1x128xf32>
      tpu.vector_store %arg5[%c0_20, %c0_21], %20 {strides = array<i32>} : memref<1x128xf32, #tpu.memory_space<vmem>>, vector<1x128xf32>,
    } else {
    }
    %c0_6 = arith.constant 0 : index
    %c0_7 = arith.constant 0 : index
    %7 = vector.load %arg4[%c0_6, %c0_7] : memref<1x128xf32, #tpu.memory_space<vmem>>, vector<1x128xf32>
    %cst_8 = arith.constant dense<0.000000e+00> : vector<128xf32>
    %8 = vector.multi_reduction <add>, %2, %cst_8 [0] : vector<128x128xf32> to vector<128xf32>
    %9 = vector.shape_cast %8 : vector<128xf32> to vector<1x128xf32>
    %10 = arith.addf %7, %9 : vector<1x128xf32>
    %c0_9 = arith.constant 0 : index
    %c0_10 = arith.constant 0 : index
    %11 = vector.load %arg4[%c0_9, %c0_10] : memref<1x128xf32, #tpu.memory_space<vmem>>, vector<1x128xf32>
    tpu.vector_store %arg4[%c0_9, %c0_10], %10 {strides = array<i32>} : memref<1x128xf32, #tpu.memory_space<vmem>>, vector<1x128xf32>,
    %c0_11 = arith.constant 0 : index
    %c0_12 = arith.constant 0 : index
    %12 = vector.load %arg5[%c0_11, %c0_12] : memref<1x128xf32, #tpu.memory_space<vmem>>, vector<1x128xf32>
    %13 = arith.mulf %2, %2 : vector<128x128xf32>
    %cst_13 = arith.constant dense<0.000000e+00> : vector<128xf32>
    %14 = vector.multi_reduction <add>, %13, %cst_13 [0] : vector<128x128xf32> to vector<128xf32>
    %15 = vector.shape_cast %14 : vector<128xf32> to vector<1x128xf32>
    %16 = arith.addf %12, %15 : vector<1x128xf32>
    %c0_14 = arith.constant 0 : index
    %c0_15 = arith.constant 0 : index
    %17 = vector.load %arg5[%c0_14, %c0_15] : memref<1x128xf32, #tpu.memory_space<vmem>>, vector<1x128xf32>
    tpu.vector_store %arg5[%c0_14, %c0_15], %16 {strides = array<i32>} : memref<1x128xf32, #tpu.memory_space<vmem>>, vector<1x128xf32>,
    return
  }
  func.func @transform_0(%arg0: i32) -> (i32, i32) {
    %c0_i32 = arith.constant 0 : i32
    %c0_i32_0 = arith.constant 0 : i32
    return %arg0, %c0_i32 : i32, i32
  }
  func.func @transform_1(%arg0: i32) -> (i32, i32) {
    %c0_i32 = arith.constant 0 : i32
    %c0_i32_0 = arith.constant 0 : i32
    %c0_i32_1 = arith.constant 0 : i32
    return %c0_i32, %c0_i32_0 : i32, i32
  }
  func.func @transform_2(%arg0: i32) -> (i32, i32) {
    %c0_i32 = arith.constant 0 : i32
    %c0_i32_0 = arith.constant 0 : i32
    return %arg0, %c0_i32 : i32, i32
  }
  func.func @transform_3(%arg0: i32) -> (i32, i32) {
    %c0_i32 = arith.constant 0 : i32
    %c0_i32_0 = arith.constant 0 : i32
    %c0_i32_1 = arith.constant 0 : i32
    return %c0_i32, %c0_i32_0 : i32, i32
  }
  func.func @transform_4(%arg0: i32) -> (i32, i32) {
    %c0_i32 = arith.constant 0 : i32
    %c0_i32_0 = arith.constant 0 : i32
    %c0_i32_1 = arith.constant 0 : i32
    return %c0_i32, %c0_i32_0 : i32, i32
  }
}

module attributes {stable_mosaic.version = 11 : i64} {
  func.func @_bn_add_relu_kernel(%arg0: i32, %arg1: memref<128x128xf32, #tpu.memory_space<vmem>>, %arg2: memref<1x128xf32, #tpu.memory_space<vmem>>, %arg3: memref<1x128xf32, #tpu.memory_space<vmem>>, %arg4: memref<128x128xf32, #tpu.memory_space<vmem>>, %arg5: memref<1x128xf32, #tpu.memory_space<vmem>>, %arg6: memref<1x128xf32, #tpu.memory_space<vmem>>, %arg7: memref<128x128xf32, #tpu.memory_space<vmem>>) attributes {dimension_semantics = [#tpu.dimension_semantics<parallel>], iteration_bounds = array<i64: 1>, scalar_prefetch = 0 : i64, scratch_operands = 0 : i64, tpu.core_type = #tpu.core_type<tc>, window_params = [{transform_indices = @transform_0, window_bounds = array<i64: 128, 128>}, {pipeline_mode = #tpu.pipeline_mode<synchronous>, transform_indices = @transform_1, window_bounds = array<i64: 1, 128>}, {pipeline_mode = #tpu.pipeline_mode<synchronous>, transform_indices = @transform_2, window_bounds = array<i64: 1, 128>}, {transform_indices = @transform_3, window_bounds = array<i64: 128, 128>}, {pipeline_mode = #tpu.pipeline_mode<synchronous>, transform_indices = @transform_4, window_bounds = array<i64: 1, 128>}, {pipeline_mode = #tpu.pipeline_mode<synchronous>, transform_indices = @transform_5, window_bounds = array<i64: 1, 128>}, {transform_indices = @transform_6, window_bounds = array<i64: 128, 128>}]} {
    %c0 = arith.constant 0 : index
    %c0_0 = arith.constant 0 : index
    %0 = vector.load %arg1[%c0, %c0_0] : memref<128x128xf32, #tpu.memory_space<vmem>>, vector<128x128xf32>
    %c0_1 = arith.constant 0 : index
    %c0_2 = arith.constant 0 : index
    %1 = vector.load %arg2[%c0_1, %c0_2] : memref<1x128xf32, #tpu.memory_space<vmem>>, vector<1x128xf32>
    %2 = vector.broadcast %1 : vector<1x128xf32> to vector<128x128xf32>
    %3 = arith.mulf %0, %2 : vector<128x128xf32>
    %c0_3 = arith.constant 0 : index
    %c0_4 = arith.constant 0 : index
    %4 = vector.load %arg3[%c0_3, %c0_4] : memref<1x128xf32, #tpu.memory_space<vmem>>, vector<1x128xf32>
    %5 = vector.broadcast %4 : vector<1x128xf32> to vector<128x128xf32>
    %6 = arith.addf %3, %5 : vector<128x128xf32>
    %c0_5 = arith.constant 0 : index
    %c0_6 = arith.constant 0 : index
    %7 = vector.load %arg4[%c0_5, %c0_6] : memref<128x128xf32, #tpu.memory_space<vmem>>, vector<128x128xf32>
    %c0_7 = arith.constant 0 : index
    %c0_8 = arith.constant 0 : index
    %8 = vector.load %arg5[%c0_7, %c0_8] : memref<1x128xf32, #tpu.memory_space<vmem>>, vector<1x128xf32>
    %9 = vector.broadcast %8 : vector<1x128xf32> to vector<128x128xf32>
    %10 = arith.mulf %7, %9 : vector<128x128xf32>
    %c0_9 = arith.constant 0 : index
    %c0_10 = arith.constant 0 : index
    %11 = vector.load %arg6[%c0_9, %c0_10] : memref<1x128xf32, #tpu.memory_space<vmem>>, vector<1x128xf32>
    %12 = vector.broadcast %11 : vector<1x128xf32> to vector<128x128xf32>
    %13 = arith.addf %10, %12 : vector<128x128xf32>
    %14 = arith.addf %6, %13 : vector<128x128xf32>
    %cst = arith.constant 0.000000e+00 : f32
    %15 = vector.broadcast %cst : f32 to vector<128x128xf32>
    %16 = arith.maximumf %14, %15 : vector<128x128xf32>
    %c0_11 = arith.constant 0 : index
    %c0_12 = arith.constant 0 : index
    %17 = vector.load %arg7[%c0_11, %c0_12] : memref<128x128xf32, #tpu.memory_space<vmem>>, vector<128x128xf32>
    tpu.vector_store %arg7[%c0_11, %c0_12], %16 {strides = array<i32>} : memref<128x128xf32, #tpu.memory_space<vmem>>, vector<128x128xf32>,
    return
  }
  func.func @transform_0(%arg0: i32) -> (i32, i32) {
    %c0_i32 = arith.constant 0 : i32
    %c0_i32_0 = arith.constant 0 : i32
    return %arg0, %c0_i32 : i32, i32
  }
  func.func @transform_1(%arg0: i32) -> (i32, i32) {
    %c0_i32 = arith.constant 0 : i32
    %c0_i32_0 = arith.constant 0 : i32
    %c0_i32_1 = arith.constant 0 : i32
    return %c0_i32, %c0_i32_0 : i32, i32
  }
  func.func @transform_2(%arg0: i32) -> (i32, i32) {
    %c0_i32 = arith.constant 0 : i32
    %c0_i32_0 = arith.constant 0 : i32
    %c0_i32_1 = arith.constant 0 : i32
    return %c0_i32, %c0_i32_0 : i32, i32
  }
  func.func @transform_3(%arg0: i32) -> (i32, i32) {
    %c0_i32 = arith.constant 0 : i32
    %c0_i32_0 = arith.constant 0 : i32
    return %arg0, %c0_i32 : i32, i32
  }
  func.func @transform_4(%arg0: i32) -> (i32, i32) {
    %c0_i32 = arith.constant 0 : i32
    %c0_i32_0 = arith.constant 0 : i32
    %c0_i32_1 = arith.constant 0 : i32
    return %c0_i32, %c0_i32_0 : i32, i32
  }
  func.func @transform_5(%arg0: i32) -> (i32, i32) {
    %c0_i32 = arith.constant 0 : i32
    %c0_i32_0 = arith.constant 0 : i32
    %c0_i32_1 = arith.constant 0 : i32
    return %c0_i32, %c0_i32_0 : i32, i32
  }
  func.func @transform_6(%arg0: i32) -> (i32, i32) {
    %c0_i32 = arith.constant 0 : i32
    %c0_i32_0 = arith.constant 0 : i32
    return %arg0, %c0_i32 : i32, i32
  }
}

</mosaic_0001>

<llo_original>
// kernel: bottleneck_forward.7
$region0: #{bottleneck_forward.7}
  #allocation0 [shape = 'u32[]', space=smem, size = 0x4, offset = 0x4, fixed_abs, tag = 'smem constant byte address 0x4 - core index']
  #allocation1 [shape = 'u32[144,128]{1,0:T(1,128)}', space=vmem, size = 0x12000, scoped, tag = 'internal scratch']
  %s0 = inlined_call_operand.vmem [shape: f32[512,128], index: 0, kind: input, shape index: {}]
  %s1 = inlined_call_operand.vmem [shape: f32[1,128], index: 1, kind: input, shape index: {}]
  %s2 = inlined_call_operand.vmem [shape: f32[1,128], index: 2, kind: input, shape index: {}]
  %s3 = inlined_call_operand.vmem [shape: bf16[512,128], index: 3, kind: output, shape index: {}]
  %s4 = sld [smem:[#allocation0]]
  $region45: #{bottleneck_forward.7} parent=0
    _
  %s6 = ssub.s32 1, %s4
  %s7 = scalar_select 0, %s6, %s4
  loop: start=0, step=1, limit=4
  $region2: #{bottleneck_forward.7} parent=0 // loop_pre_header
    _
  $region3: #{bottleneck_forward.7} parent=0 // loop_header
    %s9 = sphi 0, %s13
    %p10 = scmp.ge.s32.totalorder %s9, 4
    %s19 = sphi 0, %s21
    %s22 = sphi 0, %s19
    %s23 = sphi 0, %s22
    %s39 = sphi 0, %s23
    %s43 = sphi 0, %s43
    %s45 = sphi 0, %s43
    %s46 = sphi 0, %s45
    %s60 = sphi 0, %s46
    %s64 = sphi 0, %s64
    %s66 = sphi 0, %s64
    %s67 = sphi 0, %s66
    %s81 = sphi 0, %s67
    %s87 = sphi 0, %s89
    %s90 = sphi 0, %s87
    %s91 = sphi 0, %s90
    %s107 = sphi 0, %s91
  $region4: #{bottleneck_forward.7} parent=0 // loop_header_branch
    %12 = sbr.rel (%p10) target = $region8
  $region5: #{bottleneck_forward.7} parent=0 // loop_body
    %s14 = ssub.s32 %s9, 1
    %s15 = ssub.s32 %s9, 2
    %s16 = sadd.s32 %s9, 1
    %s17 = ssub.s32 %s9, %s16
    %p18 = scmp.eq.s32.totalorder %s17, 0
    %s20 = sadd.s32 %s19, 1
    %s21 = scalar_select %p18, %s19, %s20
    %p24 = pneg %p18
    %p25 = scmp.eq.s32.totalorder %s9, 1
    %p26 = por %p24, %p25
    %p27 = scmp.ne.s32.totalorder %s19, %s22
    %p28 = scmp.eq.s32.totalorder %s9, 0
    %p29 = por %p27, %p28
    %p30 = scmp.ne.s32.totalorder %s19, %s22
    %p31 = scmp.eq.s32.totalorder %s14, 1
    %p32 = por %p30, %p31
    %p33 = scmp.ne.s32.totalorder %s22, %s23
    %p34 = scmp.eq.s32.totalorder %s14, 0
    %p35 = por %p33, %p34
    %p36 = scmp.ne.s32.totalorder %s22, %s23
    %p37 = scmp.eq.s32.totalorder %s15, 1
    %p38 = por %p36, %p37
    %p40 = scmp.ne.s32.totalorder %s23, %s39
    %p41 = scmp.eq.s32.totalorder %s15, 0
    %p42 = por %p40, %p41
    %s44 = sadd.s32 %s43, 1
    %p47 = scmp.eq.s32.totalorder %s9, 1
    %p48 = scmp.ne.s32.totalorder %s43, %s45
    %p49 = scmp.eq.s32.totalorder %s9, 0
    %p50 = por %p48, %p49
    %p51 = scmp.ne.s32.totalorder %s43, %s45
    %p52 = scmp.eq.s32.totalorder %s14, 1
    %p53 = por %p51, %p52
    %p54 = scmp.ne.s32.totalorder %s45, %s46
    %p55 = scmp.eq.s32.totalorder %s14, 0
    %p56 = por %p54, %p55
    %p57 = scmp.ne.s32.totalorder %s45, %s46
    %p58 = scmp.eq.s32.totalorder %s15, 1
    %p59 = por %p57, %p58
    %p61 = scmp.ne.s32.totalorder %s46, %s60
    %p62 = scmp.eq.s32.totalorder %s15, 0
    %p63 = por %p61, %p62
    %s65 = sadd.s32 %s64, 1
    %p68 = scmp.eq.s32.totalorder %s9, 1
    %p69 = scmp.ne.s32.totalorder %s64, %s66
    %p70 = scmp.eq.s32.totalorder %s9, 0
    %p71 = por %p69, %p70
    %p72 = scmp.ne.s32.totalorder %s64, %s66
    %p73 = scmp.eq.s32.totalorder %s14, 1
    %p74 = por %p72, %p73
    %p75 = scmp.ne.s32.totalorder %s66, %s67
    %p76 = scmp.eq.s32.totalorder %s14, 0
    %p77 = por %p75, %p76
    %p78 = scmp.ne.s32.totalorder %s66, %s67
    %p79 = scmp.eq.s32.totalorder %s15, 1
    %p80 = por %p78, %p79
    %p82 = scmp.ne.s32.totalorder %s67, %s81
    %p83 = scmp.eq.s32.totalorder %s15, 0
    %p84 = por %p82, %p83
    %s85 = ssub.s32 %s9, %s16
    %p86 = scmp.eq.s32.totalorder %s85, 0
    %s88 = sadd.s32 %s87, 1
    %s89 = scalar_select %p86, %s87, %s88
    %p92 = pneg %p86
    %p93 = scmp.eq.s32.totalorder %s9, 1
    %p94 = por %p92, %p93
    %p95 = scmp.ne.s32.totalorder %s87, %s90
    %p96 = scmp.eq.s32.totalorder %s9, 0
    %p97 = por %p95, %p96
    %p98 = scmp.ne.s32.totalorder %s87, %s90
    %p99 = scmp.eq.s32.totalorder %s14, 1
    %p100 = por %p98, %p99
    %p101 = scmp.ne.s32.totalorder %s90, %s91
    %p102 = scmp.eq.s32.totalorder %s14, 0
    %p103 = por %p101, %p102
    %p104 = scmp.ne.s32.totalorder %s90, %s91
    %p105 = scmp.eq.s32.totalorder %s15, 1
    %p106 = por %p104, %p105
    %p108 = scmp.ne.s32.totalorder %s91, %s107
    %p109 = scmp.eq.s32.totalorder %s15, 0
    %p110 = por %p108, %p109
    %p111 = scmp.le.s32.totalorder 1, %s9
    %p112 = scmp.lt.s32.totalorder %s9, 3
    %p113 = pnand %p111, %p112
    %p114 = pneg %p113
    // Predicated region
    $region9: #{bottleneck_forward.7} parent=5 // pred_check
      _
    $region10: #{bottleneck_forward.7} parent=5 // pred_check_branch
      %116 = sbr.rel (%p113) target = $region12
    $region11: #{bottleneck_forward.7} parent=5 // pred_region
      %s117 = ssub.s32 %s9, 1
      // Predicated region
      $region13: #{bottleneck_forward.7} parent=11 // pred_check
        %p118 = pneg %p56
      $region14: #{bottleneck_forward.7} parent=11 // pred_check_branch
        %120 = sbr.rel (%p118) target = $region16
      $region15: #{bottleneck_forward.7} parent=11 // pred_region
        _
      $region16: #{bottleneck_forward.7} parent=11 // pred_fallthru
        _
      // Predicated region
      $region17: #{bottleneck_forward.7} parent=11 // pred_check
        %p121 = pneg %p77
      $region18: #{bottleneck_forward.7} parent=11 // pred_check_branch
        %123 = sbr.rel (%p121) target = $region20
      $region19: #{bottleneck_forward.7} parent=11 // pred_region
        _
      $region20: #{bottleneck_forward.7} parent=11 // pred_fallthru
        _
    $region12: #{bottleneck_forward.7} parent=5 // pred_fallthru
      _
    %p124 = scmp.lt.s32.totalorder %s9, 2
    // Predicated region
    $region21: #{bottleneck_forward.7} parent=5 // pred_check
      %p125 = pneg %p124
    $region22: #{bottleneck_forward.7} parent=5 // pred_check_branch
      %127 = sbr.rel (%p125) target = $region24
    $region23: #{bottleneck_forward.7} parent=5 // pred_region
      // Predicated region
      $region25: #{bottleneck_forward.7} parent=23 // pred_check
        %p128 = pneg %p29
      $region26: #{bottleneck_forward.7} parent=23 // pred_check_branch
        %130 = sbr.rel (%p128) target = $region28
      $region27: #{bottleneck_forward.7} parent=23 // pred_region
        %s131 = smul.u32 32, %s9
        %p132 = scmp.lt.s32.totalorder %s131, 63
        %s133 = scalar_select %p132, %s131, 63
        %s134 = smul.addr %s133, 8
        %s135 = scalar_lea.vmem %s0, %s134
        %s136 = smul.u32 32, %s9
      $region28: #{bottleneck_forward.7} parent=23 // pred_fallthru
        _
    $region24: #{bottleneck_forward.7} parent=5 // pred_fallthru
      _
    %p137 = scmp.le.s32.totalorder 1, %s9
    %p138 = scmp.lt.s32.totalorder %s9, 3
    %p139 = pnand %p137, %p138
    %p140 = pneg %p139
    // Predicated region
    $region29: #{bottleneck_forward.7} parent=5 // pred_check
      _
    $region30: #{bottleneck_forward.7} parent=5 // pred_check_branch
      %142 = sbr.rel (%p139) target = $region32
    $region31: #{bottleneck_forward.7} parent=5 // pred_region
      %s143 = ssub.s32 %s9, 1
      %s144 = smul.u32 32, %s14
      %p145 = scmp.lt.s32.totalorder %s144, 63
      %s146 = scalar_select %p145, %s144, 63
      %s147 = smul.addr %s146, 8
      %s148 = scalar_lea.vmem %s0, %s147
      %p149 = pneg %p35
      %p150 = pneg %p32
      %p151 = pneg %p56
      %p152 = pneg %p53
      %p153 = pneg %p77
      %p154 = pneg %p74
      %p155 = pneg %p103
      %p156 = pneg %p100
      %s157 = smul.u32 32, %s14
      %p158 = scmp.lt.s32.totalorder %s157, 63
      %s159 = scalar_select %p158, %s157, 63
      %s160 = smul.addr %s159, 4
      %s161 = scalar_lea.vmem %s3, %s160
      %s162 = smul.u32 32, %s14
      %p163 = scmp.lt.s32.totalorder %s162, 63
      %s164 = scalar_select %p163, %s162, 63
      %s165 = smul.addr %s164, 8
      %s166 = scalar_lea.vmem %s0, %s165
      %s167 = smul.u32 32, %s14
      %s168 = smul.u32 32, %s14
      %p169 = scmp.lt.s32.totalorder %s168, 63
      %s170 = scalar_select %p169, %s168, 63
      %s171 = smul.addr %s170, 4
      %s172 = scalar_lea.vmem %s3, %s171
      %s173 = smul.u32 32, %s14
      %v174 = vld [vmem:[%s166] sm:$0xff]
      %v175 = vld [vmem:[%s166 + $0x8] sm:$0xff]
      %v176 = vld [vmem:[%s166 + $0x10] sm:$0xff]
      %v177 = vld [vmem:[%s166 + $0x18] sm:$0xff]
      %v178 = vld [vmem:[%s166 + $0x20] sm:$0xff]
      %v179 = vld [vmem:[%s166 + $0x28] sm:$0xff]
      %v180 = vld [vmem:[%s166 + $0x30] sm:$0xff]
      %v181 = vld [vmem:[%s166 + $0x38] sm:$0xff]
      %v182 = vld [vmem:[%s166 + $0x40] sm:$0xff]
      %v183 = vld [vmem:[%s166 + $0x48] sm:$0xff]
      %v184 = vld [vmem:[%s166 + $0x50] sm:$0xff]
      %v185 = vld [vmem:[%s166 + $0x58] sm:$0xff]
      %v186 = vld [vmem:[%s166 + $0x60] sm:$0xff]
      %v187 = vld [vmem:[%s166 + $0x68] sm:$0xff]
      %v188 = vld [vmem:[%s166 + $0x70] sm:$0xff]
      %v189 = vld [vmem:[%s166 + $0x78] sm:$0xff]
      %v190 = vld [vmem:[%s166 + $0x80] sm:$0xff]
      %v191 = vld [vmem:[%s166 + $0x88] sm:$0xff]
      %v192 = vld [vmem:[%s166 + $0x90] sm:$0xff]
      %v193 = vld [vmem:[%s166 + $0x98] sm:$0xff]
      %v194 = vld [vmem:[%s166 + $0xa0] sm:$0xff]
      %v195 = vld [vmem:[%s166 + $0xa8] sm:$0xff]
      %v196 = vld [vmem:[%s166 + $0xb0] sm:$0xff]
      %v197 = vld [vmem:[%s166 + $0xb8] sm:$0xff]
      %v198 = vld [vmem:[%s166 + $0xc0] sm:$0xff]
      %v199 = vld [vmem:[%s166 + $0xc8] sm:$0xff]
      %v200 = vld [vmem:[%s166 + $0xd0] sm:$0xff]
      %v201 = vld [vmem:[%s166 + $0xd8] sm:$0xff]
      %v202 = vld [vmem:[%s166 + $0xe0] sm:$0xff]
      %v203 = vld [vmem:[%s166 + $0xe8] sm:$0xff]
      %v204 = vld [vmem:[%s166 + $0xf0] sm:$0xff]
      %v205 = vld [vmem:[%s166 + $0xf8] sm:$0xff]
      %v206 = vld [vmem:[%s1] sm:$0x1]
      %v208 = vlaneseq
      %v209 = vshrl.u32 %v208, 7
      %v210 = vsub.s32 0, %v209
      %v211 = vrot.slane %v206, %v210
      %v213 = vmul.f32 %v174, %v211
      %v214 = vmul.f32 %v175, %v211
      %v215 = vmul.f32 %v176, %v211
      %v216 = vmul.f32 %v177, %v211
      %v217 = vmul.f32 %v178, %v211
      %v218 = vmul.f32 %v179, %v211
      %v219 = vmul.f32 %v180, %v211
      %v220 = vmul.f32 %v181, %v211
      %v221 = vmul.f32 %v182, %v211
      %v222 = vmul.f32 %v183, %v211
      %v223 = vmul.f32 %v184, %v211
      %v224 = vmul.f32 %v185, %v211
      %v225 = vmul.f32 %v186, %v211
      %v226 = vmul.f32 %v187, %v211
      %v227 = vmul.f32 %v188, %v211
      %v228 = vmul.f32 %v189, %v211
      %v229 = vmul.f32 %v190, %v211
      %v230 = vmul.f32 %v191, %v211
      %v231 = vmul.f32 %v192, %v211
      %v232 = vmul.f32 %v193, %v211
      %v233 = vmul.f32 %v194, %v211
      %v234 = vmul.f32 %v195, %v211
      %v235 = vmul.f32 %v196, %v211
      %v236 = vmul.f32 %v197, %v211
      %v237 = vmul.f32 %v198, %v211
      %v238 = vmul.f32 %v199, %v211
      %v239 = vmul.f32 %v200, %v211
      %v240 = vmul.f32 %v201, %v211
      %v241 = vmul.f32 %v202, %v211
      %v242 = vmul.f32 %v203, %v211
      %v243 = vmul.f32 %v204, %v211
      %v244 = vmul.f32 %v205, %v211
      %v245 = vld [vmem:[%s2] sm:$0x1]
      %v247 = vlaneseq
      %v248 = vshrl.u32 %v247, 7
      %v249 = vsub.s32 0, %v248
      %v250 = vrot.slane %v245, %v249
      %v252 = vadd.f32 %v213, %v250
      %v253 = vadd.f32 %v214, %v250
      %v254 = vadd.f32 %v215, %v250
      %v255 = vadd.f32 %v216, %v250
      %v256 = vadd.f32 %v217, %v250
      %v257 = vadd.f32 %v218, %v250
      %v258 = vadd.f32 %v219, %v250
      %v259 = vadd.f32 %v220, %v250
      %v260 = vadd.f32 %v221, %v250
      %v261 = vadd.f32 %v222, %v250
      %v262 = vadd.f32 %v223, %v250
      %v263 = vadd.f32 %v224, %v250
      %v264 = vadd.f32 %v225, %v250
      %v265 = vadd.f32 %v226, %v250
      %v266 = vadd.f32 %v227, %v250
      %v267 = vadd.f32 %v228, %v250
      %v268 = vadd.f32 %v229, %v250
      %v269 = vadd.f32 %v230, %v250
      %v270 = vadd.f32 %v231, %v250
      %v271 = vadd.f32 %v232, %v250
      %v272 = vadd.f32 %v233, %v250
      %v273 = vadd.f32 %v234, %v250
      %v274 = vadd.f32 %v235, %v250
      %v275 = vadd.f32 %v236, %v250
      %v276 = vadd.f32 %v237, %v250
      %v277 = vadd.f32 %v238, %v250
      %v278 = vadd.f32 %v239, %v250
      %v279 = vadd.f32 %v240, %v250
      %v280 = vadd.f32 %v241, %v250
      %v281 = vadd.f32 %v242, %v250
      %v282 = vadd.f32 %v243, %v250
      %v283 = vadd.f32 %v244, %v250
      %v284 = vmax.f32 %v252, 0.0
      %v285 = vmax.f32 %v253, 0.0
      %v286 = vmax.f32 %v254, 0.0
      %v287 = vmax.f32 %v255, 0.0
      %v288 = vmax.f32 %v256, 0.0
      %v289 = vmax.f32 %v257, 0.0
      %v290 = vmax.f32 %v258, 0.0
      %v291 = vmax.f32 %v259, 0.0
      %v292 = vmax.f32 %v260, 0.0
      %v293 = vmax.f32 %v261, 0.0
      %v294 = vmax.f32 %v262, 0.0
      %v295 = vmax.f32 %v263, 0.0
      %v296 = vmax.f32 %v264, 0.0
      %v297 = vmax.f32 %v265, 0.0
      %v298 = vmax.f32 %v266, 0.0
      %v299 = vmax.f32 %v267, 0.0
      %v300 = vmax.f32 %v268, 0.0
      %v301 = vmax.f32 %v269, 0.0
      %v302 = vmax.f32 %v270, 0.0
      %v303 = vmax.f32 %v271, 0.0
      %v304 = vmax.f32 %v272, 0.0
      %v305 = vmax.f32 %v273, 0.0
      %v306 = vmax.f32 %v274, 0.0
      %v307 = vmax.f32 %v275, 0.0
      %v308 = vmax.f32 %v276, 0.0
      %v309 = vmax.f32 %v277, 0.0
      %v310 = vmax.f32 %v278, 0.0
      %v311 = vmax.f32 %v279, 0.0
      %v312 = vmax.f32 %v280, 0.0
      %v313 = vmax.f32 %v281, 0.0
      %v314 = vmax.f32 %v282, 0.0
      %v315 = vmax.f32 %v283, 0.0
      %v316 = vpack.c.bf16 %v285, %v284
      %v317 = vpack.c.bf16 %v287, %v286
      %v318 = vpack.c.bf16 %v289, %v288
      %v319 = vpack.c.bf16 %v291, %v290
      %v320 = vpack.c.bf16 %v293, %v292
      %v321 = vpack.c.bf16 %v295, %v294
      %v322 = vpack.c.bf16 %v297, %v296
      %v323 = vpack.c.bf16 %v299, %v298
      %v324 = vpack.c.bf16 %v301, %v300
      %v325 = vpack.c.bf16 %v303, %v302
      %v326 = vpack.c.bf16 %v305, %v304
      %v327 = vpack.c.bf16 %v307, %v306
      %v328 = vpack.c.bf16 %v309, %v308
      %v329 = vpack.c.bf16 %v311, %v310
      %v330 = vpack.c.bf16 %v313, %v312
      %v331 = vpack.c.bf16 %v315, %v314
      %v348 = vunpack.c.l.b16 %v316
      %v349 = vunpack.c.h.b16 %v316
      %v350 = vunpack.c.l.b16 %v317
      %v351 = vunpack.c.h.b16 %v317
      %v352 = vunpack.c.l.b16 %v318
      %v353 = vunpack.c.h.b16 %v318
      %v354 = vunpack.c.l.b16 %v319
      %v355 = vunpack.c.h.b16 %v319
      %v356 = vunpack.c.l.b16 %v320
      %v357 = vunpack.c.h.b16 %v320
      %v358 = vunpack.c.l.b16 %v321
      %v359 = vunpack.c.h.b16 %v321
      %v360 = vunpack.c.l.b16 %v322
      %v361 = vunpack.c.h.b16 %v322
      %v362 = vunpack.c.l.b16 %v323
      %v363 = vunpack.c.h.b16 %v323
      %v364 = vunpack.c.l.b16 %v324
      %v365 = vunpack.c.h.b16 %v324
      %v366 = vunpack.c.l.b16 %v325
      %v367 = vunpack.c.h.b16 %v325
      %v368 = vunpack.c.l.b16 %v326
      %v369 = vunpack.c.h.b16 %v326
      %v370 = vunpack.c.l.b16 %v327
      %v371 = vunpack.c.h.b16 %v327
      %v372 = vunpack.c.l.b16 %v328
      %v373 = vunpack.c.h.b16 %v328
      %v374 = vunpack.c.l.b16 %v329
      %v375 = vunpack.c.h.b16 %v329
      %v376 = vunpack.c.l.b16 %v330
      %v377 = vunpack.c.h.b16 %v330
      %v378 = vunpack.c.l.b16 %v331
      %v379 = vunpack.c.h.b16 %v331
      %v380 = vpack.c.b16 %v348, %v348
      %v381 = vpack.c.b16 %v349, %v349
      %v382 = vpack.c.b16 %v350, %v350
      %v383 = vpack.c.b16 %v351, %v351
      %v384 = vpack.c.b16 %v352, %v352
      %v385 = vpack.c.b16 %v353, %v353
      %v386 = vpack.c.b16 %v354, %v354
      %v387 = vpack.c.b16 %v355, %v355
      %v388 = vpack.c.b16 %v356, %v356
      %v389 = vpack.c.b16 %v357, %v357
      %v390 = vpack.c.b16 %v358, %v358
      %v391 = vpack.c.b16 %v359, %v359
      %v392 = vpack.c.b16 %v360, %v360
      %v393 = vpack.c.b16 %v361, %v361
      %v394 = vpack.c.b16 %v362, %v362
      %v395 = vpack.c.b16 %v363, %v363
      %v396 = vpack.c.b16 %v364, %v364
      %v397 = vpack.c.b16 %v365, %v365
      %v398 = vpack.c.b16 %v366, %v366
      %v399 = vpack.c.b16 %v367, %v367
      %v400 = vpack.c.b16 %v368, %v368
      %v401 = vpack.c.b16 %v369, %v369
      %v402 = vpack.c.b16 %v370, %v370
      %v403 = vpack.c.b16 %v371, %v371
      %v404 = vpack.c.b16 %v372, %v372
      %v405 = vpack.c.b16 %v373, %v373
      %v406 = vpack.c.b16 %v374, %v374
      %v407 = vpack.c.b16 %v375, %v375
      %v408 = vpack.c.b16 %v376, %v376
      %v409 = vpack.c.b16 %v377, %v377
      %v410 = vpack.c.b16 %v378, %v378
      %v411 = vpack.c.b16 %v379, %v379
      %444 = vst [vmem:[%s172] sm:$0xf] %v380
      %445 = vst [vmem:[%s172 + $0x4] sm:$0xf] %v381
      %446 = vst [vmem:[%s172 + $0x8] sm:$0xf] %v382
      %447 = vst [vmem:[%s172 + $0xc] sm:$0xf] %v383
      %448 = vst [vmem:[%s172 + $0x10] sm:$0xf] %v384
      %449 = vst [vmem:[%s172 + $0x14] sm:$0xf] %v385
      %450 = vst [vmem:[%s172 + $0x18] sm:$0xf] %v386
      %451 = vst [vmem:[%s172 + $0x1c] sm:$0xf] %v387
      %452 = vst [vmem:[%s172 + $0x20] sm:$0xf] %v388
      %453 = vst [vmem:[%s172 + $0x24] sm:$0xf] %v389
      %454 = vst [vmem:[%s172 + $0x28] sm:$0xf] %v390
      %455 = vst [vmem:[%s172 + $0x2c] sm:$0xf] %v391
      %456 = vst [vmem:[%s172 + $0x30] sm:$0xf] %v392
      %457 = vst [vmem:[%s172 + $0x34] sm:$0xf] %v393
      %458 = vst [vmem:[%s172 + $0x38] sm:$0xf] %v394
      %459 = vst [vmem:[%s172 + $0x3c] sm:$0xf] %v395
      %460 = vst [vmem:[%s172 + $0x40] sm:$0xf] %v396
      %461 = vst [vmem:[%s172 + $0x44] sm:$0xf] %v397
      %462 = vst [vmem:[%s172 + $0x48] sm:$0xf] %v398
      %463 = vst [vmem:[%s172 + $0x4c] sm:$0xf] %v399
      %464 = vst [vmem:[%s172 + $0x50] sm:$0xf] %v400
      %465 = vst [vmem:[%s172 + $0x54] sm:$0xf] %v401
      %466 = vst [vmem:[%s172 + $0x58] sm:$0xf] %v402
      %467 = vst [vmem:[%s172 + $0x5c] sm:$0xf] %v403
      %468 = vst [vmem:[%s172 + $0x60] sm:$0xf] %v404
      %469 = vst [vmem:[%s172 + $0x64] sm:$0xf] %v405
      %470 = vst [vmem:[%s172 + $0x68] sm:$0xf] %v406
      %471 = vst [vmem:[%s172 + $0x6c] sm:$0xf] %v407
      %472 = vst [vmem:[%s172 + $0x70] sm:$0xf] %v408
      %473 = vst [vmem:[%s172 + $0x74] sm:$0xf] %v409
      %474 = vst [vmem:[%s172 + $0x78] sm:$0xf] %v410
      %475 = vst [vmem:[%s172 + $0x7c] sm:$0xf] %v411
      %s476 = smul.u32 32, %s14
      %p477 = scmp.lt.s32.totalorder %s476, 63
      %s478 = scalar_select %p477, %s476, 63
      %s479 = smul.addr %s478, 4
      %s480 = scalar_lea.vmem %s3, %s479
      // Predicated region
      $region33: #{bottleneck_forward.7} parent=31 // pred_check
        %p481 = pneg %p100
      $region34: #{bottleneck_forward.7} parent=31 // pred_check_branch
        %483 = sbr.rel (%p481) target = $region36
      $region35: #{bottleneck_forward.7} parent=31 // pred_region
        %s484 = smul.u32 32, %s14
      $region36: #{bottleneck_forward.7} parent=31 // pred_fallthru
        _
    $region32: #{bottleneck_forward.7} parent=5 // pred_fallthru
      _
    %p485 = scmp.le.s32.totalorder 2, %s9
    // Predicated region
    $region37: #{bottleneck_forward.7} parent=5 // pred_check
      %p486 = pneg %p485
    $region38: #{bottleneck_forward.7} parent=5 // pred_check_branch
      %488 = sbr.rel (%p486) target = $region40
    $region39: #{bottleneck_forward.7} parent=5 // pred_region
      %s489 = ssub.s32 %s9, 2
      // Predicated region
      $region41: #{bottleneck_forward.7} parent=39 // pred_check
        %p490 = pneg %p106
      $region42: #{bottleneck_forward.7} parent=39 // pred_check_branch
        %492 = sbr.rel (%p490) target = $region44
      $region43: #{bottleneck_forward.7} parent=39 // pred_region
        %s493 = smul.u32 32, %s15
        %p494 = scmp.lt.s32.totalorder %s493, 63
        %s495 = scalar_select %p494, %s493, 63
        %s496 = smul.addr %s495, 4
        %s497 = scalar_lea.vmem %s3, %s496
      $region44: #{bottleneck_forward.7} parent=39 // pred_fallthru
        _
    $region40: #{bottleneck_forward.7} parent=5 // pred_fallthru
      _
  $region6: #{bottleneck_forward.7} parent=0 // loop_footer
    %s13 = sadd.s32 1, %s9
  $region7: #{bottleneck_forward.7} parent=0 // loop_footer_branch
    %8 = sbr.rel target = $region3
  $region8: #{bottleneck_forward.7} parent=0 // loop_exit
    _

// kernel: bottleneck_forward.6
$region0: #{bottleneck_forward.6}
  #allocation0 [shape = 'u32[]', space=smem, size = 0x4, offset = 0x4, fixed_abs, tag = 'smem constant byte address 0x4 - core index']
  #allocation1 [shape = 'u32[144,128]{1,0:T(1,128)}', space=vmem, size = 0x12000, scoped, tag = 'internal scratch']
  %s0 = inlined_call_operand.vmem [shape: bf16[512,128], index: 0, kind: input, shape index: {}]
  %s1 = inlined_call_operand.vmem [shape: bf16[128,128], index: 1, kind: input, shape index: {}]
  %s2 = inlined_call_operand.vmem [shape: f32[512,128], index: 2, kind: output, shape index: {0}]
  %s3 = inlined_call_operand.vmem [shape: f32[1,128], index: 3, kind: output, shape index: {1}]
  %s4 = inlined_call_operand.vmem [shape: f32[1,128], index: 4, kind: output, shape index: {2}]
  %5 = xla_tuple %s2, %s3, %s4
  %s6 = sld [smem:[#allocation0]]
  $region61: #{bottleneck_forward.6} parent=0
    _
  %s8 = ssub.s32 1, %s6
  %s9 = scalar_select 0, %s8, %s6
  loop: start=0, step=1, limit=4
  $region2: #{bottleneck_forward.6} parent=0 // loop_pre_header
    _
  $region3: #{bottleneck_forward.6} parent=0 // loop_header
    %s11 = sphi 0, %s15
    %p12 = scmp.ge.s32.totalorder %s11, 4
    %s21 = sphi 0, %s23
    %s24 = sphi 0, %s21
    %s25 = sphi 0, %s24
    %s41 = sphi 0, %s25
    %s45 = sphi 0, %s45
    %s47 = sphi 0, %s45
    %s48 = sphi 0, %s47
    %s62 = sphi 0, %s48
    %s68 = sphi 0, %s70
    %s71 = sphi 0, %s68
    %s72 = sphi 0, %s71
    %s88 = sphi 0, %s72
    %s92 = sphi 0, %s92
    %s94 = sphi 0, %s92
    %s95 = sphi 0, %s94
    %s109 = sphi 0, %s95
    %s113 = sphi 0, %s113
    %s115 = sphi 0, %s113
    %s116 = sphi 0, %s115
    %s130 = sphi 0, %s116
  $region4: #{bottleneck_forward.6} parent=0 // loop_header_branch
    %14 = sbr.rel (%p12) target = $region8
  $region5: #{bottleneck_forward.6} parent=0 // loop_body
    %s16 = ssub.s32 %s11, 1
    %s17 = ssub.s32 %s11, 2
    %s18 = sadd.s32 %s11, 1
    %s19 = ssub.s32 %s11, %s18
    %p20 = scmp.eq.s32.totalorder %s19, 0
    %s22 = sadd.s32 %s21, 1
    %s23 = scalar_select %p20, %s21, %s22
    %p26 = pneg %p20
    %p27 = scmp.eq.s32.totalorder %s11, 1
    %p28 = por %p26, %p27
    %p29 = scmp.ne.s32.totalorder %s21, %s24
    %p30 = scmp.eq.s32.totalorder %s11, 0
    %p31 = por %p29, %p30
    %p32 = scmp.ne.s32.totalorder %s21, %s24
    %p33 = scmp.eq.s32.totalorder %s16, 1
    %p34 = por %p32, %p33
    %p35 = scmp.ne.s32.totalorder %s24, %s25
    %p36 = scmp.eq.s32.totalorder %s16, 0
    %p37 = por %p35, %p36
    %p38 = scmp.ne.s32.totalorder %s24, %s25
    %p39 = scmp.eq.s32.totalorder %s17, 1
    %p40 = por %p38, %p39
    %p42 = scmp.ne.s32.totalorder %s25, %s41
    %p43 = scmp.eq.s32.totalorder %s17, 0
    %p44 = por %p42, %p43
    %s46 = sadd.s32 %s45, 1
    %p49 = scmp.eq.s32.totalorder %s11, 1
    %p50 = scmp.ne.s32.totalorder %s45, %s47
    %p51 = scmp.eq.s32.totalorder %s11, 0
    %p52 = por %p50, %p51
    %p53 = scmp.ne.s32.totalorder %s45, %s47
    %p54 = scmp.eq.s32.totalorder %s16, 1
    %p55 = por %p53, %p54
    %p56 = scmp.ne.s32.totalorder %s47, %s48
    %p57 = scmp.eq.s32.totalorder %s16, 0
    %p58 = por %p56, %p57
    %p59 = scmp.ne.s32.totalorder %s47, %s48
    %p60 = scmp.eq.s32.totalorder %s17, 1
    %p61 = por %p59, %p60
    %p63 = scmp.ne.s32.totalorder %s48, %s62
    %p64 = scmp.eq.s32.totalorder %s17, 0
    %p65 = por %p63, %p64
    %s66 = ssub.s32 %s11, %s18
    %p67 = scmp.eq.s32.totalorder %s66, 0
    %s69 = sadd.s32 %s68, 1
    %s70 = scalar_select %p67, %s68, %s69
    %p73 = pneg %p67
    %p74 = scmp.eq.s32.totalorder %s11, 1
    %p75 = por %p73, %p74
    %p76 = scmp.ne.s32.totalorder %s68, %s71
    %p77 = scmp.eq.s32.totalorder %s11, 0
    %p78 = por %p76, %p77
    %p79 = scmp.ne.s32.totalorder %s68, %s71
    %p80 = scmp.eq.s32.totalorder %s16, 1
    %p81 = por %p79, %p80
    %p82 = scmp.ne.s32.totalorder %s71, %s72
    %p83 = scmp.eq.s32.totalorder %s16, 0
    %p84 = por %p82, %p83
    %p85 = scmp.ne.s32.totalorder %s71, %s72
    %p86 = scmp.eq.s32.totalorder %s17, 1
    %p87 = por %p85, %p86
    %p89 = scmp.ne.s32.totalorder %s72, %s88
    %p90 = scmp.eq.s32.totalorder %s17, 0
    %p91 = por %p89, %p90
    %s93 = sadd.s32 %s92, 1
    %p96 = scmp.eq.s32.totalorder %s11, 1
    %p97 = scmp.ne.s32.totalorder %s92, %s94
    %p98 = scmp.eq.s32.totalorder %s11, 0
    %p99 = por %p97, %p98
    %p100 = scmp.ne.s32.totalorder %s92, %s94
    %p101 = scmp.eq.s32.totalorder %s16, 1
    %p102 = por %p100, %p101
    %p103 = scmp.ne.s32.totalorder %s94, %s95
    %p104 = scmp.eq.s32.totalorder %s16, 0
    %p105 = por %p103, %p104
    %p106 = scmp.ne.s32.totalorder %s94, %s95
    %p107 = scmp.eq.s32.totalorder %s17, 1
    %p108 = por %p106, %p107
    %p110 = scmp.ne.s32.totalorder %s95, %s109
    %p111 = scmp.eq.s32.totalorder %s17, 0
    %p112 = por %p110, %p111
    %s114 = sadd.s32 %s113, 1
    %p117 = scmp.eq.s32.totalorder %s11, 1
    %p118 = scmp.ne.s32.totalorder %s113, %s115
    %p119 = scmp.eq.s32.totalorder %s11, 0
    %p120 = por %p118, %p119
    %p121 = scmp.ne.s32.totalorder %s113, %s115
    %p122 = scmp.eq.s32.totalorder %s16, 1
    %p123 = por %p121, %p122
    %p124 = scmp.ne.s32.totalorder %s115, %s116
    %p125 = scmp.eq.s32.totalorder %s16, 0
    %p126 = por %p124, %p125
    %p127 = scmp.ne.s32.totalorder %s115, %s116
    %p128 = scmp.eq.s32.totalorder %s17, 1
    %p129 = por %p127, %p128
    %p131 = scmp.ne.s32.totalorder %s116, %s130
    %p132 = scmp.eq.s32.totalorder %s17, 0
    %p133 = por %p131, %p132
    %p134 = scmp.le.s32.totalorder 1, %s11
    %p135 = scmp.lt.s32.totalorder %s11, 3
    %p136 = pnand %p134, %p135
    %p137 = pneg %p136
    // Predicated region
    $region9: #{bottleneck_forward.6} parent=5 // pred_check
      _
    $region10: #{bottleneck_forward.6} parent=5 // pred_check_branch
      %139 = sbr.rel (%p136) target = $region12
    $region11: #{bottleneck_forward.6} parent=5 // pred_region
      %s140 = ssub.s32 %s11, 1
      // Predicated region
      $region13: #{bottleneck_forward.6} parent=11 // pred_check
        %p141 = pneg %p58
      $region14: #{bottleneck_forward.6} parent=11 // pred_check_branch
        %143 = sbr.rel (%p141) target = $region16
      $region15: #{bottleneck_forward.6} parent=11 // pred_region
        _
      $region16: #{bottleneck_forward.6} parent=11 // pred_fallthru
        _
    $region12: #{bottleneck_forward.6} parent=5 // pred_fallthru
      _
    %p144 = scmp.lt.s32.totalorder %s11, 2
    // Predicated region
    $region17: #{bottleneck_forward.6} parent=5 // pred_check
      %p145 = pneg %p144
    $region18: #{bottleneck_forward.6} parent=5 // pred_check_branch
      %147 = sbr.rel (%p145) target = $region20
    $region19: #{bottleneck_forward.6} parent=5 // pred_region
      // Predicated region
      $region21: #{bottleneck_forward.6} parent=19 // pred_check
        %p148 = pneg %p31
      $region22: #{bottleneck_forward.6} parent=19 // pred_check_branch
        %150 = sbr.rel (%p148) target = $region24
      $region23: #{bottleneck_forward.6} parent=19 // pred_region
        %s151 = smul.u32 32, %s11
        %p152 = scmp.lt.s32.totalorder %s151, 63
        %s153 = scalar_select %p152, %s151, 63
        %s154 = smul.addr %s153, 4
        %s155 = scalar_lea.vmem %s0, %s154
        %s156 = smul.u32 32, %s11
      $region24: #{bottleneck_forward.6} parent=19 // pred_fallthru
        _
    $region20: #{bottleneck_forward.6} parent=5 // pred_fallthru
      _
    %p157 = scmp.le.s32.totalorder 1, %s11
    %p158 = scmp.lt.s32.totalorder %s11, 3
    %p159 = pnand %p157, %p158
    %p160 = pneg %p159
    // Predicated region
    $region25: #{bottleneck_forward.6} parent=5 // pred_check
      _
    $region26: #{bottleneck_forward.6} parent=5 // pred_check_branch
      %162 = sbr.rel (%p159) target = $region28
    $region27: #{bottleneck_forward.6} parent=5 // pred_region
      %s163 = ssub.s32 %s11, 1
      %s164 = smul.u32 32, %s16
      %p165 = scmp.lt.s32.totalorder %s164, 63
      %s166 = scalar_select %p165, %s164, 63
      %s167 = smul.addr %s166, 4
      %s168 = scalar_lea.vmem %s0, %s167
      %p169 = pneg %p37
      %p170 = pneg %p34
      %p171 = pneg %p58
      %p172 = pneg %p55
      %p173 = pneg %p84
      %p174 = pneg %p81
      %s175 = smul.u32 32, %s16
      %p176 = scmp.lt.s32.totalorder %s175, 63
      %s177 = scalar_select %p176, %s175, 63
      %s178 = smul.addr %s177, 8
      %s179 = scalar_lea.vmem %s2, %s178
      %p180 = pneg %p105
      %p181 = pneg %p102
      %p182 = pneg %p126
      %p183 = pneg %p123
      %s184 = smul.u32 32, %s16
      %p185 = scmp.lt.s32.totalorder %s184, 63
      %s186 = scalar_select %p185, %s184, 63
      %s187 = smul.addr %s186, 4
      %s188 = scalar_lea.vmem %s0, %s187
      %s189 = smul.u32 32, %s16
      %s190 = smul.u32 32, %s16
      %p191 = scmp.lt.s32.totalorder %s190, 63
      %s192 = scalar_select %p191, %s190, 63
      %s193 = smul.addr %s192, 8
      %s194 = scalar_lea.vmem %s2, %s193
      %s195 = smul.u32 32, %s16
      %v197 = vld [vmem:[%s188] sm:$0xf]
      %v198 = vld [vmem:[%s188 + $0x4] sm:$0xf]
      %v199 = vld [vmem:[%s188 + $0x8] sm:$0xf]
      %v200 = vld [vmem:[%s188 + $0xc] sm:$0xf]
      %v201 = vld [vmem:[%s188 + $0x10] sm:$0xf]
      %v202 = vld [vmem:[%s188 + $0x14] sm:$0xf]
      %v203 = vld [vmem:[%s188 + $0x18] sm:$0xf]
      %v204 = vld [vmem:[%s188 + $0x1c] sm:$0xf]
      %v205 = vld [vmem:[%s188 + $0x20] sm:$0xf]
      %v206 = vld [vmem:[%s188 + $0x24] sm:$0xf]
      %v207 = vld [vmem:[%s188 + $0x28] sm:$0xf]
      %v208 = vld [vmem:[%s188 + $0x2c] sm:$0xf]
      %v209 = vld [vmem:[%s188 + $0x30] sm:$0xf]
      %v210 = vld [vmem:[%s188 + $0x34] sm:$0xf]
      %v211 = vld [vmem:[%s188 + $0x38] sm:$0xf]
      %v212 = vld [vmem:[%s188 + $0x3c] sm:$0xf]
      %v213 = vld [vmem:[%s188 + $0x40] sm:$0xf]
      %v214 = vld [vmem:[%s188 + $0x44] sm:$0xf]
      %v215 = vld [vmem:[%s188 + $0x48] sm:$0xf]
      %v216 = vld [vmem:[%s188 + $0x4c] sm:$0xf]
      %v217 = vld [vmem:[%s188 + $0x50] sm:$0xf]
      %v218 = vld [vmem:[%s188 + $0x54] sm:$0xf]
      %v219 = vld [vmem:[%s188 + $0x58] sm:$0xf]
      %v220 = vld [vmem:[%s188 + $0x5c] sm:$0xf]
      %v221 = vld [vmem:[%s188 + $0x60] sm:$0xf]
      %v222 = vld [vmem:[%s188 + $0x64] sm:$0xf]
      %v223 = vld [vmem:[%s188 + $0x68] sm:$0xf]
      %v224 = vld [vmem:[%s188 + $0x6c] sm:$0xf]
      %v225 = vld [vmem:[%s188 + $0x70] sm:$0xf]
      %v226 = vld [vmem:[%s188 + $0x74] sm:$0xf]
      %v227 = vld [vmem:[%s188 + $0x78] sm:$0xf]
      %v228 = vld [vmem:[%s188 + $0x7c] sm:$0xf]
      %v229 = vld [vmem:[%s1] sm:$0xf]
      %v230 = vld [vmem:[%s1 + $0x4] sm:$0xf]
      %v231 = vld [vmem:[%s1 + $0x8] sm:$0xf]
      %v232 = vld [vmem:[%s1 + $0xc] sm:$0xf]
      %v233 = vld [vmem:[%s1 + $0x10] sm:$0xf]
      %v234 = vld [vmem:[%s1 + $0x14] sm:$0xf]
      %v235 = vld [vmem:[%s1 + $0x18] sm:$0xf]
      %v236 = vld [vmem:[%s1 + $0x1c] sm:$0xf]
      %v237 = vld [vmem:[%s1 + $0x20] sm:$0xf]
      %v238 = vld [vmem:[%s1 + $0x24] sm:$0xf]
      %v239 = vld [vmem:[%s1 + $0x28] sm:$0xf]
      %v240 = vld [vmem:[%s1 + $0x2c] sm:$0xf]
      %v241 = vld [vmem:[%s1 + $0x30] sm:$0xf]
      %v242 = vld [vmem:[%s1 + $0x34] sm:$0xf]
      %v243 = vld [vmem:[%s1 + $0x38] sm:$0xf]
      %v244 = vld [vmem:[%s1 + $0x3c] sm:$0xf]
      %v277 = vunpack.c.l.b16 %v197
      %v278 = vunpack.c.l.b16 %v198
      %v279 = vunpack.c.l.b16 %v199
      %v280 = vunpack.c.l.b16 %v200
      %v281 = vunpack.c.l.b16 %v201
      %v282 = vunpack.c.l.b16 %v202
      %v283 = vunpack.c.l.b16 %v203
      %v284 = vunpack.c.l.b16 %v204
      %v285 = vunpack.c.l.b16 %v205
      %v286 = vunpack.c.l.b16 %v206
      %v287 = vunpack.c.l.b16 %v207
      %v288 = vunpack.c.l.b16 %v208
      %v289 = vunpack.c.l.b16 %v209
      %v290 = vunpack.c.l.b16 %v210
      %v291 = vunpack.c.l.b16 %v211
      %v292 = vunpack.c.l.b16 %v212
      %v293 = vunpack.c.l.b16 %v213
      %v294 = vunpack.c.l.b16 %v214
      %v295 = vunpack.c.l.b16 %v215
      %v296 = vunpack.c.l.b16 %v216
      %v297 = vunpack.c.l.b16 %v217
      %v298 = vunpack.c.l.b16 %v218
      %v299 = vunpack.c.l.b16 %v219
      %v300 = vunpack.c.l.b16 %v220
      %v301 = vunpack.c.l.b16 %v221
      %v302 = vunpack.c.l.b16 %v222
      %v303 = vunpack.c.l.b16 %v223
      %v304 = vunpack.c.l.b16 %v224
      %v305 = vunpack.c.l.b16 %v225
      %v306 = vunpack.c.l.b16 %v226
      %v307 = vunpack.c.l.b16 %v227
      %v308 = vunpack.c.l.b16 %v228
      %v309 = vpack.c.b16 %v278, %v277
      %v310 = vpack.c.b16 %v280, %v279
      %v311 = vpack.c.b16 %v282, %v281
      %v312 = vpack.c.b16 %v284, %v283
      %v313 = vpack.c.b16 %v286, %v285
      %v314 = vpack.c.b16 %v288, %v287
      %v315 = vpack.c.b16 %v290, %v289
      %v316 = vpack.c.b16 %v292, %v291
      %v317 = vpack.c.b16 %v294, %v293
      %v318 = vpack.c.b16 %v296, %v295
      %v319 = vpack.c.b16 %v298, %v297
      %v320 = vpack.c.b16 %v300, %v299
      %v321 = vpack.c.b16 %v302, %v301
      %v322 = vpack.c.b16 %v304, %v303
      %v323 = vpack.c.b16 %v306, %v305
      %v324 = vpack.c.b16 %v308, %v307
      %v357 = vunpack.c.l.b16 %v229
      %v358 = vunpack.c.l.b16 %v230
      %v359 = vunpack.c.l.b16 %v231
      %v360 = vunpack.c.l.b16 %v232
      %v361 = vunpack.c.l.b16 %v233
      %v362 = vunpack.c.l.b16 %v234
      %v363 = vunpack.c.l.b16 %v235
      %v364 = vunpack.c.l.b16 %v236
      %v365 = vunpack.c.l.b16 %v237
      %v366 = vunpack.c.l.b16 %v238
      %v367 = vunpack.c.l.b16 %v239
      %v368 = vunpack.c.l.b16 %v240
      %v369 = vunpack.c.l.b16 %v241
      %v370 = vunpack.c.l.b16 %v242
      %v371 = vunpack.c.l.b16 %v243
      %v372 = vunpack.c.l.b16 %v244
      %v373 = vpack.c.b16 %v358, %v357
      %v374 = vpack.c.b16 %v360, %v359
      %v375 = vpack.c.b16 %v362, %v361
      %v376 = vpack.c.b16 %v364, %v363
      %v377 = vpack.c.b16 %v366, %v365
      %v378 = vpack.c.b16 %v368, %v367
      %v379 = vpack.c.b16 %v370, %v369
      %v380 = vpack.c.b16 %v372, %v371
      %389 = vmatprep.subr.bf16.mxu0 0
      %390 = vmatpush1.bf16.msra.mxu0 %v380
      %391 = vmatprep.subr.bf16.mxu0 0
      %392 = vmatpush1.bf16.msra.mxu0 %v379
      %393 = vmatprep.subr.bf16.mxu0 0
      %394 = vmatpush1.bf16.msra.mxu0 %v378
      %395 = vmatprep.subr.bf16.mxu0 0
      %396 = vmatpush1.bf16.msra.mxu0 %v377
      %397 = vmatprep.subr.bf16.mxu0 0
      %398 = vmatpush1.bf16.msra.mxu0 %v376
      %399 = vmatprep.subr.bf16.mxu0 0
      %400 = vmatpush1.bf16.msra.mxu0 %v375
      %401 = vmatprep.subr.bf16.mxu0 0
      %402 = vmatpush1.bf16.msra.mxu0 %v374
      %403 = vmatprep.subr.bf16.mxu0 0
      %404 = vmatpush1.bf16.msra.mxu0 %v373
      %405 = vmatprep.subr.bf16.mxu0 0
      %406 = vmatpush2.bf16.msra.mxu0 0
      %407 = vmatprep.subr.bf16.mxu0 0
      %408 = vmatpush2.bf16.msra.mxu0 0
      %409 = vmatprep.subr.bf16.mxu0 0
      %410 = vmatpush2.bf16.msra.mxu0 0
      %411 = vmatprep.subr.bf16.mxu0 0
      %412 = vmatpush2.bf16.msra.mxu0 0
      %413 = vmatprep.subr.bf16.mxu0 0
      %414 = vmatpush2.bf16.msra.mxu0 0
      %415 = vmatprep.subr.bf16.mxu0 0
      %416 = vmatpush2.bf16.msra.mxu0 0
      %417 = vmatprep.subr.bf16.mxu0 0
      %418 = vmatpush2.bf16.msra.mxu0 0
      %419 = vmatprep.subr.bf16.mxu0 0
      %420 = vmatpush2.bf16.msra.mxu0 0
      %421 = vmatprep.mubr.bf16.mxu0 0
      %422 = vmatmul.mubr.bf16.gmra.mxu0 %v309
      %v423 = vpop.f32.mrf.mxu0
      %v424 = vadd.f32 0.0, %v423
      %v425 = vpop.f32.mrf.mxu0
      %v426 = vpop.f32.mrf.mxu0
      %v427 = vadd.f32 0.0, %v426
      %v428 = vpop.f32.mrf.mxu0
      %429 = vmatprep.mubr.bf16.mxu0 0
      %430 = vmatmul.mubr.bf16.gmra.mxu0 %v310
      %v431 = vpop.f32.mrf.mxu0
      %v432 = vadd.f32 0.0, %v431
      %v433 = vpop.f32.mrf.mxu0
      %v434 = vpop.f32.mrf.mxu0
      %v435 = vadd.f32 0.0, %v434
      %v436 = vpop.f32.mrf.mxu0
      %437 = vmatprep.mubr.bf16.mxu0 0
      %438 = vmatmul.mubr.bf16.gmra.mxu0 %v311
      %v439 = vpop.f32.mrf.mxu0
      %v440 = vadd.f32 0.0, %v439
      %v441 = vpop.f32.mrf.mxu0
      %v442 = vpop.f32.mrf.mxu0
      %v443 = vadd.f32 0.0, %v442
      %v444 = vpop.f32.mrf.mxu0
      %445 = vmatprep.mubr.bf16.mxu0 0
      %446 = vmatmul.mubr.bf16.gmra.mxu0 %v312
      %v447 = vpop.f32.mrf.mxu0
      %v448 = vadd.f32 0.0, %v447
      %v449 = vpop.f32.mrf.mxu0
      %v450 = vpop.f32.mrf.mxu0
      %v451 = vadd.f32 0.0, %v450
      %v452 = vpop.f32.mrf.mxu0
      %453 = vmatprep.mubr.bf16.mxu0 0
      %454 = vmatmul.mubr.bf16.gmra.mxu0 %v313
      %v455 = vpop.f32.mrf.mxu0
      %v456 = vadd.f32 0.0, %v455
      %v457 = vpop.f32.mrf.mxu0
      %v458 = vpop.f32.mrf.mxu0
      %v459 = vadd.f32 0.0, %v458
      %v460 = vpop.f32.mrf.mxu0
      %461 = vmatprep.mubr.bf16.mxu0 0
      %462 = vmatmul.mubr.bf16.gmra.mxu0 %v314
      %v463 = vpop.f32.mrf.mxu0
      %v464 = vadd.f32 0.0, %v463
      %v465 = vpop.f32.mrf.mxu0
      %v466 = vpop.f32.mrf.mxu0
      %v467 = vadd.f32 0.0, %v466
      %v468 = vpop.f32.mrf.mxu0
      %469 = vmatprep.mubr.bf16.mxu0 0
      %470 = vmatmul.mubr.bf16.gmra.mxu0 %v315
      %v471 = vpop.f32.mrf.mxu0
      %v472 = vadd.f32 0.0, %v471
      %v473 = vpop.f32.mrf.mxu0
      %v474 = vpop.f32.mrf.mxu0
      %v475 = vadd.f32 0.0, %v474
      %v476 = vpop.f32.mrf.mxu0
      %477 = vmatprep.mubr.bf16.mxu0 0
      %478 = vmatmul.mubr.bf16.gmra.mxu0 %v316
      %v479 = vpop.f32.mrf.mxu0
      %v480 = vadd.f32 0.0, %v479
      %v481 = vpop.f32.mrf.mxu0
      %v482 = vpop.f32.mrf.mxu0
      %v483 = vadd.f32 0.0, %v482
      %v484 = vpop.f32.mrf.mxu0
      %485 = vmatprep.mubr.bf16.mxu0 0
      %486 = vmatmul.mubr.bf16.gmra.mxu0 %v317
      %v487 = vpop.f32.mrf.mxu0
      %v488 = vadd.f32 0.0, %v487
      %v489 = vpop.f32.mrf.mxu0
      %v490 = vpop.f32.mrf.mxu0
      %v491 = vadd.f32 0.0, %v490
      %v492 = vpop.f32.mrf.mxu0
      %493 = vmatprep.mubr.bf16.mxu0 0
      %494 = vmatmul.mubr.bf16.gmra.mxu0 %v318
      %v495 = vpop.f32.mrf.mxu0
      %v496 = vadd.f32 0.0, %v495
      %v497 = vpop.f32.mrf.mxu0
      %v498 = vpop.f32.mrf.mxu0
      %v499 = vadd.f32 0.0, %v498
      %v500 = vpop.f32.mrf.mxu0
      %501 = vmatprep.mubr.bf16.mxu0 0
      %502 = vmatmul.mubr.bf16.gmra.mxu0 %v319
      %v503 = vpop.f32.mrf.mxu0
      %v504 = vadd.f32 0.0, %v503
      %v505 = vpop.f32.mrf.mxu0
      %v506 = vpop.f32.mrf.mxu0
      %v507 = vadd.f32 0.0, %v506
      %v508 = vpop.f32.mrf.mxu0
      %509 = vmatprep.mubr.bf16.mxu0 0
      %510 = vmatmul.mubr.bf16.gmra.mxu0 %v320
      %v511 = vpop.f32.mrf.mxu0
      %v512 = vadd.f32 0.0, %v511
      %v513 = vpop.f32.mrf.mxu0
      %v514 = vpop.f32.mrf.mxu0
      %v515 = vadd.f32 0.0, %v514
      %v516 = vpop.f32.mrf.mxu0
      %517 = vmatprep.mubr.bf16.mxu0 0
      %518 = vmatmul.mubr.bf16.gmra.mxu0 %v321
      %v519 = vpop.f32.mrf.mxu0
      %v520 = vadd.f32 0.0, %v519
      %v521 = vpop.f32.mrf.mxu0
      %v522 = vpop.f32.mrf.mxu0
      %v523 = vadd.f32 0.0, %v522
      %v524 = vpop.f32.mrf.mxu0
      %525 = vmatprep.mubr.bf16.mxu0 0
      %526 = vmatmul.mubr.bf16.gmra.mxu0 %v322
      %v527 = vpop.f32.mrf.mxu0
      %v528 = vadd.f32 0.0, %v527
      %v529 = vpop.f32.mrf.mxu0
      %v530 = vpop.f32.mrf.mxu0
      %v531 = vadd.f32 0.0, %v530
      %v532 = vpop.f32.mrf.mxu0
      %533 = vmatprep.mubr.bf16.mxu0 0
      %534 = vmatmul.mubr.bf16.gmra.mxu0 %v323
      %v535 = vpop.f32.mrf.mxu0
      %v536 = vadd.f32 0.0, %v535
      %v537 = vpop.f32.mrf.mxu0
      %v538 = vpop.f32.mrf.mxu0
      %v539 = vadd.f32 0.0, %v538
      %v540 = vpop.f32.mrf.mxu0
      %541 = vmatprep.mubr.bf16.mxu0 0
      %542 = vmatmul.mubr.bf16.gmra.mxu0 %v324
      %v543 = vpop.f32.mrf.mxu0
      %v544 = vadd.f32 0.0, %v543
      %v545 = vpop.f32.mrf.mxu0
      %v546 = vpop.f32.mrf.mxu0
      %v547 = vadd.f32 0.0, %v546
      %v548 = vpop.f32.mrf.mxu0
      %549 = vdwg.mxu0
      %550 = vst [vmem:[%s194] sm:$0xff] %v424
      %551 = vst [vmem:[%s194 + $0x8] sm:$0xff] %v427
      %552 = vst [vmem:[%s194 + $0x10] sm:$0xff] %v432
      %553 = vst [vmem:[%s194 + $0x18] sm:$0xff] %v435
      %554 = vst [vmem:[%s194 + $0x20] sm:$0xff] %v440
      %555 = vst [vmem:[%s194 + $0x28] sm:$0xff] %v443
      %556 = vst [vmem:[%s194 + $0x30] sm:$0xff] %v448
      %557 = vst [vmem:[%s194 + $0x38] sm:$0xff] %v451
      %558 = vst [vmem:[%s194 + $0x40] sm:$0xff] %v456
      %559 = vst [vmem:[%s194 + $0x48] sm:$0xff] %v459
      %560 = vst [vmem:[%s194 + $0x50] sm:$0xff] %v464
      %561 = vst [vmem:[%s194 + $0x58] sm:$0xff] %v467
      %562 = vst [vmem:[%s194 + $0x60] sm:$0xff] %v472
      %563 = vst [vmem:[%s194 + $0x68] sm:$0xff] %v475
      %564 = vst [vmem:[%s194 + $0x70] sm:$0xff] %v480
      %565 = vst [vmem:[%s194 + $0x78] sm:$0xff] %v483
      %566 = vst [vmem:[%s194 + $0x80] sm:$0xff] %v488
      %567 = vst [vmem:[%s194 + $0x88] sm:$0xff] %v491
      %568 = vst [vmem:[%s194 + $0x90] sm:$0xff] %v496
      %569 = vst [vmem:[%s194 + $0x98] sm:$0xff] %v499
      %570 = vst [vmem:[%s194 + $0xa0] sm:$0xff] %v504
      %571 = vst [vmem:[%s194 + $0xa8] sm:$0xff] %v507
      %572 = vst [vmem:[%s194 + $0xb0] sm:$0xff] %v512
      %573 = vst [vmem:[%s194 + $0xb8] sm:$0xff] %v515
      %574 = vst [vmem:[%s194 + $0xc0] sm:$0xff] %v520
      %575 = vst [vmem:[%s194 + $0xc8] sm:$0xff] %v523
      %576 = vst [vmem:[%s194 + $0xd0] sm:$0xff] %v528
      %577 = vst [vmem:[%s194 + $0xd8] sm:$0xff] %v531
      %578 = vst [vmem:[%s194 + $0xe0] sm:$0xff] %v536
      %579 = vst [vmem:[%s194 + $0xe8] sm:$0xff] %v539
      %580 = vst [vmem:[%s194 + $0xf0] sm:$0xff] %v544
      %581 = vst [vmem:[%s194 + $0xf8] sm:$0xff] %v547
      %p582 = scmp.eq.s32.totalorder %s16, 0
      // Predicated region
      $region29: #{bottleneck_forward.6} parent=27 // pred_check
        %p583 = pneg %p582
      $region30: #{bottleneck_forward.6} parent=27 // pred_check_branch
        %585 = sbr.rel (%p583) target = $region32
      $region31: #{bottleneck_forward.6} parent=27 // pred_region
        %586 = vst [vmem:[%s3] sm:$0x1] 0.0
        %587 = vst [vmem:[%s4] sm:$0x1] 0.0
      $region32: #{bottleneck_forward.6} parent=27 // pred_fallthru
        _
      %v588 = vld [vmem:[%s3] sm:$0x1]
      %v589 = vadd.f32 %v424, %v427
      %v590 = vadd.f32 %v589, %v432
      %v591 = vadd.f32 %v590, %v435
      %v592 = vadd.f32 %v591, %v440
      %v593 = vadd.f32 %v592, %v443
      %v594 = vadd.f32 %v593, %v448
      %v595 = vadd.f32 %v594, %v451
      %v596 = vadd.f32 %v595, %v456
      %v597 = vadd.f32 %v596, %v459
      %v598 = vadd.f32 %v597, %v464
      %v599 = vadd.f32 %v598, %v467
      %v600 = vadd.f32 %v599, %v472
      %v601 = vadd.f32 %v600, %v475
      %v602 = vadd.f32 %v601, %v480
      %v603 = vadd.f32 %v602, %v483
      %v604 = vadd.f32 %v603, %v488
      %v605 = vadd.f32 %v604, %v491
      %v606 = vadd.f32 %v605, %v496
      %v607 = vadd.f32 %v606, %v499
      %v608 = vadd.f32 %v607, %v504
      %v609 = vadd.f32 %v608, %v507
      %v610 = vadd.f32 %v609, %v512
      %v611 = vadd.f32 %v610, %v515
      %v612 = vadd.f32 %v611, %v520
      %v613 = vadd.f32 %v612, %v523
      %v614 = vadd.f32 %v613, %v528
      %v615 = vadd.f32 %v614, %v531
      %v616 = vadd.f32 %v615, %v536
      %v617 = vadd.f32 %v616, %v539
      %v618 = vadd.f32 %v617, %v544
      %v619 = vadd.f32 %v618, %v547
      %v620 = vrot.slane %v619, 4
      %v621 = vadd.f32 %v619, %v620
      %v622 = vrot.slane %v621, 2
      %v623 = vadd.f32 %v621, %v622
      %v624 = vrot.slane %v623, 1
      %v625 = vadd.f32 %v623, %v624
      %v626 = vadd.f32 %v588, %v625
      %627 = vst [vmem:[%s3] sm:$0x1] %v626
      %v628 = vld [vmem:[%s4] sm:$0x1]
      %v629 = vmul.f32 %v424, %v424
      %v630 = vmul.f32 %v427, %v427
      %v631 = vmul.f32 %v432, %v432
      %v632 = vmul.f32 %v435, %v435
      %v633 = vmul.f32 %v440, %v440
      %v634 = vmul.f32 %v443, %v443
      %v635 = vmul.f32 %v448, %v448
      %v636 = vmul.f32 %v451, %v451
      %v637 = vmul.f32 %v456, %v456
      %v638 = vmul.f32 %v459, %v459
      %v639 = vmul.f32 %v464, %v464
      %v640 = vmul.f32 %v467, %v467
      %v641 = vmul.f32 %v472, %v472
      %v642 = vmul.f32 %v475, %v475
      %v643 = vmul.f32 %v480, %v480
      %v644 = vmul.f32 %v483, %v483
      %v645 = vmul.f32 %v488, %v488
      %v646 = vmul.f32 %v491, %v491
      %v647 = vmul.f32 %v496, %v496
      %v648 = vmul.f32 %v499, %v499
      %v649 = vmul.f32 %v504, %v504
      %v650 = vmul.f32 %v507, %v507
      %v651 = vmul.f32 %v512, %v512
      %v652 = vmul.f32 %v515, %v515
      %v653 = vmul.f32 %v520, %v520
      %v654 = vmul.f32 %v523, %v523
      %v655 = vmul.f32 %v528, %v528
      %v656 = vmul.f32 %v531, %v531
      %v657 = vmul.f32 %v536, %v536
      %v658 = vmul.f32 %v539, %v539
      %v659 = vmul.f32 %v544, %v544
      %v660 = vmul.f32 %v547, %v547
      %v661 = vadd.f32 %v629, %v630
      %v662 = vadd.f32 %v661, %v631
      %v663 = vadd.f32 %v662, %v632
      %v664 = vadd.f32 %v663, %v633
      %v665 = vadd.f32 %v664, %v634
      %v666 = vadd.f32 %v665, %v635
      %v667 = vadd.f32 %v666, %v636
      %v668 = vadd.f32 %v667, %v637
      %v669 = vadd.f32 %v668, %v638
      %v670 = vadd.f32 %v669, %v639
      %v671 = vadd.f32 %v670, %v640
      %v672 = vadd.f32 %v671, %v641
      %v673 = vadd.f32 %v672, %v642
      %v674 = vadd.f32 %v673, %v643
      %v675 = vadd.f32 %v674, %v644
      %v676 = vadd.f32 %v675, %v645
      %v677 = vadd.f32 %v676, %v646
      %v678 = vadd.f32 %v677, %v647
      %v679 = vadd.f32 %v678, %v648
      %v680 = vadd.f32 %v679, %v649
      %v681 = vadd.f32 %v680, %v650
      %v682 = vadd.f32 %v681, %v651
      %v683 = vadd.f32 %v682, %v652
      %v684 = vadd.f32 %v683, %v653
      %v685 = vadd.f32 %v684, %v654
      %v686 = vadd.f32 %v685, %v655
      %v687 = vadd.f32 %v686, %v656
      %v688 = vadd.f32 %v687, %v657
      %v689 = vadd.f32 %v688, %v658
      %v690 = vadd.f32 %v689, %v659
      %v691 = vadd.f32 %v690, %v660
      %v692 = vrot.slane %v691, 4
      %v693 = vadd.f32 %v691, %v692
      %v694 = vrot.slane %v693, 2
      %v695 = vadd.f32 %v693, %v694
      %v696 = vrot.slane %v695, 1
      %v697 = vadd.f32 %v695, %v696
      %v698 = vadd.f32 %v628, %v697
      %699 = vst [vmem:[%s4] sm:$0x1] %v698
      %s700 = smul.u32 32, %s16
      %p701 = scmp.lt.s32.totalorder %s700, 63
      %s702 = scalar_select %p701, %s700, 63
      %s703 = smul.addr %s702, 8
      %s704 = scalar_lea.vmem %s2, %s703
      // Predicated region
      $region33: #{bottleneck_forward.6} parent=27 // pred_check
        %p705 = pneg %p81
      $region34: #{bottleneck_forward.6} parent=27 // pred_check_branch
        %707 = sbr.rel (%p705) target = $region36
      $region35: #{bottleneck_forward.6} parent=27 // pred_region
        %s708 = smul.u32 32, %s16
      $region36: #{bottleneck_forward.6} parent=27 // pred_fallthru
        _
      // Predicated region
      $region37: #{bottleneck_forward.6} parent=27 // pred_check
        %p709 = pneg %p102
      $region38: #{bottleneck_forward.6} parent=27 // pred_check_branch
        %711 = sbr.rel (%p709) target = $region40
      $region39: #{bottleneck_forward.6} parent=27 // pred_region
        _
      $region40: #{bottleneck_forward.6} parent=27 // pred_fallthru
        _
      // Predicated region
      $region41: #{bottleneck_forward.6} parent=27 // pred_check
        %p712 = pneg %p123
      $region42: #{bottleneck_forward.6} parent=27 // pred_check_branch
        %714 = sbr.rel (%p712) target = $region44
      $region43: #{bottleneck_forward.6} parent=27 // pred_region
        _
      $region44: #{bottleneck_forward.6} parent=27 // pred_fallthru
        _
      // Predicated region
      $region45: #{bottleneck_forward.6} parent=27 // pred_check
        %p715 = pneg %p102
      $region46: #{bottleneck_forward.6} parent=27 // pred_check_branch
        %717 = sbr.rel (%p715) target = $region48
      $region47: #{bottleneck_forward.6} parent=27 // pred_region
        _
      $region48: #{bottleneck_forward.6} parent=27 // pred_fallthru
        _
      // Predicated region
      $region49: #{bottleneck_forward.6} parent=27 // pred_check
        %p718 = pneg %p123
      $region50: #{bottleneck_forward.6} parent=27 // pred_check_branch
        %720 = sbr.rel (%p718) target = $region52
      $region51: #{bottleneck_forward.6} parent=27 // pred_region
        _
      $region52: #{bottleneck_forward.6} parent=27 // pred_fallthru
        _
    $region28: #{bottleneck_forward.6} parent=5 // pred_fallthru
      _
    %p721 = scmp.le.s32.totalorder 2, %s11
    // Predicated region
    $region53: #{bottleneck_forward.6} parent=5 // pred_check
      %p722 = pneg %p721
    $region54: #{bottleneck_forward.6} parent=5 // pred_check_branch
      %724 = sbr.rel (%p722) target = $region56
    $region55: #{bottleneck_forward.6} parent=5 // pred_region
      %s725 = ssub.s32 %s11, 2
      // Predicated region
      $region57: #{bottleneck_forward.6} parent=55 // pred_check
        %p726 = pneg %p87
      $region58: #{bottleneck_forward.6} parent=55 // pred_check_branch
        %728 = sbr.rel (%p726) target = $region60
      $region59: #{bottleneck_forward.6} parent=55 // pred_region
        %s729 = smul.u32 32, %s17
        %p730 = scmp.lt.s32.totalorder %s729, 63
        %s731 = scalar_select %p730, %s729, 63
        %s732 = smul.addr %s731, 8
        %s733 = scalar_lea.vmem %s2, %s732
      $region60: #{bottleneck_forward.6} parent=55 // pred_fallthru
        _
    $region56: #{bottleneck_forward.6} parent=5 // pred_fallthru
      _
  $region6: #{bottleneck_forward.6} parent=0 // loop_footer
    %s15 = sadd.s32 1, %s11
  $region7: #{bottleneck_forward.6} parent=0 // loop_footer_branch
    %10 = sbr.rel target = $region3
  $region8: #{bottleneck_forward.6} parent=0 // loop_exit
    _

// kernel: bottleneck_forward.10
$region0: #{bottleneck_forward.10}
  #allocation0 [shape = 'u32[]', space=smem, size = 0x4, offset = 0x4, fixed_abs, tag = 'smem constant byte address 0x4 - core index']
  #allocation1 [shape = 'u32[144,128]{1,0:T(1,128)}', space=vmem, size = 0x12000, scoped, tag = 'internal scratch']
  %s0 = inlined_call_operand.vmem [shape: f32[128,128], index: 0, kind: input, shape index: {}]
  %s1 = inlined_call_operand.vmem [shape: f32[1,128], index: 1, kind: input, shape index: {}]
  %s2 = inlined_call_operand.vmem [shape: f32[1,128], index: 2, kind: input, shape index: {}]
  %s3 = inlined_call_operand.vmem [shape: bf16[128,128], index: 3, kind: input, shape index: {}]
  %s4 = inlined_call_operand.vmem [shape: f32[128,128], index: 4, kind: output, shape index: {0}]
  %s5 = inlined_call_operand.vmem [shape: f32[1,128], index: 5, kind: output, shape index: {1}]
  %s6 = inlined_call_operand.vmem [shape: f32[1,128], index: 6, kind: output, shape index: {2}]
  %7 = xla_tuple %s4, %s5, %s6
  %s8 = sld [smem:[#allocation0]]
  $region46: #{bottleneck_forward.10} parent=0
    _
  %s10 = ssub.s32 1, %s8
  %s11 = scalar_select 0, %s10, %s8
  // Predicated region
  $region2: #{bottleneck_forward.10} parent=0 // pred_check
    _
  $region3: #{bottleneck_forward.10} parent=0 // pred_check_branch
    %13 = sbr.rel (0) target = $region5
  $region4: #{bottleneck_forward.10} parent=0 // pred_region
    _
  $region5: #{bottleneck_forward.10} parent=0 // pred_fallthru
    _
  // Predicated region
  $region6: #{bottleneck_forward.10} parent=0 // pred_check
    _
  $region7: #{bottleneck_forward.10} parent=0 // pred_check_branch
    %15 = sbr.rel (0) target = $region9
  $region8: #{bottleneck_forward.10} parent=0 // pred_region
    _
  $region9: #{bottleneck_forward.10} parent=0 // pred_fallthru
    _
  // Predicated region
  $region10: #{bottleneck_forward.10} parent=0 // pred_check
    _
  $region11: #{bottleneck_forward.10} parent=0 // pred_check_branch
    %17 = sbr.rel (0) target = $region13
  $region12: #{bottleneck_forward.10} parent=0 // pred_region
    _
  $region13: #{bottleneck_forward.10} parent=0 // pred_fallthru
    _
  // Predicated region
  $region14: #{bottleneck_forward.10} parent=0 // pred_check
    _
  $region15: #{bottleneck_forward.10} parent=0 // pred_check_branch
    %19 = sbr.rel (0) target = $region17
  $region16: #{bottleneck_forward.10} parent=0 // pred_region
    _
  $region17: #{bottleneck_forward.10} parent=0 // pred_fallthru
    _
  %v21 = vld [vmem:[%s0] sm:$0xff]
  %v22 = vld [vmem:[%s0 + $0x8] sm:$0xff]
  %v23 = vld [vmem:[%s0 + $0x10] sm:$0xff]
  %v24 = vld [vmem:[%s0 + $0x18] sm:$0xff]
  %v25 = vld [vmem:[%s0 + $0x20] sm:$0xff]
  %v26 = vld [vmem:[%s0 + $0x28] sm:$0xff]
  %v27 = vld [vmem:[%s0 + $0x30] sm:$0xff]
  %v28 = vld [vmem:[%s0 + $0x38] sm:$0xff]
  %v29 = vld [vmem:[%s0 + $0x40] sm:$0xff]
  %v30 = vld [vmem:[%s0 + $0x48] sm:$0xff]
  %v31 = vld [vmem:[%s0 + $0x50] sm:$0xff]
  %v32 = vld [vmem:[%s0 + $0x58] sm:$0xff]
  %v33 = vld [vmem:[%s0 + $0x60] sm:$0xff]
  %v34 = vld [vmem:[%s0 + $0x68] sm:$0xff]
  %v35 = vld [vmem:[%s0 + $0x70] sm:$0xff]
  %v36 = vld [vmem:[%s0 + $0x78] sm:$0xff]
  %v37 = vld [vmem:[%s1] sm:$0x1]
  %v39 = vlaneseq
  %v40 = vshrl.u32 %v39, 7
  %v41 = vsub.s32 0, %v40
  %v42 = vrot.slane %v37, %v41
  %v44 = vmul.f32 %v21, %v42
  %v45 = vmul.f32 %v22, %v42
  %v46 = vmul.f32 %v23, %v42
  %v47 = vmul.f32 %v24, %v42
  %v48 = vmul.f32 %v25, %v42
  %v49 = vmul.f32 %v26, %v42
  %v50 = vmul.f32 %v27, %v42
  %v51 = vmul.f32 %v28, %v42
  %v52 = vmul.f32 %v29, %v42
  %v53 = vmul.f32 %v30, %v42
  %v54 = vmul.f32 %v31, %v42
  %v55 = vmul.f32 %v32, %v42
  %v56 = vmul.f32 %v33, %v42
  %v57 = vmul.f32 %v34, %v42
  %v58 = vmul.f32 %v35, %v42
  %v59 = vmul.f32 %v36, %v42
  %v60 = vld [vmem:[%s2] sm:$0x1]
  %v62 = vlaneseq
  %v63 = vshrl.u32 %v62, 7
  %v64 = vsub.s32 0, %v63
  %v65 = vrot.slane %v60, %v64
  %v67 = vadd.f32 %v44, %v65
  %v68 = vadd.f32 %v45, %v65
  %v69 = vadd.f32 %v46, %v65
  %v70 = vadd.f32 %v47, %v65
  %v71 = vadd.f32 %v48, %v65
  %v72 = vadd.f32 %v49, %v65
  %v73 = vadd.f32 %v50, %v65
  %v74 = vadd.f32 %v51, %v65
  %v75 = vadd.f32 %v52, %v65
  %v76 = vadd.f32 %v53, %v65
  %v77 = vadd.f32 %v54, %v65
  %v78 = vadd.f32 %v55, %v65
  %v79 = vadd.f32 %v56, %v65
  %v80 = vadd.f32 %v57, %v65
  %v81 = vadd.f32 %v58, %v65
  %v82 = vadd.f32 %v59, %v65
  %v83 = vmax.f32 %v67, 0.0
  %v84 = vmax.f32 %v68, 0.0
  %v85 = vmax.f32 %v69, 0.0
  %v86 = vmax.f32 %v70, 0.0
  %v87 = vmax.f32 %v71, 0.0
  %v88 = vmax.f32 %v72, 0.0
  %v89 = vmax.f32 %v73, 0.0
  %v90 = vmax.f32 %v74, 0.0
  %v91 = vmax.f32 %v75, 0.0
  %v92 = vmax.f32 %v76, 0.0
  %v93 = vmax.f32 %v77, 0.0
  %v94 = vmax.f32 %v78, 0.0
  %v95 = vmax.f32 %v79, 0.0
  %v96 = vmax.f32 %v80, 0.0
  %v97 = vmax.f32 %v81, 0.0
  %v98 = vmax.f32 %v82, 0.0
  %v99 = vpack.c.bf16 %v84, %v83
  %v100 = vpack.c.bf16 %v86, %v85
  %v101 = vpack.c.bf16 %v88, %v87
  %v102 = vpack.c.bf16 %v90, %v89
  %v103 = vpack.c.bf16 %v92, %v91
  %v104 = vpack.c.bf16 %v94, %v93
  %v105 = vpack.c.bf16 %v96, %v95
  %v106 = vpack.c.bf16 %v98, %v97
  %v107 = vld [vmem:[%s3] sm:$0xf]
  %v108 = vld [vmem:[%s3 + $0x4] sm:$0xf]
  %v109 = vld [vmem:[%s3 + $0x8] sm:$0xf]
  %v110 = vld [vmem:[%s3 + $0xc] sm:$0xf]
  %v111 = vld [vmem:[%s3 + $0x10] sm:$0xf]
  %v112 = vld [vmem:[%s3 + $0x14] sm:$0xf]
  %v113 = vld [vmem:[%s3 + $0x18] sm:$0xf]
  %v114 = vld [vmem:[%s3 + $0x1c] sm:$0xf]
  %v115 = vld [vmem:[%s3 + $0x20] sm:$0xf]
  %v116 = vld [vmem:[%s3 + $0x24] sm:$0xf]
  %v117 = vld [vmem:[%s3 + $0x28] sm:$0xf]
  %v118 = vld [vmem:[%s3 + $0x2c] sm:$0xf]
  %v119 = vld [vmem:[%s3 + $0x30] sm:$0xf]
  %v120 = vld [vmem:[%s3 + $0x34] sm:$0xf]
  %v121 = vld [vmem:[%s3 + $0x38] sm:$0xf]
  %v122 = vld [vmem:[%s3 + $0x3c] sm:$0xf]
  %v139 = vunpack.c.l.b16 %v107
  %v140 = vunpack.c.l.b16 %v108
  %v141 = vunpack.c.l.b16 %v109
  %v142 = vunpack.c.l.b16 %v110
  %v143 = vunpack.c.l.b16 %v111
  %v144 = vunpack.c.l.b16 %v112
  %v145 = vunpack.c.l.b16 %v113
  %v146 = vunpack.c.l.b16 %v114
  %v147 = vunpack.c.l.b16 %v115
  %v148 = vunpack.c.l.b16 %v116
  %v149 = vunpack.c.l.b16 %v117
  %v150 = vunpack.c.l.b16 %v118
  %v151 = vunpack.c.l.b16 %v119
  %v152 = vunpack.c.l.b16 %v120
  %v153 = vunpack.c.l.b16 %v121
  %v154 = vunpack.c.l.b16 %v122
  %v155 = vpack.c.b16 %v140, %v139
  %v156 = vpack.c.b16 %v142, %v141
  %v157 = vpack.c.b16 %v144, %v143
  %v158 = vpack.c.b16 %v146, %v145
  %v159 = vpack.c.b16 %v148, %v147
  %v160 = vpack.c.b16 %v150, %v149
  %v161 = vpack.c.b16 %v152, %v151
  %v162 = vpack.c.b16 %v154, %v153
  %171 = vmatprep.subr.bf16.mxu0 0
  %172 = vmatpush1.bf16.msra.mxu0 %v162
  %173 = vmatprep.subr.bf16.mxu0 0
  %174 = vmatpush1.bf16.msra.mxu0 %v161
  %175 = vmatprep.subr.bf16.mxu0 0
  %176 = vmatpush1.bf16.msra.mxu0 %v160
  %177 = vmatprep.subr.bf16.mxu0 0
  %178 = vmatpush1.bf16.msra.mxu0 %v159
  %179 = vmatprep.subr.bf16.mxu0 0
  %180 = vmatpush1.bf16.msra.mxu0 %v158
  %181 = vmatprep.subr.bf16.mxu0 0
  %182 = vmatpush1.bf16.msra.mxu0 %v157
  %183 = vmatprep.subr.bf16.mxu0 0
  %184 = vmatpush1.bf16.msra.mxu0 %v156
  %185 = vmatprep.subr.bf16.mxu0 0
  %186 = vmatpush1.bf16.msra.mxu0 %v155
  %187 = vmatprep.subr.bf16.mxu0 0
  %188 = vmatpush2.bf16.msra.mxu0 0
  %189 = vmatprep.subr.bf16.mxu0 0
  %190 = vmatpush2.bf16.msra.mxu0 0
  %191 = vmatprep.subr.bf16.mxu0 0
  %192 = vmatpush2.bf16.msra.mxu0 0
  %193 = vmatprep.subr.bf16.mxu0 0
  %194 = vmatpush2.bf16.msra.mxu0 0
  %195 = vmatprep.subr.bf16.mxu0 0
  %196 = vmatpush2.bf16.msra.mxu0 0
  %197 = vmatprep.subr.bf16.mxu0 0
  %198 = vmatpush2.bf16.msra.mxu0 0
  %199 = vmatprep.subr.bf16.mxu0 0
  %200 = vmatpush2.bf16.msra.mxu0 0
  %201 = vmatprep.subr.bf16.mxu0 0
  %202 = vmatpush2.bf16.msra.mxu0 0
  %203 = vmatprep.mubr.bf16.mxu0 0
  %204 = vmatmul.mubr.bf16.gmra.mxu0 %v99
  %v205 = vpop.f32.mrf.mxu0
  %v206 = vadd.f32 0.0, %v205
  %v207 = vpop.f32.mrf.mxu0
  %v208 = vpop.f32.mrf.mxu0
  %v209 = vadd.f32 0.0, %v208
  %v210 = vpop.f32.mrf.mxu0
  %211 = vmatprep.mubr.bf16.mxu0 0
  %212 = vmatmul.mubr.bf16.gmra.mxu0 %v100
  %v213 = vpop.f32.mrf.mxu0
  %v214 = vadd.f32 0.0, %v213
  %v215 = vpop.f32.mrf.mxu0
  %v216 = vpop.f32.mrf.mxu0
  %v217 = vadd.f32 0.0, %v216
  %v218 = vpop.f32.mrf.mxu0
  %219 = vmatprep.mubr.bf16.mxu0 0
  %220 = vmatmul.mubr.bf16.gmra.mxu0 %v101
  %v221 = vpop.f32.mrf.mxu0
  %v222 = vadd.f32 0.0, %v221
  %v223 = vpop.f32.mrf.mxu0
  %v224 = vpop.f32.mrf.mxu0
  %v225 = vadd.f32 0.0, %v224
  %v226 = vpop.f32.mrf.mxu0
  %227 = vmatprep.mubr.bf16.mxu0 0
  %228 = vmatmul.mubr.bf16.gmra.mxu0 %v102
  %v229 = vpop.f32.mrf.mxu0
  %v230 = vadd.f32 0.0, %v229
  %v231 = vpop.f32.mrf.mxu0
  %v232 = vpop.f32.mrf.mxu0
  %v233 = vadd.f32 0.0, %v232
  %v234 = vpop.f32.mrf.mxu0
  %235 = vmatprep.mubr.bf16.mxu0 0
  %236 = vmatmul.mubr.bf16.gmra.mxu0 %v103
  %v237 = vpop.f32.mrf.mxu0
  %v238 = vadd.f32 0.0, %v237
  %v239 = vpop.f32.mrf.mxu0
  %v240 = vpop.f32.mrf.mxu0
  %v241 = vadd.f32 0.0, %v240
  %v242 = vpop.f32.mrf.mxu0
  %243 = vmatprep.mubr.bf16.mxu0 0
  %244 = vmatmul.mubr.bf16.gmra.mxu0 %v104
  %v245 = vpop.f32.mrf.mxu0
  %v246 = vadd.f32 0.0, %v245
  %v247 = vpop.f32.mrf.mxu0
  %v248 = vpop.f32.mrf.mxu0
  %v249 = vadd.f32 0.0, %v248
  %v250 = vpop.f32.mrf.mxu0
  %251 = vmatprep.mubr.bf16.mxu0 0
  %252 = vmatmul.mubr.bf16.gmra.mxu0 %v105
  %v253 = vpop.f32.mrf.mxu0
  %v254 = vadd.f32 0.0, %v253
  %v255 = vpop.f32.mrf.mxu0
  %v256 = vpop.f32.mrf.mxu0
  %v257 = vadd.f32 0.0, %v256
  %v258 = vpop.f32.mrf.mxu0
  %259 = vmatprep.mubr.bf16.mxu0 0
  %260 = vmatmul.mubr.bf16.gmra.mxu0 %v106
  %v261 = vpop.f32.mrf.mxu0
  %v262 = vadd.f32 0.0, %v261
  %v263 = vpop.f32.mrf.mxu0
  %v264 = vpop.f32.mrf.mxu0
  %v265 = vadd.f32 0.0, %v264
  %v266 = vpop.f32.mrf.mxu0
  %267 = vdwg.mxu0
  %268 = vst [vmem:[%s4] sm:$0xff] %v206
  %269 = vst [vmem:[%s4 + $0x8] sm:$0xff] %v209
  %270 = vst [vmem:[%s4 + $0x10] sm:$0xff] %v214
  %271 = vst [vmem:[%s4 + $0x18] sm:$0xff] %v217
  %272 = vst [vmem:[%s4 + $0x20] sm:$0xff] %v222
  %273 = vst [vmem:[%s4 + $0x28] sm:$0xff] %v225
  %274 = vst [vmem:[%s4 + $0x30] sm:$0xff] %v230
  %275 = vst [vmem:[%s4 + $0x38] sm:$0xff] %v233
  %276 = vst [vmem:[%s4 + $0x40] sm:$0xff] %v238
  %277 = vst [vmem:[%s4 + $0x48] sm:$0xff] %v241
  %278 = vst [vmem:[%s4 + $0x50] sm:$0xff] %v246
  %279 = vst [vmem:[%s4 + $0x58] sm:$0xff] %v249
  %280 = vst [vmem:[%s4 + $0x60] sm:$0xff] %v254
  %281 = vst [vmem:[%s4 + $0x68] sm:$0xff] %v257
  %282 = vst [vmem:[%s4 + $0x70] sm:$0xff] %v262
  %283 = vst [vmem:[%s4 + $0x78] sm:$0xff] %v265
  %p284 = scmp.eq.s32.totalorder 0, 0
  // Predicated region
  $region18: #{bottleneck_forward.10} parent=0 // pred_check
    %p285 = pneg %p284
  $region19: #{bottleneck_forward.10} parent=0 // pred_check_branch
    %287 = sbr.rel (%p285) target = $region21
  $region20: #{bottleneck_forward.10} parent=0 // pred_region
    %288 = vst [vmem:[%s5] sm:$0x1] 0.0
    %289 = vst [vmem:[%s6] sm:$0x1] 0.0
  $region21: #{bottleneck_forward.10} parent=0 // pred_fallthru
    _
  %v290 = vld [vmem:[%s5] sm:$0x1]
  %v291 = vadd.f32 %v206, %v209
  %v292 = vadd.f32 %v291, %v214
  %v293 = vadd.f32 %v292, %v217
  %v294 = vadd.f32 %v293, %v222
  %v295 = vadd.f32 %v294, %v225
  %v296 = vadd.f32 %v295, %v230
  %v297 = vadd.f32 %v296, %v233
  %v298 = vadd.f32 %v297, %v238
  %v299 = vadd.f32 %v298, %v241
  %v300 = vadd.f32 %v299, %v246
  %v301 = vadd.f32 %v300, %v249
  %v302 = vadd.f32 %v301, %v254
  %v303 = vadd.f32 %v302, %v257
  %v304 = vadd.f32 %v303, %v262
  %v305 = vadd.f32 %v304, %v265
  %v306 = vrot.slane %v305, 4
  %v307 = vadd.f32 %v305, %v306
  %v308 = vrot.slane %v307, 2
  %v309 = vadd.f32 %v307, %v308
  %v310 = vrot.slane %v309, 1
  %v311 = vadd.f32 %v309, %v310
  %v312 = vadd.f32 %v290, %v311
  %313 = vst [vmem:[%s5] sm:$0x1] %v312
  %v314 = vld [vmem:[%s6] sm:$0x1]
  %v315 = vmul.f32 %v206, %v206
  %v316 = vmul.f32 %v209, %v209
  %v317 = vmul.f32 %v214, %v214
  %v318 = vmul.f32 %v217, %v217
  %v319 = vmul.f32 %v222, %v222
  %v320 = vmul.f32 %v225, %v225
  %v321 = vmul.f32 %v230, %v230
  %v322 = vmul.f32 %v233, %v233
  %v323 = vmul.f32 %v238, %v238
  %v324 = vmul.f32 %v241, %v241
  %v325 = vmul.f32 %v246, %v246
  %v326 = vmul.f32 %v249, %v249
  %v327 = vmul.f32 %v254, %v254
  %v328 = vmul.f32 %v257, %v257
  %v329 = vmul.f32 %v262, %v262
  %v330 = vmul.f32 %v265, %v265
  %v331 = vadd.f32 %v315, %v316
  %v332 = vadd.f32 %v331, %v317
  %v333 = vadd.f32 %v332, %v318
  %v334 = vadd.f32 %v333, %v319
  %v335 = vadd.f32 %v334, %v320
  %v336 = vadd.f32 %v335, %v321
  %v337 = vadd.f32 %v336, %v322
  %v338 = vadd.f32 %v337, %v323
  %v339 = vadd.f32 %v338, %v324
  %v340 = vadd.f32 %v339, %v325
  %v341 = vadd.f32 %v340, %v326
  %v342 = vadd.f32 %v341, %v327
  %v343 = vadd.f32 %v342, %v328
  %v344 = vadd.f32 %v343, %v329
  %v345 = vadd.f32 %v344, %v330
  %v346 = vrot.slane %v345, 4
  %v347 = vadd.f32 %v345, %v346
  %v348 = vrot.slane %v347, 2
  %v349 = vadd.f32 %v347, %v348
  %v350 = vrot.slane %v349, 1
  %v351 = vadd.f32 %v349, %v350
  %v352 = vadd.f32 %v314, %v351
  %353 = vst [vmem:[%s6] sm:$0x1] %v352
  // Predicated region
  $region22: #{bottleneck_forward.10} parent=0 // pred_check
    _
  $region23: #{bottleneck_forward.10} parent=0 // pred_check_branch
    %355 = sbr.rel (0) target = $region25
  $region24: #{bottleneck_forward.10} parent=0 // pred_region
    _
  $region25: #{bottleneck_forward.10} parent=0 // pred_fallthru
    _
  // Predicated region
  $region26: #{bottleneck_forward.10} parent=0 // pred_check
    _
  $region27: #{bottleneck_forward.10} parent=0 // pred_check_branch
    %357 = sbr.rel (0) target = $region29
  $region28: #{bottleneck_forward.10} parent=0 // pred_region
    _
  $region29: #{bottleneck_forward.10} parent=0 // pred_fallthru
    _
  // Predicated region
  $region30: #{bottleneck_forward.10} parent=0 // pred_check
    _
  $region31: #{bottleneck_forward.10} parent=0 // pred_check_branch
    %359 = sbr.rel (0) target = $region33
  $region32: #{bottleneck_forward.10} parent=0 // pred_region
    _
  $region33: #{bottleneck_forward.10} parent=0 // pred_fallthru
    _
  // Predicated region
  $region34: #{bottleneck_forward.10} parent=0 // pred_check
    _
  $region35: #{bottleneck_forward.10} parent=0 // pred_check_branch
    %361 = sbr.rel (0) target = $region37
  $region36: #{bottleneck_forward.10} parent=0 // pred_region
    _
  $region37: #{bottleneck_forward.10} parent=0 // pred_fallthru
    _
  // Predicated region
  $region38: #{bottleneck_forward.10} parent=0 // pred_check
    _
  $region39: #{bottleneck_forward.10} parent=0 // pred_check_branch
    %363 = sbr.rel (0) target = $region41
  $region40: #{bottleneck_forward.10} parent=0 // pred_region
    _
  $region41: #{bottleneck_forward.10} parent=0 // pred_fallthru
    _
  // Predicated region
  $region42: #{bottleneck_forward.10} parent=0 // pred_check
    _
  $region43: #{bottleneck_forward.10} parent=0 // pred_check_branch
    %365 = sbr.rel (0) target = $region45
  $region44: #{bottleneck_forward.10} parent=0 // pred_region
    _
  $region45: #{bottleneck_forward.10} parent=0 // pred_fallthru
    _

// kernel: bottleneck_forward.8
$region0: #{bottleneck_forward.8}
  #allocation0 [shape = 'u32[]', space=smem, size = 0x4, offset = 0x4, fixed_abs, tag = 'smem constant byte address 0x4 - core index']
  #allocation1 [shape = 'u32[144,128]{1,0:T(1,128)}', space=vmem, size = 0x12000, scoped, tag = 'internal scratch']
  %s0 = inlined_call_operand.vmem [shape: bf16[128,1152], index: 0, kind: input, shape index: {}]
  %s1 = inlined_call_operand.vmem [shape: bf16[1152,128], index: 1, kind: input, shape index: {}]
  %s2 = inlined_call_operand.vmem [shape: f32[128,128], index: 2, kind: output, shape index: {0}]
  %s3 = inlined_call_operand.vmem [shape: f32[1,128], index: 3, kind: output, shape index: {1}]
  %s4 = inlined_call_operand.vmem [shape: f32[1,128], index: 4, kind: output, shape index: {2}]
  %5 = xla_tuple %s2, %s3, %s4
  %s6 = sld [smem:[#allocation0]]
  $region38: #{bottleneck_forward.8} parent=0
    _
  %s8 = ssub.s32 1, %s6
  %s9 = scalar_select 0, %s8, %s6
  // Predicated region
  $region2: #{bottleneck_forward.8} parent=0 // pred_check
    _
  $region3: #{bottleneck_forward.8} parent=0 // pred_check_branch
    %11 = sbr.rel (0) target = $region5
  $region4: #{bottleneck_forward.8} parent=0 // pred_region
    _
  $region5: #{bottleneck_forward.8} parent=0 // pred_fallthru
    _
  // Predicated region
  $region6: #{bottleneck_forward.8} parent=0 // pred_check
    _
  $region7: #{bottleneck_forward.8} parent=0 // pred_check_branch
    %13 = sbr.rel (0) target = $region9
  $region8: #{bottleneck_forward.8} parent=0 // pred_region
    _
  $region9: #{bottleneck_forward.8} parent=0 // pred_fallthru
    _
  %v15 = vld [vmem:[%s0] sm:$0xff]
  %v16 = vld [vmem:[%s0 + $0x8] sm:$0xff]
  %v17 = vld [vmem:[%s0 + $0x10] sm:$0xff]
  %v18 = vld [vmem:[%s0 + $0x18] sm:$0xff]
  %v19 = vld [vmem:[%s0 + $0x20] sm:$0xf]
  %v20 = vld [vmem:[%s0 + $0x24] sm:$0xff]
  %v21 = vld [vmem:[%s0 + $0x2c] sm:$0xff]
  %v22 = vld [vmem:[%s0 + $0x34] sm:$0xff]
  %v23 = vld [vmem:[%s0 + $0x3c] sm:$0xff]
  %v24 = vld [vmem:[%s0 + $0x44] sm:$0xf]
  %v25 = vld [vmem:[%s0 + $0x48] sm:$0xff]
  %v26 = vld [vmem:[%s0 + $0x50] sm:$0xff]
  %v27 = vld [vmem:[%s0 + $0x58] sm:$0xff]
  %v28 = vld [vmem:[%s0 + $0x60] sm:$0xff]
  %v29 = vld [vmem:[%s0 + $0x68] sm:$0xf]
  %v30 = vld [vmem:[%s0 + $0x6c] sm:$0xff]
  %v31 = vld [vmem:[%s0 + $0x74] sm:$0xff]
  %v32 = vld [vmem:[%s0 + $0x7c] sm:$0xff]
  %v33 = vld [vmem:[%s0 + $0x84] sm:$0xff]
  %v34 = vld [vmem:[%s0 + $0x8c] sm:$0xf]
  %v35 = vld [vmem:[%s0 + $0x90] sm:$0xff]
  %v36 = vld [vmem:[%s0 + $0x98] sm:$0xff]
  %v37 = vld [vmem:[%s0 + $0xa0] sm:$0xff]
  %v38 = vld [vmem:[%s0 + $0xa8] sm:$0xff]
  %v39 = vld [vmem:[%s0 + $0xb0] sm:$0xf]
  %v40 = vld [vmem:[%s0 + $0xb4] sm:$0xff]
  %v41 = vld [vmem:[%s0 + $0xbc] sm:$0xff]
  %v42 = vld [vmem:[%s0 + $0xc4] sm:$0xff]
  %v43 = vld [vmem:[%s0 + $0xcc] sm:$0xff]
  %v44 = vld [vmem:[%s0 + $0xd4] sm:$0xf]
  %v45 = vld [vmem:[%s0 + $0xd8] sm:$0xff]
  %v46 = vld [vmem:[%s0 + $0xe0] sm:$0xff]
  %v47 = vld [vmem:[%s0 + $0xe8] sm:$0xff]
  %v48 = vld [vmem:[%s0 + $0xf0] sm:$0xff]
  %v49 = vld [vmem:[%s0 + $0xf8] sm:$0xf]
  %v50 = vld [vmem:[%s0 + $0xfc] sm:$0xff]
  %v51 = vld [vmem:[%s0 + $0x104] sm:$0xff]
  %v52 = vld [vmem:[%s0 + $0x10c] sm:$0xff]
  %v53 = vld [vmem:[%s0 + $0x114] sm:$0xff]
  %v54 = vld [vmem:[%s0 + $0x11c] sm:$0xf]
  %v55 = vld [vmem:[%s0 + $0x120] sm:$0xff]
  %v56 = vld [vmem:[%s0 + $0x128] sm:$0xff]
  %v57 = vld [vmem:[%s0 + $0x130] sm:$0xff]
  %v58 = vld [vmem:[%s0 + $0x138] sm:$0xff]
  %v59 = vld [vmem:[%s0 + $0x140] sm:$0xf]
  %v60 = vld [vmem:[%s0 + $0x144] sm:$0xff]
  %v61 = vld [vmem:[%s0 + $0x14c] sm:$0xff]
  %v62 = vld [vmem:[%s0 + $0x154] sm:$0xff]
  %v63 = vld [vmem:[%s0 + $0x15c] sm:$0xff]
  %v64 = vld [vmem:[%s0 + $0x164] sm:$0xf]
  %v65 = vld [vmem:[%s0 + $0x168] sm:$0xff]
  %v66 = vld [vmem:[%s0 + $0x170] sm:$0xff]
  %v67 = vld [vmem:[%s0 + $0x178] sm:$0xff]
  %v68 = vld [vmem:[%s0 + $0x180] sm:$0xff]
  %v69 = vld [vmem:[%s0 + $0x188] sm:$0xf]
  %v70 = vld [vmem:[%s0 + $0x18c] sm:$0xff]
  %v71 = vld [vmem:[%s0 + $0x194] sm:$0xff]
  %v72 = vld [vmem:[%s0 + $0x19c] sm:$0xff]
  %v73 = vld [vmem:[%s0 + $0x1a4] sm:$0xff]
  %v74 = vld [vmem:[%s0 + $0x1ac] sm:$0xf]
  %v75 = vld [vmem:[%s0 + $0x1b0] sm:$0xff]
  %v76 = vld [vmem:[%s0 + $0x1b8] sm:$0xff]
  %v77 = vld [vmem:[%s0 + $0x1c0] sm:$0xff]
  %v78 = vld [vmem:[%s0 + $0x1c8] sm:$0xff]
  %v79 = vld [vmem:[%s0 + $0x1d0] sm:$0xf]
  %v80 = vld [vmem:[%s0 + $0x1d4] sm:$0xff]
  %v81 = vld [vmem:[%s0 + $0x1dc] sm:$0xff]
  %v82 = vld [vmem:[%s0 + $0x1e4] sm:$0xff]
  %v83 = vld [vmem:[%s0 + $0x1ec] sm:$0xff]
  %v84 = vld [vmem:[%s0 + $0x1f4] sm:$0xf]
  %v85 = vld [vmem:[%s0 + $0x1f8] sm:$0xff]
  %v86 = vld [vmem:[%s0 + $0x200] sm:$0xff]
  %v87 = vld [vmem:[%s0 + $0x208] sm:$0xff]
  %v88 = vld [vmem:[%s0 + $0x210] sm:$0xff]
  %v89 = vld [vmem:[%s0 + $0x218] sm:$0xf]
  %v90 = vld [vmem:[%s0 + $0x21c] sm:$0xff]
  %v91 = vld [vmem:[%s0 + $0x224] sm:$0xff]
  %v92 = vld [vmem:[%s0 + $0x22c] sm:$0xff]
  %v93 = vld [vmem:[%s0 + $0x234] sm:$0xff]
  %v94 = vld [vmem:[%s0 + $0x23c] sm:$0xf]
  %v95 = vld [vmem:[%s1] sm:$0xf]
  %v96 = vld [vmem:[%s1 + $0x4] sm:$0xf]
  %v97 = vld [vmem:[%s1 + $0x8] sm:$0xf]
  %v98 = vld [vmem:[%s1 + $0xc] sm:$0xf]
  %v99 = vld [vmem:[%s1 + $0x10] sm:$0xf]
  %v100 = vld [vmem:[%s1 + $0x14] sm:$0xf]
  %v101 = vld [vmem:[%s1 + $0x18] sm:$0xf]
  %v102 = vld [vmem:[%s1 + $0x1c] sm:$0xf]
  %v103 = vld [vmem:[%s1 + $0x20] sm:$0xf]
  %v104 = vld [vmem:[%s1 + $0x24] sm:$0xf]
  %v105 = vld [vmem:[%s1 + $0x28] sm:$0xf]
  %v106 = vld [vmem:[%s1 + $0x2c] sm:$0xf]
  %v107 = vld [vmem:[%s1 + $0x30] sm:$0xf]
  %v108 = vld [vmem:[%s1 + $0x34] sm:$0xf]
  %v109 = vld [vmem:[%s1 + $0x38] sm:$0xf]
  %v110 = vld [vmem:[%s1 + $0x3c] sm:$0xf]
  %v111 = vld [vmem:[%s1 + $0x40] sm:$0xf]
  %v112 = vld [vmem:[%s1 + $0x44] sm:$0xf]
  %v113 = vld [vmem:[%s1 + $0x48] sm:$0xf]
  %v114 = vld [vmem:[%s1 + $0x4c] sm:$0xf]
  %v115 = vld [vmem:[%s1 + $0x50] sm:$0xf]
  %v116 = vld [vmem:[%s1 + $0x54] sm:$0xf]
  %v117 = vld [vmem:[%s1 + $0x58] sm:$0xf]
  %v118 = vld [vmem:[%s1 + $0x5c] sm:$0xf]
  %v119 = vld [vmem:[%s1 + $0x60] sm:$0xf]
  %v120 = vld [vmem:[%s1 + $0x64] sm:$0xf]
  %v121 = vld [vmem:[%s1 + $0x68] sm:$0xf]
  %v122 = vld [vmem:[%s1 + $0x6c] sm:$0xf]
  %v123 = vld [vmem:[%s1 + $0x70] sm:$0xf]
  %v124 = vld [vmem:[%s1 + $0x74] sm:$0xf]
  %v125 = vld [vmem:[%s1 + $0x78] sm:$0xf]
  %v126 = vld [vmem:[%s1 + $0x7c] sm:$0xf]
  %v127 = vld [vmem:[%s1 + $0x80] sm:$0xf]
  %v128 = vld [vmem:[%s1 + $0x84] sm:$0xf]
  %v129 = vld [vmem:[%s1 + $0x88] sm:$0xf]
  %v130 = vld [vmem:[%s1 + $0x8c] sm:$0xf]
  %v131 = vld [vmem:[%s1 + $0x90] sm:$0xf]
  %v132 = vld [vmem:[%s1 + $0x94] sm:$0xf]
  %v133 = vld [vmem:[%s1 + $0x98] sm:$0xf]
  %v134 = vld [vmem:[%s1 + $0x9c] sm:$0xf]
  %v135 = vld [vmem:[%s1 + $0xa0] sm:$0xf]
  %v136 = vld [vmem:[%s1 + $0xa4] sm:$0xf]
  %v137 = vld [vmem:[%s1 + $0xa8] sm:$0xf]
  %v138 = vld [vmem:[%s1 + $0xac] sm:$0xf]
  %v139 = vld [vmem:[%s1 + $0xb0] sm:$0xf]
  %v140 = vld [vmem:[%s1 + $0xb4] sm:$0xf]
  %v141 = vld [vmem:[%s1 + $0xb8] sm:$0xf]
  %v142 = vld [vmem:[%s1 + $0xbc] sm:$0xf]
  %v143 = vld [vmem:[%s1 + $0xc0] sm:$0xf]
  %v144 = vld [vmem:[%s1 + $0xc4] sm:$0xf]
  %v145 = vld [vmem:[%s1 + $0xc8] sm:$0xf]
  %v146 = vld [vmem:[%s1 + $0xcc] sm:$0xf]
  %v147 = vld [vmem:[%s1 + $0xd0] sm:$0xf]
  %v148 = vld [vmem:[%s1 + $0xd4] sm:$0xf]
  %v149 = vld [vmem:[%s1 + $0xd8] sm:$0xf]
  %v150 = vld [vmem:[%s1 + $0xdc] sm:$0xf]
  %v151 = vld [vmem:[%s1 + $0xe0] sm:$0xf]
  %v152 = vld [vmem:[%s1 + $0xe4] sm:$0xf]
  %v153 = vld [vmem:[%s1 + $0xe8] sm:$0xf]
  %v154 = vld [vmem:[%s1 + $0xec] sm:$0xf]
  %v155 = vld [vmem:[%s1 + $0xf0] sm:$0xf]
  %v156 = vld [vmem:[%s1 + $0xf4] sm:$0xf]
  %v157 = vld [vmem:[%s1 + $0xf8] sm:$0xf]
  %v158 = vld [vmem:[%s1 + $0xfc] sm:$0xf]
  %v159 = vld [vmem:[%s1 + $0x100] sm:$0xf]
  %v160 = vld [vmem:[%s1 + $0x104] sm:$0xf]
  %v161 = vld [vmem:[%s1 + $0x108] sm:$0xf]
  %v162 = vld [vmem:[%s1 + $0x10c] sm:$0xf]
  %v163 = vld [vmem:[%s1 + $0x110] sm:$0xf]
  %v164 = vld [vmem:[%s1 + $0x114] sm:$0xf]
  %v165 = vld [vmem:[%s1 + $0x118] sm:$0xf]
  %v166 = vld [vmem:[%s1 + $0x11c] sm:$0xf]
  %v167 = vld [vmem:[%s1 + $0x120] sm:$0xf]
  %v168 = vld [vmem:[%s1 + $0x124] sm:$0xf]
  %v169 = vld [vmem:[%s1 + $0x128] sm:$0xf]
  %v170 = vld [vmem:[%s1 + $0x12c] sm:$0xf]
  %v171 = vld [vmem:[%s1 + $0x130] sm:$0xf]
  %v172 = vld [vmem:[%s1 + $0x134] sm:$0xf]
  %v173 = vld [vmem:[%s1 + $0x138] sm:$0xf]
  %v174 = vld [vmem:[%s1 + $0x13c] sm:$0xf]
  %v175 = vld [vmem:[%s1 + $0x140] sm:$0xf]
  %v176 = vld [vmem:[%s1 + $0x144] sm:$0xf]
  %v177 = vld [vmem:[%s1 + $0x148] sm:$0xf]
  %v178 = vld [vmem:[%s1 + $0x14c] sm:$0xf]
  %v179 = vld [vmem:[%s1 + $0x150] sm:$0xf]
  %v180 = vld [vmem:[%s1 + $0x154] sm:$0xf]
  %v181 = vld [vmem:[%s1 + $0x158] sm:$0xf]
  %v182 = vld [vmem:[%s1 + $0x15c] sm:$0xf]
  %v183 = vld [vmem:[%s1 + $0x160] sm:$0xf]
  %v184 = vld [vmem:[%s1 + $0x164] sm:$0xf]
  %v185 = vld [vmem:[%s1 + $0x168] sm:$0xf]
  %v186 = vld [vmem:[%s1 + $0x16c] sm:$0xf]
  %v187 = vld [vmem:[%s1 + $0x170] sm:$0xf]
  %v188 = vld [vmem:[%s1 + $0x174] sm:$0xf]
  %v189 = vld [vmem:[%s1 + $0x178] sm:$0xf]
  %v190 = vld [vmem:[%s1 + $0x17c] sm:$0xf]
  %v191 = vld [vmem:[%s1 + $0x180] sm:$0xf]
  %v192 = vld [vmem:[%s1 + $0x184] sm:$0xf]
  %v193 = vld [vmem:[%s1 + $0x188] sm:$0xf]
  %v194 = vld [vmem:[%s1 + $0x18c] sm:$0xf]
  %v195 = vld [vmem:[%s1 + $0x190] sm:$0xf]
  %v196 = vld [vmem:[%s1 + $0x194] sm:$0xf]
  %v197 = vld [vmem:[%s1 + $0x198] sm:$0xf]
  %v198 = vld [vmem:[%s1 + $0x19c] sm:$0xf]
  %v199 = vld [vmem:[%s1 + $0x1a0] sm:$0xf]
  %v200 = vld [vmem:[%s1 + $0x1a4] sm:$0xf]
  %v201 = vld [vmem:[%s1 + $0x1a8] sm:$0xf]
  %v202 = vld [vmem:[%s1 + $0x1ac] sm:$0xf]
  %v203 = vld [vmem:[%s1 + $0x1b0] sm:$0xf]
  %v204 = vld [vmem:[%s1 + $0x1b4] sm:$0xf]
  %v205 = vld [vmem:[%s1 + $0x1b8] sm:$0xf]
  %v206 = vld [vmem:[%s1 + $0x1bc] sm:$0xf]
  %v207 = vld [vmem:[%s1 + $0x1c0] sm:$0xf]
  %v208 = vld [vmem:[%s1 + $0x1c4] sm:$0xf]
  %v209 = vld [vmem:[%s1 + $0x1c8] sm:$0xf]
  %v210 = vld [vmem:[%s1 + $0x1cc] sm:$0xf]
  %v211 = vld [vmem:[%s1 + $0x1d0] sm:$0xf]
  %v212 = vld [vmem:[%s1 + $0x1d4] sm:$0xf]
  %v213 = vld [vmem:[%s1 + $0x1d8] sm:$0xf]
  %v214 = vld [vmem:[%s1 + $0x1dc] sm:$0xf]
  %v215 = vld [vmem:[%s1 + $0x1e0] sm:$0xf]
  %v216 = vld [vmem:[%s1 + $0x1e4] sm:$0xf]
  %v217 = vld [vmem:[%s1 + $0x1e8] sm:$0xf]
  %v218 = vld [vmem:[%s1 + $0x1ec] sm:$0xf]
  %v219 = vld [vmem:[%s1 + $0x1f0] sm:$0xf]
  %v220 = vld [vmem:[%s1 + $0x1f4] sm:$0xf]
  %v221 = vld [vmem:[%s1 + $0x1f8] sm:$0xf]
  %v222 = vld [vmem:[%s1 + $0x1fc] sm:$0xf]
  %v223 = vld [vmem:[%s1 + $0x200] sm:$0xf]
  %v224 = vld [vmem:[%s1 + $0x204] sm:$0xf]
  %v225 = vld [vmem:[%s1 + $0x208] sm:$0xf]
  %v226 = vld [vmem:[%s1 + $0x20c] sm:$0xf]
  %v227 = vld [vmem:[%s1 + $0x210] sm:$0xf]
  %v228 = vld [vmem:[%s1 + $0x214] sm:$0xf]
  %v229 = vld [vmem:[%s1 + $0x218] sm:$0xf]
  %v230 = vld [vmem:[%s1 + $0x21c] sm:$0xf]
  %v231 = vld [vmem:[%s1 + $0x220] sm:$0xf]
  %v232 = vld [vmem:[%s1 + $0x224] sm:$0xf]
  %v233 = vld [vmem:[%s1 + $0x228] sm:$0xf]
  %v234 = vld [vmem:[%s1 + $0x22c] sm:$0xf]
  %v235 = vld [vmem:[%s1 + $0x230] sm:$0xf]
  %v236 = vld [vmem:[%s1 + $0x234] sm:$0xf]
  %v237 = vld [vmem:[%s1 + $0x238] sm:$0xf]
  %v238 = vld [vmem:[%s1 + $0x23c] sm:$0xf]
  %v319 = vunpack.c.l.b16 %v15
  %v320 = vunpack.c.h.b16 %v15
  %v321 = vunpack.c.l.b16 %v16
  %v322 = vunpack.c.h.b16 %v16
  %v323 = vunpack.c.l.b16 %v17
  %v324 = vunpack.c.h.b16 %v17
  %v325 = vunpack.c.l.b16 %v18
  %v326 = vunpack.c.h.b16 %v18
  %v327 = vunpack.c.l.b16 %v19
  %v328 = vunpack.c.l.b16 %v20
  %v329 = vunpack.c.h.b16 %v20
  %v330 = vunpack.c.l.b16 %v21
  %v331 = vunpack.c.h.b16 %v21
  %v332 = vunpack.c.l.b16 %v22
  %v333 = vunpack.c.h.b16 %v22
  %v334 = vunpack.c.l.b16 %v23
  %v335 = vunpack.c.h.b16 %v23
  %v336 = vunpack.c.l.b16 %v24
  %v337 = vunpack.c.l.b16 %v25
  %v338 = vunpack.c.h.b16 %v25
  %v339 = vunpack.c.l.b16 %v26
  %v340 = vunpack.c.h.b16 %v26
  %v341 = vunpack.c.l.b16 %v27
  %v342 = vunpack.c.h.b16 %v27
  %v343 = vunpack.c.l.b16 %v28
  %v344 = vunpack.c.h.b16 %v28
  %v345 = vunpack.c.l.b16 %v29
  %v346 = vunpack.c.l.b16 %v30
  %v347 = vunpack.c.h.b16 %v30
  %v348 = vunpack.c.l.b16 %v31
  %v349 = vunpack.c.h.b16 %v31
  %v350 = vunpack.c.l.b16 %v32
  %v351 = vunpack.c.h.b16 %v32
  %v352 = vunpack.c.l.b16 %v33
  %v353 = vunpack.c.h.b16 %v33
  %v354 = vunpack.c.l.b16 %v34
  %v355 = vunpack.c.l.b16 %v35
  %v356 = vunpack.c.h.b16 %v35
  %v357 = vunpack.c.l.b16 %v36
  %v358 = vunpack.c.h.b16 %v36
  %v359 = vunpack.c.l.b16 %v37
  %v360 = vunpack.c.h.b16 %v37
  %v361 = vunpack.c.l.b16 %v38
  %v362 = vunpack.c.h.b16 %v38
  %v363 = vunpack.c.l.b16 %v39
  %v364 = vunpack.c.l.b16 %v40
  %v365 = vunpack.c.h.b16 %v40
  %v366 = vunpack.c.l.b16 %v41
  %v367 = vunpack.c.h.b16 %v41
  %v368 = vunpack.c.l.b16 %v42
  %v369 = vunpack.c.h.b16 %v42
  %v370 = vunpack.c.l.b16 %v43
  %v371 = vunpack.c.h.b16 %v43
  %v372 = vunpack.c.l.b16 %v44
  %v373 = vunpack.c.l.b16 %v45
  %v374 = vunpack.c.h.b16 %v45
  %v375 = vunpack.c.l.b16 %v46
  %v376 = vunpack.c.h.b16 %v46
  %v377 = vunpack.c.l.b16 %v47
  %v378 = vunpack.c.h.b16 %v47
  %v379 = vunpack.c.l.b16 %v48
  %v380 = vunpack.c.h.b16 %v48
  %v381 = vunpack.c.l.b16 %v49
  %v382 = vunpack.c.l.b16 %v50
  %v383 = vunpack.c.h.b16 %v50
  %v384 = vunpack.c.l.b16 %v51
  %v385 = vunpack.c.h.b16 %v51
  %v386 = vunpack.c.l.b16 %v52
  %v387 = vunpack.c.h.b16 %v52
  %v388 = vunpack.c.l.b16 %v53
  %v389 = vunpack.c.h.b16 %v53
  %v390 = vunpack.c.l.b16 %v54
  %v391 = vunpack.c.l.b16 %v55
  %v392 = vunpack.c.h.b16 %v55
  %v393 = vunpack.c.l.b16 %v56
  %v394 = vunpack.c.h.b16 %v56
  %v395 = vunpack.c.l.b16 %v57
  %v396 = vunpack.c.h.b16 %v57
  %v397 = vunpack.c.l.b16 %v58
  %v398 = vunpack.c.h.b16 %v58
  %v399 = vunpack.c.l.b16 %v59
  %v400 = vunpack.c.l.b16 %v60
  %v401 = vunpack.c.h.b16 %v60
  %v402 = vunpack.c.l.b16 %v61
  %v403 = vunpack.c.h.b16 %v61
  %v404 = vunpack.c.l.b16 %v62
  %v405 = vunpack.c.h.b16 %v62
  %v406 = vunpack.c.l.b16 %v63
  %v407 = vunpack.c.h.b16 %v63
  %v408 = vunpack.c.l.b16 %v64
  %v409 = vunpack.c.l.b16 %v65
  %v410 = vunpack.c.h.b16 %v65
  %v411 = vunpack.c.l.b16 %v66
  %v412 = vunpack.c.h.b16 %v66
  %v413 = vunpack.c.l.b16 %v67
  %v414 = vunpack.c.h.b16 %v67
  %v415 = vunpack.c.l.b16 %v68
  %v416 = vunpack.c.h.b16 %v68
  %v417 = vunpack.c.l.b16 %v69
  %v418 = vunpack.c.l.b16 %v70
  %v419 = vunpack.c.h.b16 %v70
  %v420 = vunpack.c.l.b16 %v71
  %v421 = vunpack.c.h.b16 %v71
  %v422 = vunpack.c.l.b16 %v72
  %v423 = vunpack.c.h.b16 %v72
  %v424 = vunpack.c.l.b16 %v73
  %v425 = vunpack.c.h.b16 %v73
  %v426 = vunpack.c.l.b16 %v74
  %v427 = vunpack.c.l.b16 %v75
  %v428 = vunpack.c.h.b16 %v75
  %v429 = vunpack.c.l.b16 %v76
  %v430 = vunpack.c.h.b16 %v76
  %v431 = vunpack.c.l.b16 %v77
  %v432 = vunpack.c.h.b16 %v77
  %v433 = vunpack.c.l.b16 %v78
  %v434 = vunpack.c.h.b16 %v78
  %v435 = vunpack.c.l.b16 %v79
  %v436 = vunpack.c.l.b16 %v80
  %v437 = vunpack.c.h.b16 %v80
  %v438 = vunpack.c.l.b16 %v81
  %v439 = vunpack.c.h.b16 %v81
  %v440 = vunpack.c.l.b16 %v82
  %v441 = vunpack.c.h.b16 %v82
  %v442 = vunpack.c.l.b16 %v83
  %v443 = vunpack.c.h.b16 %v83
  %v444 = vunpack.c.l.b16 %v84
  %v445 = vunpack.c.l.b16 %v85
  %v446 = vunpack.c.h.b16 %v85
  %v447 = vunpack.c.l.b16 %v86
  %v448 = vunpack.c.h.b16 %v86
  %v449 = vunpack.c.l.b16 %v87
  %v450 = vunpack.c.h.b16 %v87
  %v451 = vunpack.c.l.b16 %v88
  %v452 = vunpack.c.h.b16 %v88
  %v453 = vunpack.c.l.b16 %v89
  %v454 = vunpack.c.l.b16 %v90
  %v455 = vunpack.c.h.b16 %v90
  %v456 = vunpack.c.l.b16 %v91
  %v457 = vunpack.c.h.b16 %v91
  %v458 = vunpack.c.l.b16 %v92
  %v459 = vunpack.c.h.b16 %v92
  %v460 = vunpack.c.l.b16 %v93
  %v461 = vunpack.c.h.b16 %v93
  %v462 = vunpack.c.l.b16 %v94
  %v463 = vpack.c.b16 %v328, %v319
  %v464 = vpack.c.b16 %v329, %v320
  %v465 = vpack.c.b16 %v330, %v321
  %v466 = vpack.c.b16 %v331, %v322
  %v467 = vpack.c.b16 %v332, %v323
  %v468 = vpack.c.b16 %v333, %v324
  %v469 = vpack.c.b16 %v334, %v325
  %v470 = vpack.c.b16 %v335, %v326
  %v471 = vpack.c.b16 %v336, %v327
  %v472 = vpack.c.b16 %v346, %v337
  %v473 = vpack.c.b16 %v347, %v338
  %v474 = vpack.c.b16 %v348, %v339
  %v475 = vpack.c.b16 %v349, %v340
  %v476 = vpack.c.b16 %v350, %v341
  %v477 = vpack.c.b16 %v351, %v342
  %v478 = vpack.c.b16 %v352, %v343
  %v479 = vpack.c.b16 %v353, %v344
  %v480 = vpack.c.b16 %v354, %v345
  %v481 = vpack.c.b16 %v364, %v355
  %v482 = vpack.c.b16 %v365, %v356
  %v483 = vpack.c.b16 %v366, %v357
  %v484 = vpack.c.b16 %v367, %v358
  %v485 = vpack.c.b16 %v368, %v359
  %v486 = vpack.c.b16 %v369, %v360
  %v487 = vpack.c.b16 %v370, %v361
  %v488 = vpack.c.b16 %v371, %v362
  %v489 = vpack.c.b16 %v372, %v363
  %v490 = vpack.c.b16 %v382, %v373
  %v491 = vpack.c.b16 %v383, %v374
  %v492 = vpack.c.b16 %v384, %v375
  %v493 = vpack.c.b16 %v385, %v376
  %v494 = vpack.c.b16 %v386, %v377
  %v495 = vpack.c.b16 %v387, %v378
  %v496 = vpack.c.b16 %v388, %v379
  %v497 = vpack.c.b16 %v389, %v380
  %v498 = vpack.c.b16 %v390, %v381
  %v499 = vpack.c.b16 %v400, %v391
  %v500 = vpack.c.b16 %v401, %v392
  %v501 = vpack.c.b16 %v402, %v393
  %v502 = vpack.c.b16 %v403, %v394
  %v503 = vpack.c.b16 %v404, %v395
  %v504 = vpack.c.b16 %v405, %v396
  %v505 = vpack.c.b16 %v406, %v397
  %v506 = vpack.c.b16 %v407, %v398
  %v507 = vpack.c.b16 %v408, %v399
  %v508 = vpack.c.b16 %v418, %v409
  %v509 = vpack.c.b16 %v419, %v410
  %v510 = vpack.c.b16 %v420, %v411
  %v511 = vpack.c.b16 %v421, %v412
  %v512 = vpack.c.b16 %v422, %v413
  %v513 = vpack.c.b16 %v423, %v414
  %v514 = vpack.c.b16 %v424, %v415
  %v515 = vpack.c.b16 %v425, %v416
  %v516 = vpack.c.b16 %v426, %v417
  %v517 = vpack.c.b16 %v436, %v427
  %v518 = vpack.c.b16 %v437, %v428
  %v519 = vpack.c.b16 %v438, %v429
  %v520 = vpack.c.b16 %v439, %v430
  %v521 = vpack.c.b16 %v440, %v431
  %v522 = vpack.c.b16 %v441, %v432
  %v523 = vpack.c.b16 %v442, %v433
  %v524 = vpack.c.b16 %v443, %v434
  %v525 = vpack.c.b16 %v444, %v435
  %v526 = vpack.c.b16 %v454, %v445
  %v527 = vpack.c.b16 %v455, %v446
  %v528 = vpack.c.b16 %v456, %v447
  %v529 = vpack.c.b16 %v457, %v448
  %v530 = vpack.c.b16 %v458, %v449
  %v531 = vpack.c.b16 %v459, %v450
  %v532 = vpack.c.b16 %v460, %v451
  %v533 = vpack.c.b16 %v461, %v452
  %v534 = vpack.c.b16 %v462, %v453
  %v751 = vunpack.c.l.b16 %v95
  %v752 = vunpack.c.l.b16 %v96
  %v753 = vunpack.c.l.b16 %v97
  %v754 = vunpack.c.l.b16 %v98
  %v755 = vunpack.c.l.b16 %v99
  %v756 = vunpack.c.l.b16 %v100
  %v757 = vunpack.c.l.b16 %v101
  %v758 = vunpack.c.l.b16 %v102
  %v759 = vunpack.c.l.b16 %v103
  %v760 = vunpack.c.l.b16 %v104
  %v761 = vunpack.c.l.b16 %v105
  %v762 = vunpack.c.l.b16 %v106
  %v763 = vunpack.c.l.b16 %v107
  %v764 = vunpack.c.l.b16 %v108
  %v765 = vunpack.c.l.b16 %v109
  %v766 = vunpack.c.l.b16 %v110
  %v767 = vunpack.c.l.b16 %v111
  %v768 = vunpack.c.l.b16 %v112
  %v769 = vunpack.c.l.b16 %v113
  %v770 = vunpack.c.l.b16 %v114
  %v771 = vunpack.c.l.b16 %v115
  %v772 = vunpack.c.l.b16 %v116
  %v773 = vunpack.c.l.b16 %v117
  %v774 = vunpack.c.l.b16 %v118
  %v775 = vunpack.c.l.b16 %v119
  %v776 = vunpack.c.l.b16 %v120
  %v777 = vunpack.c.l.b16 %v121
  %v778 = vunpack.c.l.b16 %v122
  %v779 = vunpack.c.l.b16 %v123
  %v780 = vunpack.c.l.b16 %v124
  %v781 = vunpack.c.l.b16 %v125
  %v782 = vunpack.c.l.b16 %v126
  %v783 = vunpack.c.l.b16 %v127
  %v784 = vunpack.c.l.b16 %v128
  %v785 = vunpack.c.l.b16 %v129
  %v786 = vunpack.c.l.b16 %v130
  %v787 = vunpack.c.l.b16 %v131
  %v788 = vunpack.c.l.b16 %v132
  %v789 = vunpack.c.l.b16 %v133
  %v790 = vunpack.c.l.b16 %v134
  %v791 = vunpack.c.l.b16 %v135
  %v792 = vunpack.c.l.b16 %v136
  %v793 = vunpack.c.l.b16 %v137
  %v794 = vunpack.c.l.b16 %v138
  %v795 = vunpack.c.l.b16 %v139
  %v796 = vunpack.c.l.b16 %v140
  %v797 = vunpack.c.l.b16 %v141
  %v798 = vunpack.c.l.b16 %v142
  %v799 = vunpack.c.l.b16 %v143
  %v800 = vunpack.c.l.b16 %v144
  %v801 = vunpack.c.l.b16 %v145
  %v802 = vunpack.c.l.b16 %v146
  %v803 = vunpack.c.l.b16 %v147
  %v804 = vunpack.c.l.b16 %v148
  %v805 = vunpack.c.l.b16 %v149
  %v806 = vunpack.c.l.b16 %v150
  %v807 = vunpack.c.l.b16 %v151
  %v808 = vunpack.c.l.b16 %v152
  %v809 = vunpack.c.l.b16 %v153
  %v810 = vunpack.c.l.b16 %v154
  %v811 = vunpack.c.l.b16 %v155
  %v812 = vunpack.c.l.b16 %v156
  %v813 = vunpack.c.l.b16 %v157
  %v814 = vunpack.c.l.b16 %v158
  %v815 = vunpack.c.l.b16 %v159
  %v816 = vunpack.c.l.b16 %v160
  %v817 = vunpack.c.l.b16 %v161
  %v818 = vunpack.c.l.b16 %v162
  %v819 = vunpack.c.l.b16 %v163
  %v820 = vunpack.c.l.b16 %v164
  %v821 = vunpack.c.l.b16 %v165
  %v822 = vunpack.c.l.b16 %v166
  %v823 = vunpack.c.l.b16 %v167
  %v824 = vunpack.c.l.b16 %v168
  %v825 = vunpack.c.l.b16 %v169
  %v826 = vunpack.c.l.b16 %v170
  %v827 = vunpack.c.l.b16 %v171
  %v828 = vunpack.c.l.b16 %v172
  %v829 = vunpack.c.l.b16 %v173
  %v830 = vunpack.c.l.b16 %v174
  %v831 = vunpack.c.l.b16 %v175
  %v832 = vunpack.c.l.b16 %v176
  %v833 = vunpack.c.l.b16 %v177
  %v834 = vunpack.c.l.b16 %v178
  %v835 = vunpack.c.l.b16 %v179
  %v836 = vunpack.c.l.b16 %v180
  %v837 = vunpack.c.l.b16 %v181
  %v838 = vunpack.c.l.b16 %v182
  %v839 = vunpack.c.l.b16 %v183
  %v840 = vunpack.c.l.b16 %v184
  %v841 = vunpack.c.l.b16 %v185
  %v842 = vunpack.c.l.b16 %v186
  %v843 = vunpack.c.l.b16 %v187
  %v844 = vunpack.c.l.b16 %v188
  %v845 = vunpack.c.l.b16 %v189
  %v846 = vunpack.c.l.b16 %v190
  %v847 = vunpack.c.l.b16 %v191
  %v848 = vunpack.c.l.b16 %v192
  %v849 = vunpack.c.l.b16 %v193
  %v850 = vunpack.c.l.b16 %v194
  %v851 = vunpack.c.l.b16 %v195
  %v852 = vunpack.c.l.b16 %v196
  %v853 = vunpack.c.l.b16 %v197
  %v854 = vunpack.c.l.b16 %v198
  %v855 = vunpack.c.l.b16 %v199
  %v856 = vunpack.c.l.b16 %v200
  %v857 = vunpack.c.l.b16 %v201
  %v858 = vunpack.c.l.b16 %v202
  %v859 = vunpack.c.l.b16 %v203
  %v860 = vunpack.c.l.b16 %v204
  %v861 = vunpack.c.l.b16 %v205
  %v862 = vunpack.c.l.b16 %v206
  %v863 = vunpack.c.l.b16 %v207
  %v864 = vunpack.c.l.b16 %v208
  %v865 = vunpack.c.l.b16 %v209
  %v866 = vunpack.c.l.b16 %v210
  %v867 = vunpack.c.l.b16 %v211
  %v868 = vunpack.c.l.b16 %v212
  %v869 = vunpack.c.l.b16 %v213
  %v870 = vunpack.c.l.b16 %v214
  %v871 = vunpack.c.l.b16 %v215
  %v872 = vunpack.c.l.b16 %v216
  %v873 = vunpack.c.l.b16 %v217
  %v874 = vunpack.c.l.b16 %v218
  %v875 = vunpack.c.l.b16 %v219
  %v876 = vunpack.c.l.b16 %v220
  %v877 = vunpack.c.l.b16 %v221
  %v878 = vunpack.c.l.b16 %v222
  %v879 = vunpack.c.l.b16 %v223
  %v880 = vunpack.c.l.b16 %v224
  %v881 = vunpack.c.l.b16 %v225
  %v882 = vunpack.c.l.b16 %v226
  %v883 = vunpack.c.l.b16 %v227
  %v884 = vunpack.c.l.b16 %v228
  %v885 = vunpack.c.l.b16 %v229
  %v886 = vunpack.c.l.b16 %v230
  %v887 = vunpack.c.l.b16 %v231
  %v888 = vunpack.c.l.b16 %v232
  %v889 = vunpack.c.l.b16 %v233
  %v890 = vunpack.c.l.b16 %v234
  %v891 = vunpack.c.l.b16 %v235
  %v892 = vunpack.c.l.b16 %v236
  %v893 = vunpack.c.l.b16 %v237
  %v894 = vunpack.c.l.b16 %v238
  %v895 = vpack.c.b16 %v752, %v751
  %v896 = vpack.c.b16 %v754, %v753
  %v897 = vpack.c.b16 %v756, %v755
  %v898 = vpack.c.b16 %v758, %v757
  %v899 = vpack.c.b16 %v760, %v759
  %v900 = vpack.c.b16 %v762, %v761
  %v901 = vpack.c.b16 %v764, %v763
  %v902 = vpack.c.b16 %v766, %v765
  %v903 = vpack.c.b16 %v768, %v767
  %v904 = vpack.c.b16 %v770, %v769
  %v905 = vpack.c.b16 %v772, %v771
  %v906 = vpack.c.b16 %v774, %v773
  %v907 = vpack.c.b16 %v776, %v775
  %v908 = vpack.c.b16 %v778, %v777
  %v909 = vpack.c.b16 %v780, %v779
  %v910 = vpack.c.b16 %v782, %v781
  %v911 = vpack.c.b16 %v784, %v783
  %v912 = vpack.c.b16 %v786, %v785
  %v913 = vpack.c.b16 %v788, %v787
  %v914 = vpack.c.b16 %v790, %v789
  %v915 = vpack.c.b16 %v792, %v791
  %v916 = vpack.c.b16 %v794, %v793
  %v917 = vpack.c.b16 %v796, %v795
  %v918 = vpack.c.b16 %v798, %v797
  %v919 = vpack.c.b16 %v800, %v799
  %v920 = vpack.c.b16 %v802, %v801
  %v921 = vpack.c.b16 %v804, %v803
  %v922 = vpack.c.b16 %v806, %v805
  %v923 = vpack.c.b16 %v808, %v807
  %v924 = vpack.c.b16 %v810, %v809
  %v925 = vpack.c.b16 %v812, %v811
  %v926 = vpack.c.b16 %v814, %v813
  %v927 = vpack.c.b16 %v816, %v815
  %v928 = vpack.c.b16 %v818, %v817
  %v929 = vpack.c.b16 %v820, %v819
  %v930 = vpack.c.b16 %v822, %v821
  %v931 = vpack.c.b16 %v824, %v823
  %v932 = vpack.c.b16 %v826, %v825
  %v933 = vpack.c.b16 %v828, %v827
  %v934 = vpack.c.b16 %v830, %v829
  %v935 = vpack.c.b16 %v832, %v831
  %v936 = vpack.c.b16 %v834, %v833
  %v937 = vpack.c.b16 %v836, %v835
  %v938 = vpack.c.b16 %v838, %v837
  %v939 = vpack.c.b16 %v840, %v839
  %v940 = vpack.c.b16 %v842, %v841
  %v941 = vpack.c.b16 %v844, %v843
  %v942 = vpack.c.b16 %v846, %v845
  %v943 = vpack.c.b16 %v848, %v847
  %v944 = vpack.c.b16 %v850, %v849
  %v945 = vpack.c.b16 %v852, %v851
  %v946 = vpack.c.b16 %v854, %v853
  %v947 = vpack.c.b16 %v856, %v855
  %v948 = vpack.c.b16 %v858, %v857
  %v949 = vpack.c.b16 %v860, %v859
  %v950 = vpack.c.b16 %v862, %v861
  %v951 = vpack.c.b16 %v864, %v863
  %v952 = vpack.c.b16 %v866, %v865
  %v953 = vpack.c.b16 %v868, %v867
  %v954 = vpack.c.b16 %v870, %v869
  %v955 = vpack.c.b16 %v872, %v871
  %v956 = vpack.c.b16 %v874, %v873
  %v957 = vpack.c.b16 %v876, %v875
  %v958 = vpack.c.b16 %v878, %v877
  %v959 = vpack.c.b16 %v880, %v879
  %v960 = vpack.c.b16 %v882, %v881
  %v961 = vpack.c.b16 %v884, %v883
  %v962 = vpack.c.b16 %v886, %v885
  %v963 = vpack.c.b16 %v888, %v887
  %v964 = vpack.c.b16 %v890, %v889
  %v965 = vpack.c.b16 %v892, %v891
  %v966 = vpack.c.b16 %v894, %v893
  %1039 = vmatprep.subr.bf16.mxu0 0
  %1040 = vmatpush1.bf16.msra.mxu0 %v902
  %1041 = vmatprep.subr.bf16.mxu0 0
  %1042 = vmatpush1.bf16.msra.mxu0 %v901
  %1043 = vmatprep.subr.bf16.mxu0 0
  %1044 = vmatpush1.bf16.msra.mxu0 %v900
  %1045 = vmatprep.subr.bf16.mxu0 0
  %1046 = vmatpush1.bf16.msra.mxu0 %v899
  %1047 = vmatprep.subr.bf16.mxu0 0
  %1048 = vmatpush1.bf16.msra.mxu0 %v898
  %1049 = vmatprep.subr.bf16.mxu0 0
  %1050 = vmatpush1.bf16.msra.mxu0 %v897
  %1051 = vmatprep.subr.bf16.mxu0 0
  %1052 = vmatpush1.bf16.msra.mxu0 %v896
  %1053 = vmatprep.subr.bf16.mxu0 0
  %1054 = vmatpush1.bf16.msra.mxu0 %v895
  %1055 = vmatprep.subr.bf16.mxu0 0
  %1056 = vmatpush2.bf16.msra.mxu0 %v910
  %1057 = vmatprep.subr.bf16.mxu0 0
  %1058 = vmatpush2.bf16.msra.mxu0 %v909
  %1059 = vmatprep.subr.bf16.mxu0 0
  %1060 = vmatpush2.bf16.msra.mxu0 %v908
  %1061 = vmatprep.subr.bf16.mxu0 0
  %1062 = vmatpush2.bf16.msra.mxu0 %v907
  %1063 = vmatprep.subr.bf16.mxu0 0
  %1064 = vmatpush2.bf16.msra.mxu0 %v906
  %1065 = vmatprep.subr.bf16.mxu0 0
  %1066 = vmatpush2.bf16.msra.mxu0 %v905
  %1067 = vmatprep.subr.bf16.mxu0 0
  %1068 = vmatpush2.bf16.msra.mxu0 %v904
  %1069 = vmatprep.subr.bf16.mxu0 0
  %1070 = vmatpush2.bf16.msra.mxu0 %v903
  %1071 = vmatprep.mubr.bf16.mxu0 %v464
  %1072 = vmatmul.mubr.bf16.gmra.mxu0 %v463
  %v1073 = vpop.f32.mrf.mxu0
  %v1074 = vadd.f32 0.0, %v1073
  %v1075 = vpop.f32.mrf.mxu0
  %v1076 = vpop.f32.mrf.mxu0
  %v1077 = vadd.f32 0.0, %v1076
  %v1078 = vpop.f32.mrf.mxu0
  %1079 = vmatprep.mubr.bf16.mxu0 %v473
  %1080 = vmatmul.mubr.bf16.gmra.mxu0 %v472
  %v1081 = vpop.f32.mrf.mxu0
  %v1082 = vadd.f32 0.0, %v1081
  %v1083 = vpop.f32.mrf.mxu0
  %v1084 = vpop.f32.mrf.mxu0
  %v1085 = vadd.f32 0.0, %v1084
  %v1086 = vpop.f32.mrf.mxu0
  %1087 = vmatprep.mubr.bf16.mxu0 %v482
  %1088 = vmatmul.mubr.bf16.gmra.mxu0 %v481
  %v1089 = vpop.f32.mrf.mxu0
  %v1090 = vadd.f32 0.0, %v1089
  %v1091 = vpop.f32.mrf.mxu0
  %v1092 = vpop.f32.mrf.mxu0
  %v1093 = vadd.f32 0.0, %v1092
  %v1094 = vpop.f32.mrf.mxu0
  %1095 = vmatprep.mubr.bf16.mxu0 %v491
  %1096 = vmatmul.mubr.bf16.gmra.mxu0 %v490
  %v1097 = vpop.f32.mrf.mxu0
  %v1098 = vadd.f32 0.0, %v1097
  %v1099 = vpop.f32.mrf.mxu0
  %v1100 = vpop.f32.mrf.mxu0
  %v1101 = vadd.f32 0.0, %v1100
  %v1102 = vpop.f32.mrf.mxu0
  %1103 = vmatprep.mubr.bf16.mxu0 %v500
  %1104 = vmatmul.mubr.bf16.gmra.mxu0 %v499
  %v1105 = vpop.f32.mrf.mxu0
  %v1106 = vadd.f32 0.0, %v1105
  %v1107 = vpop.f32.mrf.mxu0
  %v1108 = vpop.f32.mrf.mxu0
  %v1109 = vadd.f32 0.0, %v1108
  %v1110 = vpop.f32.mrf.mxu0
  %1111 = vmatprep.mubr.bf16.mxu0 %v509
  %1112 = vmatmul.mubr.bf16.gmra.mxu0 %v508
  %v1113 = vpop.f32.mrf.mxu0
  %v1114 = vadd.f32 0.0, %v1113
  %v1115 = vpop.f32.mrf.mxu0
  %v1116 = vpop.f32.mrf.mxu0
  %v1117 = vadd.f32 0.0, %v1116
  %v1118 = vpop.f32.mrf.mxu0
  %1119 = vmatprep.mubr.bf16.mxu0 %v518
  %1120 = vmatmul.mubr.bf16.gmra.mxu0 %v517
  %v1121 = vpop.f32.mrf.mxu0
  %v1122 = vadd.f32 0.0, %v1121
  %v1123 = vpop.f32.mrf.mxu0
  %v1124 = vpop.f32.mrf.mxu0
  %v1125 = vadd.f32 0.0, %v1124
  %v1126 = vpop.f32.mrf.mxu0
  %1127 = vmatprep.mubr.bf16.mxu0 %v527
  %1128 = vmatmul.mubr.bf16.gmra.mxu0 %v526
  %v1129 = vpop.f32.mrf.mxu0
  %v1130 = vadd.f32 0.0, %v1129
  %v1131 = vpop.f32.mrf.mxu0
  %v1132 = vpop.f32.mrf.mxu0
  %v1133 = vadd.f32 0.0, %v1132
  %v1134 = vpop.f32.mrf.mxu0
  %1135 = vdwg.mxu0
  %1136 = vmatprep.subr.bf16.mxu0 0
  %1137 = vmatpush1.bf16.msra.mxu0 %v918
  %1138 = vmatprep.subr.bf16.mxu0 0
  %1139 = vmatpush1.bf16.msra.mxu0 %v917
  %1140 = vmatprep.subr.bf16.mxu0 0
  %1141 = vmatpush1.bf16.msra.mxu0 %v916
  %1142 = vmatprep.subr.bf16.mxu0 0
  %1143 = vmatpush1.bf16.msra.mxu0 %v915
  %1144 = vmatprep.subr.bf16.mxu0 0
  %1145 = vmatpush1.bf16.msra.mxu0 %v914
  %1146 = vmatprep.subr.bf16.mxu0 0
  %1147 = vmatpush1.bf16.msra.mxu0 %v913
  %1148 = vmatprep.subr.bf16.mxu0 0
  %1149 = vmatpush1.bf16.msra.mxu0 %v912
  %1150 = vmatprep.subr.bf16.mxu0 0
  %1151 = vmatpush1.bf16.msra.mxu0 %v911
  %1152 = vmatprep.subr.bf16.mxu0 0
  %1153 = vmatpush2.bf16.msra.mxu0 %v926
  %1154 = vmatprep.subr.bf16.mxu0 0
  %1155 = vmatpush2.bf16.msra.mxu0 %v925
  %1156 = vmatprep.subr.bf16.mxu0 0
  %1157 = vmatpush2.bf16.msra.mxu0 %v924
  %1158 = vmatprep.subr.bf16.mxu0 0
  %1159 = vmatpush2.bf16.msra.mxu0 %v923
  %1160 = vmatprep.subr.bf16.mxu0 0
  %1161 = vmatpush2.bf16.msra.mxu0 %v922
  %1162 = vmatprep.subr.bf16.mxu0 0
  %1163 = vmatpush2.bf16.msra.mxu0 %v921
  %1164 = vmatprep.subr.bf16.mxu0 0
  %1165 = vmatpush2.bf16.msra.mxu0 %v920
  %1166 = vmatprep.subr.bf16.mxu0 0
  %1167 = vmatpush2.bf16.msra.mxu0 %v919
  %1168 = vmatprep.mubr.bf16.mxu0 %v466
  %1169 = vmatmul.mubr.bf16.gmra.mxu0 %v465
  %v1170 = vpop.f32.mrf.mxu0
  %v1171 = vadd.f32 %v1074, %v1170
  %v1172 = vpop.f32.mrf.mxu0
  %v1173 = vpop.f32.mrf.mxu0
  %v1174 = vadd.f32 %v1077, %v1173
  %v1175 = vpop.f32.mrf.mxu0
  %1176 = vmatprep.mubr.bf16.mxu0 %v475
  %1177 = vmatmul.mubr.bf16.gmra.mxu0 %v474
  %v1178 = vpop.f32.mrf.mxu0
  %v1179 = vadd.f32 %v1082, %v1178
  %v1180 = vpop.f32.mrf.mxu0
  %v1181 = vpop.f32.mrf.mxu0
  %v1182 = vadd.f32 %v1085, %v1181
  %v1183 = vpop.f32.mrf.mxu0
  %1184 = vmatprep.mubr.bf16.mxu0 %v484
  %1185 = vmatmul.mubr.bf16.gmra.mxu0 %v483
  %v1186 = vpop.f32.mrf.mxu0
  %v1187 = vadd.f32 %v1090, %v1186
  %v1188 = vpop.f32.mrf.mxu0
  %v1189 = vpop.f32.mrf.mxu0
  %v1190 = vadd.f32 %v1093, %v1189
  %v1191 = vpop.f32.mrf.mxu0
  %1192 = vmatprep.mubr.bf16.mxu0 %v493
  %1193 = vmatmul.mubr.bf16.gmra.mxu0 %v492
  %v1194 = vpop.f32.mrf.mxu0
  %v1195 = vadd.f32 %v1098, %v1194
  %v1196 = vpop.f32.mrf.mxu0
  %v1197 = vpop.f32.mrf.mxu0
  %v1198 = vadd.f32 %v1101, %v1197
  %v1199 = vpop.f32.mrf.mxu0
  %1200 = vmatprep.mubr.bf16.mxu0 %v502
  %1201 = vmatmul.mubr.bf16.gmra.mxu0 %v501
  %v1202 = vpop.f32.mrf.mxu0
  %v1203 = vadd.f32 %v1106, %v1202
  %v1204 = vpop.f32.mrf.mxu0
  %v1205 = vpop.f32.mrf.mxu0
  %v1206 = vadd.f32 %v1109, %v1205
  %v1207 = vpop.f32.mrf.mxu0
  %1208 = vmatprep.mubr.bf16.mxu0 %v511
  %1209 = vmatmul.mubr.bf16.gmra.mxu0 %v510
  %v1210 = vpop.f32.mrf.mxu0
  %v1211 = vadd.f32 %v1114, %v1210
  %v1212 = vpop.f32.mrf.mxu0
  %v1213 = vpop.f32.mrf.mxu0
  %v1214 = vadd.f32 %v1117, %v1213
  %v1215 = vpop.f32.mrf.mxu0
  %1216 = vmatprep.mubr.bf16.mxu0 %v520
  %1217 = vmatmul.mubr.bf16.gmra.mxu0 %v519
  %v1218 = vpop.f32.mrf.mxu0
  %v1219 = vadd.f32 %v1122, %v1218
  %v1220 = vpop.f32.mrf.mxu0
  %v1221 = vpop.f32.mrf.mxu0
  %v1222 = vadd.f32 %v1125, %v1221
  %v1223 = vpop.f32.mrf.mxu0
  %1224 = vmatprep.mubr.bf16.mxu0 %v529
  %1225 = vmatmul.mubr.bf16.gmra.mxu0 %v528
  %v1226 = vpop.f32.mrf.mxu0
  %v1227 = vadd.f32 %v1130, %v1226
  %v1228 = vpop.f32.mrf.mxu0
  %v1229 = vpop.f32.mrf.mxu0
  %v1230 = vadd.f32 %v1133, %v1229
  %v1231 = vpop.f32.mrf.mxu0
  %1232 = vdwg.mxu0
  %1233 = vmatprep.subr.bf16.mxu0 0
  %1234 = vmatpush1.bf16.msra.mxu0 %v934
  %1235 = vmatprep.subr.bf16.mxu0 0
  %1236 = vmatpush1.bf16.msra.mxu0 %v933
  %1237 = vmatprep.subr.bf16.mxu0 0
  %1238 = vmatpush1.bf16.msra.mxu0 %v932
  %1239 = vmatprep.subr.bf16.mxu0 0
  %1240 = vmatpush1.bf16.msra.mxu0 %v931
  %1241 = vmatprep.subr.bf16.mxu0 0
  %1242 = vmatpush1.bf16.msra.mxu0 %v930
  %1243 = vmatprep.subr.bf16.mxu0 0
  %1244 = vmatpush1.bf16.msra.mxu0 %v929
  %1245 = vmatprep.subr.bf16.mxu0 0
  %1246 = vmatpush1.bf16.msra.mxu0 %v928
  %1247 = vmatprep.subr.bf16.mxu0 0
  %1248 = vmatpush1.bf16.msra.mxu0 %v927
  %1249 = vmatprep.subr.bf16.mxu0 0
  %1250 = vmatpush2.bf16.msra.mxu0 %v942
  %1251 = vmatprep.subr.bf16.mxu0 0
  %1252 = vmatpush2.bf16.msra.mxu0 %v941
  %1253 = vmatprep.subr.bf16.mxu0 0
  %1254 = vmatpush2.bf16.msra.mxu0 %v940
  %1255 = vmatprep.subr.bf16.mxu0 0
  %1256 = vmatpush2.bf16.msra.mxu0 %v939
  %1257 = vmatprep.subr.bf16.mxu0 0
  %1258 = vmatpush2.bf16.msra.mxu0 %v938
  %1259 = vmatprep.subr.bf16.mxu0 0
  %1260 = vmatpush2.bf16.msra.mxu0 %v937
  %1261 = vmatprep.subr.bf16.mxu0 0
  %1262 = vmatpush2.bf16.msra.mxu0 %v936
  %1263 = vmatprep.subr.bf16.mxu0 0
  %1264 = vmatpush2.bf16.msra.mxu0 %v935
  %1265 = vmatprep.mubr.bf16.mxu0 %v468
  %1266 = vmatmul.mubr.bf16.gmra.mxu0 %v467
  %v1267 = vpop.f32.mrf.mxu0
  %v1268 = vadd.f32 %v1171, %v1267
  %v1269 = vpop.f32.mrf.mxu0
  %v1270 = vpop.f32.mrf.mxu0
  %v1271 = vadd.f32 %v1174, %v1270
  %v1272 = vpop.f32.mrf.mxu0
  %1273 = vmatprep.mubr.bf16.mxu0 %v477
  %1274 = vmatmul.mubr.bf16.gmra.mxu0 %v476
  %v1275 = vpop.f32.mrf.mxu0
  %v1276 = vadd.f32 %v1179, %v1275
  %v1277 = vpop.f32.mrf.mxu0
  %v1278 = vpop.f32.mrf.mxu0
  %v1279 = vadd.f32 %v1182, %v1278
  %v1280 = vpop.f32.mrf.mxu0
  %1281 = vmatprep.mubr.bf16.mxu0 %v486
  %1282 = vmatmul.mubr.bf16.gmra.mxu0 %v485
  %v1283 = vpop.f32.mrf.mxu0
  %v1284 = vadd.f32 %v1187, %v1283
  %v1285 = vpop.f32.mrf.mxu0
  %v1286 = vpop.f32.mrf.mxu0
  %v1287 = vadd.f32 %v1190, %v1286
  %v1288 = vpop.f32.mrf.mxu0
  %1289 = vmatprep.mubr.bf16.mxu0 %v495
  %1290 = vmatmul.mubr.bf16.gmra.mxu0 %v494
  %v1291 = vpop.f32.mrf.mxu0
  %v1292 = vadd.f32 %v1195, %v1291
  %v1293 = vpop.f32.mrf.mxu0
  %v1294 = vpop.f32.mrf.mxu0
  %v1295 = vadd.f32 %v1198, %v1294
  %v1296 = vpop.f32.mrf.mxu0
  %1297 = vmatprep.mubr.bf16.mxu0 %v504
  %1298 = vmatmul.mubr.bf16.gmra.mxu0 %v503
  %v1299 = vpop.f32.mrf.mxu0
  %v1300 = vadd.f32 %v1203, %v1299
  %v1301 = vpop.f32.mrf.mxu0
  %v1302 = vpop.f32.mrf.mxu0
  %v1303 = vadd.f32 %v1206, %v1302
  %v1304 = vpop.f32.mrf.mxu0
  %1305 = vmatprep.mubr.bf16.mxu0 %v513
  %1306 = vmatmul.mubr.bf16.gmra.mxu0 %v512
  %v1307 = vpop.f32.mrf.mxu0
  %v1308 = vadd.f32 %v1211, %v1307
  %v1309 = vpop.f32.mrf.mxu0
  %v1310 = vpop.f32.mrf.mxu0
  %v1311 = vadd.f32 %v1214, %v1310
  %v1312 = vpop.f32.mrf.mxu0
  %1313 = vmatprep.mubr.bf16.mxu0 %v522
  %1314 = vmatmul.mubr.bf16.gmra.mxu0 %v521
  %v1315 = vpop.f32.mrf.mxu0
  %v1316 = vadd.f32 %v1219, %v1315
  %v1317 = vpop.f32.mrf.mxu0
  %v1318 = vpop.f32.mrf.mxu0
  %v1319 = vadd.f32 %v1222, %v1318
  %v1320 = vpop.f32.mrf.mxu0
  %1321 = vmatprep.mubr.bf16.mxu0 %v531
  %1322 = vmatmul.mubr.bf16.gmra.mxu0 %v530
  %v1323 = vpop.f32.mrf.mxu0
  %v1324 = vadd.f32 %v1227, %v1323
  %v1325 = vpop.f32.mrf.mxu0
  %v1326 = vpop.f32.mrf.mxu0
  %v1327 = vadd.f32 %v1230, %v1326
  %v1328 = vpop.f32.mrf.mxu0
  %1329 = vdwg.mxu0
  %1330 = vmatprep.subr.bf16.mxu0 0
  %1331 = vmatpush1.bf16.msra.mxu0 %v950
  %1332 = vmatprep.subr.bf16.mxu0 0
  %1333 = vmatpush1.bf16.msra.mxu0 %v949
  %1334 = vmatprep.subr.bf16.mxu0 0
  %1335 = vmatpush1.bf16.msra.mxu0 %v948
  %1336 = vmatprep.subr.bf16.mxu0 0
  %1337 = vmatpush1.bf16.msra.mxu0 %v947
  %1338 = vmatprep.subr.bf16.mxu0 0
  %1339 = vmatpush1.bf16.msra.mxu0 %v946
  %1340 = vmatprep.subr.bf16.mxu0 0
  %1341 = vmatpush1.bf16.msra.mxu0 %v945
  %1342 = vmatprep.subr.bf16.mxu0 0
  %1343 = vmatpush1.bf16.msra.mxu0 %v944
  %1344 = vmatprep.subr.bf16.mxu0 0
  %1345 = vmatpush1.bf16.msra.mxu0 %v943
  %1346 = vmatprep.subr.bf16.mxu0 0
  %1347 = vmatpush2.bf16.msra.mxu0 %v958
  %1348 = vmatprep.subr.bf16.mxu0 0
  %1349 = vmatpush2.bf16.msra.mxu0 %v957
  %1350 = vmatprep.subr.bf16.mxu0 0
  %1351 = vmatpush2.bf16.msra.mxu0 %v956
  %1352 = vmatprep.subr.bf16.mxu0 0
  %1353 = vmatpush2.bf16.msra.mxu0 %v955
  %1354 = vmatprep.subr.bf16.mxu0 0
  %1355 = vmatpush2.bf16.msra.mxu0 %v954
  %1356 = vmatprep.subr.bf16.mxu0 0
  %1357 = vmatpush2.bf16.msra.mxu0 %v953
  %1358 = vmatprep.subr.bf16.mxu0 0
  %1359 = vmatpush2.bf16.msra.mxu0 %v952
  %1360 = vmatprep.subr.bf16.mxu0 0
  %1361 = vmatpush2.bf16.msra.mxu0 %v951
  %1362 = vmatprep.mubr.bf16.mxu0 %v470
  %1363 = vmatmul.mubr.bf16.gmra.mxu0 %v469
  %v1364 = vpop.f32.mrf.mxu0
  %v1365 = vadd.f32 %v1268, %v1364
  %v1366 = vpop.f32.mrf.mxu0
  %v1367 = vpop.f32.mrf.mxu0
  %v1368 = vadd.f32 %v1271, %v1367
  %v1369 = vpop.f32.mrf.mxu0
  %1370 = vmatprep.mubr.bf16.mxu0 %v479
  %1371 = vmatmul.mubr.bf16.gmra.mxu0 %v478
  %v1372 = vpop.f32.mrf.mxu0
  %v1373 = vadd.f32 %v1276, %v1372
  %v1374 = vpop.f32.mrf.mxu0
  %v1375 = vpop.f32.mrf.mxu0
  %v1376 = vadd.f32 %v1279, %v1375
  %v1377 = vpop.f32.mrf.mxu0
  %1378 = vmatprep.mubr.bf16.mxu0 %v488
  %1379 = vmatmul.mubr.bf16.gmra.mxu0 %v487
  %v1380 = vpop.f32.mrf.mxu0
  %v1381 = vadd.f32 %v1284, %v1380
  %v1382 = vpop.f32.mrf.mxu0
  %v1383 = vpop.f32.mrf.mxu0
  %v1384 = vadd.f32 %v1287, %v1383
  %v1385 = vpop.f32.mrf.mxu0
  %1386 = vmatprep.mubr.bf16.mxu0 %v497
  %1387 = vmatmul.mubr.bf16.gmra.mxu0 %v496
  %v1388 = vpop.f32.mrf.mxu0
  %v1389 = vadd.f32 %v1292, %v1388
  %v1390 = vpop.f32.mrf.mxu0
  %v1391 = vpop.f32.mrf.mxu0
  %v1392 = vadd.f32 %v1295, %v1391
  %v1393 = vpop.f32.mrf.mxu0
  %1394 = vmatprep.mubr.bf16.mxu0 %v506
  %1395 = vmatmul.mubr.bf16.gmra.mxu0 %v505
  %v1396 = vpop.f32.mrf.mxu0
  %v1397 = vadd.f32 %v1300, %v1396
  %v1398 = vpop.f32.mrf.mxu0
  %v1399 = vpop.f32.mrf.mxu0
  %v1400 = vadd.f32 %v1303, %v1399
  %v1401 = vpop.f32.mrf.mxu0
  %1402 = vmatprep.mubr.bf16.mxu0 %v515
  %1403 = vmatmul.mubr.bf16.gmra.mxu0 %v514
  %v1404 = vpop.f32.mrf.mxu0
  %v1405 = vadd.f32 %v1308, %v1404
  %v1406 = vpop.f32.mrf.mxu0
  %v1407 = vpop.f32.mrf.mxu0
  %v1408 = vadd.f32 %v1311, %v1407
  %v1409 = vpop.f32.mrf.mxu0
  %1410 = vmatprep.mubr.bf16.mxu0 %v524
  %1411 = vmatmul.mubr.bf16.gmra.mxu0 %v523
  %v1412 = vpop.f32.mrf.mxu0
  %v1413 = vadd.f32 %v1316, %v1412
  %v1414 = vpop.f32.mrf.mxu0
  %v1415 = vpop.f32.mrf.mxu0
  %v1416 = vadd.f32 %v1319, %v1415
  %v1417 = vpop.f32.mrf.mxu0
  %1418 = vmatprep.mubr.bf16.mxu0 %v533
  %1419 = vmatmul.mubr.bf16.gmra.mxu0 %v532
  %v1420 = vpop.f32.mrf.mxu0
  %v1421 = vadd.f32 %v1324, %v1420
  %v1422 = vpop.f32.mrf.mxu0
  %v1423 = vpop.f32.mrf.mxu0
  %v1424 = vadd.f32 %v1327, %v1423
  %v1425 = vpop.f32.mrf.mxu0
  %1426 = vdwg.mxu0
  %1427 = vmatprep.subr.bf16.mxu0 0
  %1428 = vmatpush1.bf16.msra.mxu0 %v966
  %1429 = vmatprep.subr.bf16.mxu0 0
  %1430 = vmatpush1.bf16.msra.mxu0 %v965
  %1431 = vmatprep.subr.bf16.mxu0 0
  %1432 = vmatpush1.bf16.msra.mxu0 %v964
  %1433 = vmatprep.subr.bf16.mxu0 0
  %1434 = vmatpush1.bf16.msra.mxu0 %v963
  %1435 = vmatprep.subr.bf16.mxu0 0
  %1436 = vmatpush1.bf16.msra.mxu0 %v962
  %1437 = vmatprep.subr.bf16.mxu0 0
  %1438 = vmatpush1.bf16.msra.mxu0 %v961
  %1439 = vmatprep.subr.bf16.mxu0 0
  %1440 = vmatpush1.bf16.msra.mxu0 %v960
  %1441 = vmatprep.subr.bf16.mxu0 0
  %1442 = vmatpush1.bf16.msra.mxu0 %v959
  %1443 = vmatprep.subr.bf16.mxu0 0
  %1444 = vmatpush2.bf16.msra.mxu0 0
  %1445 = vmatprep.subr.bf16.mxu0 0
  %1446 = vmatpush2.bf16.msra.mxu0 0
  %1447 = vmatprep.subr.bf16.mxu0 0
  %1448 = vmatpush2.bf16.msra.mxu0 0
  %1449 = vmatprep.subr.bf16.mxu0 0
  %1450 = vmatpush2.bf16.msra.mxu0 0
  %1451 = vmatprep.subr.bf16.mxu0 0
  %1452 = vmatpush2.bf16.msra.mxu0 0
  %1453 = vmatprep.subr.bf16.mxu0 0
  %1454 = vmatpush2.bf16.msra.mxu0 0
  %1455 = vmatprep.subr.bf16.mxu0 0
  %1456 = vmatpush2.bf16.msra.mxu0 0
  %1457 = vmatprep.subr.bf16.mxu0 0
  %1458 = vmatpush2.bf16.msra.mxu0 0
  %1459 = vmatprep.mubr.bf16.mxu0 0
  %1460 = vmatmul.mubr.bf16.gmra.mxu0 %v471
  %v1461 = vpop.f32.mrf.mxu0
  %v1462 = vadd.f32 %v1365, %v1461
  %v1463 = vpop.f32.mrf.mxu0
  %v1464 = vpop.f32.mrf.mxu0
  %v1465 = vadd.f32 %v1368, %v1464
  %v1466 = vpop.f32.mrf.mxu0
  %1467 = vmatprep.mubr.bf16.mxu0 0
  %1468 = vmatmul.mubr.bf16.gmra.mxu0 %v480
  %v1469 = vpop.f32.mrf.mxu0
  %v1470 = vadd.f32 %v1373, %v1469
  %v1471 = vpop.f32.mrf.mxu0
  %v1472 = vpop.f32.mrf.mxu0
  %v1473 = vadd.f32 %v1376, %v1472
  %v1474 = vpop.f32.mrf.mxu0
  %1475 = vmatprep.mubr.bf16.mxu0 0
  %1476 = vmatmul.mubr.bf16.gmra.mxu0 %v489
  %v1477 = vpop.f32.mrf.mxu0
  %v1478 = vadd.f32 %v1381, %v1477
  %v1479 = vpop.f32.mrf.mxu0
  %v1480 = vpop.f32.mrf.mxu0
  %v1481 = vadd.f32 %v1384, %v1480
  %v1482 = vpop.f32.mrf.mxu0
  %1483 = vmatprep.mubr.bf16.mxu0 0
  %1484 = vmatmul.mubr.bf16.gmra.mxu0 %v498
  %v1485 = vpop.f32.mrf.mxu0
  %v1486 = vadd.f32 %v1389, %v1485
  %v1487 = vpop.f32.mrf.mxu0
  %v1488 = vpop.f32.mrf.mxu0
  %v1489 = vadd.f32 %v1392, %v1488
  %v1490 = vpop.f32.mrf.mxu0
  %1491 = vmatprep.mubr.bf16.mxu0 0
  %1492 = vmatmul.mubr.bf16.gmra.mxu0 %v507
  %v1493 = vpop.f32.mrf.mxu0
  %v1494 = vadd.f32 %v1397, %v1493
  %v1495 = vpop.f32.mrf.mxu0
  %v1496 = vpop.f32.mrf.mxu0
  %v1497 = vadd.f32 %v1400, %v1496
  %v1498 = vpop.f32.mrf.mxu0
  %1499 = vmatprep.mubr.bf16.mxu0 0
  %1500 = vmatmul.mubr.bf16.gmra.mxu0 %v516
  %v1501 = vpop.f32.mrf.mxu0
  %v1502 = vadd.f32 %v1405, %v1501
  %v1503 = vpop.f32.mrf.mxu0
  %v1504 = vpop.f32.mrf.mxu0
  %v1505 = vadd.f32 %v1408, %v1504
  %v1506 = vpop.f32.mrf.mxu0
  %1507 = vmatprep.mubr.bf16.mxu0 0
  %1508 = vmatmul.mubr.bf16.gmra.mxu0 %v525
  %v1509 = vpop.f32.mrf.mxu0
  %v1510 = vadd.f32 %v1413, %v1509
  %v1511 = vpop.f32.mrf.mxu0
  %v1512 = vpop.f32.mrf.mxu0
  %v1513 = vadd.f32 %v1416, %v1512
  %v1514 = vpop.f32.mrf.mxu0
  %1515 = vmatprep.mubr.bf16.mxu0 0
  %1516 = vmatmul.mubr.bf16.gmra.mxu0 %v534
  %v1517 = vpop.f32.mrf.mxu0
  %v1518 = vadd.f32 %v1421, %v1517
  %v1519 = vpop.f32.mrf.mxu0
  %v1520 = vpop.f32.mrf.mxu0
  %v1521 = vadd.f32 %v1424, %v1520
  %v1522 = vpop.f32.mrf.mxu0
  %1523 = vdwg.mxu0
  %1524 = vst [vmem:[%s2] sm:$0xff] %v1462
  %1525 = vst [vmem:[%s2 + $0x8] sm:$0xff] %v1465
  %1526 = vst [vmem:[%s2 + $0x10] sm:$0xff] %v1470
  %1527 = vst [vmem:[%s2 + $0x18] sm:$0xff] %v1473
  %1528 = vst [vmem:[%s2 + $0x20] sm:$0xff] %v1478
  %1529 = vst [vmem:[%s2 + $0x28] sm:$0xff] %v1481
  %1530 = vst [vmem:[%s2 + $0x30] sm:$0xff] %v1486
  %1531 = vst [vmem:[%s2 + $0x38] sm:$0xff] %v1489
  %1532 = vst [vmem:[%s2 + $0x40] sm:$0xff] %v1494
  %1533 = vst [vmem:[%s2 + $0x48] sm:$0xff] %v1497
  %1534 = vst [vmem:[%s2 + $0x50] sm:$0xff] %v1502
  %1535 = vst [vmem:[%s2 + $0x58] sm:$0xff] %v1505
  %1536 = vst [vmem:[%s2 + $0x60] sm:$0xff] %v1510
  %1537 = vst [vmem:[%s2 + $0x68] sm:$0xff] %v1513
  %1538 = vst [vmem:[%s2 + $0x70] sm:$0xff] %v1518
  %1539 = vst [vmem:[%s2 + $0x78] sm:$0xff] %v1521
  %p1540 = scmp.eq.s32.totalorder 0, 0
  // Predicated region
  $region10: #{bottleneck_forward.8} parent=0 // pred_check
    %p1541 = pneg %p1540
  $region11: #{bottleneck_forward.8} parent=0 // pred_check_branch
    %1543 = sbr.rel (%p1541) target = $region13
  $region12: #{bottleneck_forward.8} parent=0 // pred_region
    %1544 = vst [vmem:[%s3] sm:$0x1] 0.0
    %1545 = vst [vmem:[%s4] sm:$0x1] 0.0
  $region13: #{bottleneck_forward.8} parent=0 // pred_fallthru
    _
  %v1546 = vld [vmem:[%s3] sm:$0x1]
  %v1547 = vadd.f32 %v1462, %v1465
  %v1548 = vadd.f32 %v1547, %v1470
  %v1549 = vadd.f32 %v1548, %v1473
  %v1550 = vadd.f32 %v1549, %v1478
  %v1551 = vadd.f32 %v1550, %v1481
  %v1552 = vadd.f32 %v1551, %v1486
  %v1553 = vadd.f32 %v1552, %v1489
  %v1554 = vadd.f32 %v1553, %v1494
  %v1555 = vadd.f32 %v1554, %v1497
  %v1556 = vadd.f32 %v1555, %v1502
  %v1557 = vadd.f32 %v1556, %v1505
  %v1558 = vadd.f32 %v1557, %v1510
  %v1559 = vadd.f32 %v1558, %v1513
  %v1560 = vadd.f32 %v1559, %v1518
  %v1561 = vadd.f32 %v1560, %v1521
  %v1562 = vrot.slane %v1561, 4
  %v1563 = vadd.f32 %v1561, %v1562
  %v1564 = vrot.slane %v1563, 2
  %v1565 = vadd.f32 %v1563, %v1564
  %v1566 = vrot.slane %v1565, 1
  %v1567 = vadd.f32 %v1565, %v1566
  %v1568 = vadd.f32 %v1546, %v1567
  %1569 = vst [vmem:[%s3] sm:$0x1] %v1568
  %v1570 = vld [vmem:[%s4] sm:$0x1]
  %v1571 = vmul.f32 %v1462, %v1462
  %v1572 = vmul.f32 %v1465, %v1465
  %v1573 = vmul.f32 %v1470, %v1470
  %v1574 = vmul.f32 %v1473, %v1473
  %v1575 = vmul.f32 %v1478, %v1478
  %v1576 = vmul.f32 %v1481, %v1481
  %v1577 = vmul.f32 %v1486, %v1486
  %v1578 = vmul.f32 %v1489, %v1489
  %v1579 = vmul.f32 %v1494, %v1494
  %v1580 = vmul.f32 %v1497, %v1497
  %v1581 = vmul.f32 %v1502, %v1502
  %v1582 = vmul.f32 %v1505, %v1505
  %v1583 = vmul.f32 %v1510, %v1510
  %v1584 = vmul.f32 %v1513, %v1513
  %v1585 = vmul.f32 %v1518, %v1518
  %v1586 = vmul.f32 %v1521, %v1521
  %v1587 = vadd.f32 %v1571, %v1572
  %v1588 = vadd.f32 %v1587, %v1573
  %v1589 = vadd.f32 %v1588, %v1574
  %v1590 = vadd.f32 %v1589, %v1575
  %v1591 = vadd.f32 %v1590, %v1576
  %v1592 = vadd.f32 %v1591, %v1577
  %v1593 = vadd.f32 %v1592, %v1578
  %v1594 = vadd.f32 %v1593, %v1579
  %v1595 = vadd.f32 %v1594, %v1580
  %v1596 = vadd.f32 %v1595, %v1581
  %v1597 = vadd.f32 %v1596, %v1582
  %v1598 = vadd.f32 %v1597, %v1583
  %v1599 = vadd.f32 %v1598, %v1584
  %v1600 = vadd.f32 %v1599, %v1585
  %v1601 = vadd.f32 %v1600, %v1586
  %v1602 = vrot.slane %v1601, 4
  %v1603 = vadd.f32 %v1601, %v1602
  %v1604 = vrot.slane %v1603, 2
  %v1605 = vadd.f32 %v1603, %v1604
  %v1606 = vrot.slane %v1605, 1
  %v1607 = vadd.f32 %v1605, %v1606
  %v1608 = vadd.f32 %v1570, %v1607
  %1609 = vst [vmem:[%s4] sm:$0x1] %v1608
  // Predicated region
  $region14: #{bottleneck_forward.8} parent=0 // pred_check
    _
  $region15: #{bottleneck_forward.8} parent=0 // pred_check_branch
    %1611 = sbr.rel (0) target = $region17
  $region16: #{bottleneck_forward.8} parent=0 // pred_region
    _
  $region17: #{bottleneck_forward.8} parent=0 // pred_fallthru
    _
  // Predicated region
  $region18: #{bottleneck_forward.8} parent=0 // pred_check
    _
  $region19: #{bottleneck_forward.8} parent=0 // pred_check_branch
    %1613 = sbr.rel (0) target = $region21
  $region20: #{bottleneck_forward.8} parent=0 // pred_region
    _
  $region21: #{bottleneck_forward.8} parent=0 // pred_fallthru
    _
  // Predicated region
  $region22: #{bottleneck_forward.8} parent=0 // pred_check
    _
  $region23: #{bottleneck_forward.8} parent=0 // pred_check_branch
    %1615 = sbr.rel (0) target = $region25
  $region24: #{bottleneck_forward.8} parent=0 // pred_region
    _
  $region25: #{bottleneck_forward.8} parent=0 // pred_fallthru
    _
  // Predicated region
  $region26: #{bottleneck_forward.8} parent=0 // pred_check
    _
  $region27: #{bottleneck_forward.8} parent=0 // pred_check_branch
    %1617 = sbr.rel (0) target = $region29
  $region28: #{bottleneck_forward.8} parent=0 // pred_region
    _
  $region29: #{bottleneck_forward.8} parent=0 // pred_fallthru
    _
  // Predicated region
  $region30: #{bottleneck_forward.8} parent=0 // pred_check
    _
  $region31: #{bottleneck_forward.8} parent=0 // pred_check_branch
    %1619 = sbr.rel (0) target = $region33
  $region32: #{bottleneck_forward.8} parent=0 // pred_region
    _
  $region33: #{bottleneck_forward.8} parent=0 // pred_fallthru
    _
  // Predicated region
  $region34: #{bottleneck_forward.8} parent=0 // pred_check
    _
  $region35: #{bottleneck_forward.8} parent=0 // pred_check_branch
    %1621 = sbr.rel (0) target = $region37
  $region36: #{bottleneck_forward.8} parent=0 // pred_region
    _
  $region37: #{bottleneck_forward.8} parent=0 // pred_fallthru
    _

// kernel: bottleneck_forward.9
$region0: #{bottleneck_forward.9}
  #allocation0 [shape = 'u32[]', space=smem, size = 0x4, offset = 0x4, fixed_abs, tag = 'smem constant byte address 0x4 - core index']
  #allocation1 [shape = 'u32[144,128]{1,0:T(1,128)}', space=vmem, size = 0x12000, scoped, tag = 'internal scratch']
  %s0 = inlined_call_operand.vmem [shape: bf16[128,128], index: 0, kind: input, shape index: {}]
  %s1 = inlined_call_operand.vmem [shape: bf16[128,128], index: 1, kind: input, shape index: {}]
  %s2 = inlined_call_operand.vmem [shape: f32[128,128], index: 2, kind: output, shape index: {0}]
  %s3 = inlined_call_operand.vmem [shape: f32[1,128], index: 3, kind: output, shape index: {1}]
  %s4 = inlined_call_operand.vmem [shape: f32[1,128], index: 4, kind: output, shape index: {2}]
  %5 = xla_tuple %s2, %s3, %s4
  %s6 = sld [smem:[#allocation0]]
  $region38: #{bottleneck_forward.9} parent=0
    _
  %s8 = ssub.s32 1, %s6
  %s9 = scalar_select 0, %s8, %s6
  // Predicated region
  $region2: #{bottleneck_forward.9} parent=0 // pred_check
    _
  $region3: #{bottleneck_forward.9} parent=0 // pred_check_branch
    %11 = sbr.rel (0) target = $region5
  $region4: #{bottleneck_forward.9} parent=0 // pred_region
    _
  $region5: #{bottleneck_forward.9} parent=0 // pred_fallthru
    _
  // Predicated region
  $region6: #{bottleneck_forward.9} parent=0 // pred_check
    _
  $region7: #{bottleneck_forward.9} parent=0 // pred_check_branch
    %13 = sbr.rel (0) target = $region9
  $region8: #{bottleneck_forward.9} parent=0 // pred_region
    _
  $region9: #{bottleneck_forward.9} parent=0 // pred_fallthru
    _
  %v15 = vld [vmem:[%s0] sm:$0xf]
  %v16 = vld [vmem:[%s0 + $0x4] sm:$0xf]
  %v17 = vld [vmem:[%s0 + $0x8] sm:$0xf]
  %v18 = vld [vmem:[%s0 + $0xc] sm:$0xf]
  %v19 = vld [vmem:[%s0 + $0x10] sm:$0xf]
  %v20 = vld [vmem:[%s0 + $0x14] sm:$0xf]
  %v21 = vld [vmem:[%s0 + $0x18] sm:$0xf]
  %v22 = vld [vmem:[%s0 + $0x1c] sm:$0xf]
  %v23 = vld [vmem:[%s0 + $0x20] sm:$0xf]
  %v24 = vld [vmem:[%s0 + $0x24] sm:$0xf]
  %v25 = vld [vmem:[%s0 + $0x28] sm:$0xf]
  %v26 = vld [vmem:[%s0 + $0x2c] sm:$0xf]
  %v27 = vld [vmem:[%s0 + $0x30] sm:$0xf]
  %v28 = vld [vmem:[%s0 + $0x34] sm:$0xf]
  %v29 = vld [vmem:[%s0 + $0x38] sm:$0xf]
  %v30 = vld [vmem:[%s0 + $0x3c] sm:$0xf]
  %v31 = vld [vmem:[%s1] sm:$0xf]
  %v32 = vld [vmem:[%s1 + $0x4] sm:$0xf]
  %v33 = vld [vmem:[%s1 + $0x8] sm:$0xf]
  %v34 = vld [vmem:[%s1 + $0xc] sm:$0xf]
  %v35 = vld [vmem:[%s1 + $0x10] sm:$0xf]
  %v36 = vld [vmem:[%s1 + $0x14] sm:$0xf]
  %v37 = vld [vmem:[%s1 + $0x18] sm:$0xf]
  %v38 = vld [vmem:[%s1 + $0x1c] sm:$0xf]
  %v39 = vld [vmem:[%s1 + $0x20] sm:$0xf]
  %v40 = vld [vmem:[%s1 + $0x24] sm:$0xf]
  %v41 = vld [vmem:[%s1 + $0x28] sm:$0xf]
  %v42 = vld [vmem:[%s1 + $0x2c] sm:$0xf]
  %v43 = vld [vmem:[%s1 + $0x30] sm:$0xf]
  %v44 = vld [vmem:[%s1 + $0x34] sm:$0xf]
  %v45 = vld [vmem:[%s1 + $0x38] sm:$0xf]
  %v46 = vld [vmem:[%s1 + $0x3c] sm:$0xf]
  %v63 = vunpack.c.l.b16 %v15
  %v64 = vunpack.c.l.b16 %v16
  %v65 = vunpack.c.l.b16 %v17
  %v66 = vunpack.c.l.b16 %v18
  %v67 = vunpack.c.l.b16 %v19
  %v68 = vunpack.c.l.b16 %v20
  %v69 = vunpack.c.l.b16 %v21
  %v70 = vunpack.c.l.b16 %v22
  %v71 = vunpack.c.l.b16 %v23
  %v72 = vunpack.c.l.b16 %v24
  %v73 = vunpack.c.l.b16 %v25
  %v74 = vunpack.c.l.b16 %v26
  %v75 = vunpack.c.l.b16 %v27
  %v76 = vunpack.c.l.b16 %v28
  %v77 = vunpack.c.l.b16 %v29
  %v78 = vunpack.c.l.b16 %v30
  %v79 = vpack.c.b16 %v64, %v63
  %v80 = vpack.c.b16 %v66, %v65
  %v81 = vpack.c.b16 %v68, %v67
  %v82 = vpack.c.b16 %v70, %v69
  %v83 = vpack.c.b16 %v72, %v71
  %v84 = vpack.c.b16 %v74, %v73
  %v85 = vpack.c.b16 %v76, %v75
  %v86 = vpack.c.b16 %v78, %v77
  %v111 = vunpack.c.l.b16 %v31
  %v112 = vunpack.c.l.b16 %v32
  %v113 = vunpack.c.l.b16 %v33
  %v114 = vunpack.c.l.b16 %v34
  %v115 = vunpack.c.l.b16 %v35
  %v116 = vunpack.c.l.b16 %v36
  %v117 = vunpack.c.l.b16 %v37
  %v118 = vunpack.c.l.b16 %v38
  %v119 = vunpack.c.l.b16 %v39
  %v120 = vunpack.c.l.b16 %v40
  %v121 = vunpack.c.l.b16 %v41
  %v122 = vunpack.c.l.b16 %v42
  %v123 = vunpack.c.l.b16 %v43
  %v124 = vunpack.c.l.b16 %v44
  %v125 = vunpack.c.l.b16 %v45
  %v126 = vunpack.c.l.b16 %v46
  %v127 = vpack.c.b16 %v112, %v111
  %v128 = vpack.c.b16 %v114, %v113
  %v129 = vpack.c.b16 %v116, %v115
  %v130 = vpack.c.b16 %v118, %v117
  %v131 = vpack.c.b16 %v120, %v119
  %v132 = vpack.c.b16 %v122, %v121
  %v133 = vpack.c.b16 %v124, %v123
  %v134 = vpack.c.b16 %v126, %v125
  %143 = vmatprep.subr.bf16.mxu0 0
  %144 = vmatpush1.bf16.msra.mxu0 %v134
  %145 = vmatprep.subr.bf16.mxu0 0
  %146 = vmatpush1.bf16.msra.mxu0 %v133
  %147 = vmatprep.subr.bf16.mxu0 0
  %148 = vmatpush1.bf16.msra.mxu0 %v132
  %149 = vmatprep.subr.bf16.mxu0 0
  %150 = vmatpush1.bf16.msra.mxu0 %v131
  %151 = vmatprep.subr.bf16.mxu0 0
  %152 = vmatpush1.bf16.msra.mxu0 %v130
  %153 = vmatprep.subr.bf16.mxu0 0
  %154 = vmatpush1.bf16.msra.mxu0 %v129
  %155 = vmatprep.subr.bf16.mxu0 0
  %156 = vmatpush1.bf16.msra.mxu0 %v128
  %157 = vmatprep.subr.bf16.mxu0 0
  %158 = vmatpush1.bf16.msra.mxu0 %v127
  %159 = vmatprep.subr.bf16.mxu0 0
  %160 = vmatpush2.bf16.msra.mxu0 0
  %161 = vmatprep.subr.bf16.mxu0 0
  %162 = vmatpush2.bf16.msra.mxu0 0
  %163 = vmatprep.subr.bf16.mxu0 0
  %164 = vmatpush2.bf16.msra.mxu0 0
  %165 = vmatprep.subr.bf16.mxu0 0
  %166 = vmatpush2.bf16.msra.mxu0 0
  %167 = vmatprep.subr.bf16.mxu0 0
  %168 = vmatpush2.bf16.msra.mxu0 0
  %169 = vmatprep.subr.bf16.mxu0 0
  %170 = vmatpush2.bf16.msra.mxu0 0
  %171 = vmatprep.subr.bf16.mxu0 0
  %172 = vmatpush2.bf16.msra.mxu0 0
  %173 = vmatprep.subr.bf16.mxu0 0
  %174 = vmatpush2.bf16.msra.mxu0 0
  %175 = vmatprep.mubr.bf16.mxu0 0
  %176 = vmatmul.mubr.bf16.gmra.mxu0 %v79
  %v177 = vpop.f32.mrf.mxu0
  %v178 = vadd.f32 0.0, %v177
  %v179 = vpop.f32.mrf.mxu0
  %v180 = vpop.f32.mrf.mxu0
  %v181 = vadd.f32 0.0, %v180
  %v182 = vpop.f32.mrf.mxu0
  %183 = vmatprep.mubr.bf16.mxu0 0
  %184 = vmatmul.mubr.bf16.gmra.mxu0 %v80
  %v185 = vpop.f32.mrf.mxu0
  %v186 = vadd.f32 0.0, %v185
  %v187 = vpop.f32.mrf.mxu0
  %v188 = vpop.f32.mrf.mxu0
  %v189 = vadd.f32 0.0, %v188
  %v190 = vpop.f32.mrf.mxu0
  %191 = vmatprep.mubr.bf16.mxu0 0
  %192 = vmatmul.mubr.bf16.gmra.mxu0 %v81
  %v193 = vpop.f32.mrf.mxu0
  %v194 = vadd.f32 0.0, %v193
  %v195 = vpop.f32.mrf.mxu0
  %v196 = vpop.f32.mrf.mxu0
  %v197 = vadd.f32 0.0, %v196
  %v198 = vpop.f32.mrf.mxu0
  %199 = vmatprep.mubr.bf16.mxu0 0
  %200 = vmatmul.mubr.bf16.gmra.mxu0 %v82
  %v201 = vpop.f32.mrf.mxu0
  %v202 = vadd.f32 0.0, %v201
  %v203 = vpop.f32.mrf.mxu0
  %v204 = vpop.f32.mrf.mxu0
  %v205 = vadd.f32 0.0, %v204
  %v206 = vpop.f32.mrf.mxu0
  %207 = vmatprep.mubr.bf16.mxu0 0
  %208 = vmatmul.mubr.bf16.gmra.mxu0 %v83
  %v209 = vpop.f32.mrf.mxu0
  %v210 = vadd.f32 0.0, %v209
  %v211 = vpop.f32.mrf.mxu0
  %v212 = vpop.f32.mrf.mxu0
  %v213 = vadd.f32 0.0, %v212
  %v214 = vpop.f32.mrf.mxu0
  %215 = vmatprep.mubr.bf16.mxu0 0
  %216 = vmatmul.mubr.bf16.gmra.mxu0 %v84
  %v217 = vpop.f32.mrf.mxu0
  %v218 = vadd.f32 0.0, %v217
  %v219 = vpop.f32.mrf.mxu0
  %v220 = vpop.f32.mrf.mxu0
  %v221 = vadd.f32 0.0, %v220
  %v222 = vpop.f32.mrf.mxu0
  %223 = vmatprep.mubr.bf16.mxu0 0
  %224 = vmatmul.mubr.bf16.gmra.mxu0 %v85
  %v225 = vpop.f32.mrf.mxu0
  %v226 = vadd.f32 0.0, %v225
  %v227 = vpop.f32.mrf.mxu0
  %v228 = vpop.f32.mrf.mxu0
  %v229 = vadd.f32 0.0, %v228
  %v230 = vpop.f32.mrf.mxu0
  %231 = vmatprep.mubr.bf16.mxu0 0
  %232 = vmatmul.mubr.bf16.gmra.mxu0 %v86
  %v233 = vpop.f32.mrf.mxu0
  %v234 = vadd.f32 0.0, %v233
  %v235 = vpop.f32.mrf.mxu0
  %v236 = vpop.f32.mrf.mxu0
  %v237 = vadd.f32 0.0, %v236
  %v238 = vpop.f32.mrf.mxu0
  %239 = vdwg.mxu0
  %240 = vst [vmem:[%s2] sm:$0xff] %v178
  %241 = vst [vmem:[%s2 + $0x8] sm:$0xff] %v181
  %242 = vst [vmem:[%s2 + $0x10] sm:$0xff] %v186
  %243 = vst [vmem:[%s2 + $0x18] sm:$0xff] %v189
  %244 = vst [vmem:[%s2 + $0x20] sm:$0xff] %v194
  %245 = vst [vmem:[%s2 + $0x28] sm:$0xff] %v197
  %246 = vst [vmem:[%s2 + $0x30] sm:$0xff] %v202
  %247 = vst [vmem:[%s2 + $0x38] sm:$0xff] %v205
  %248 = vst [vmem:[%s2 + $0x40] sm:$0xff] %v210
  %249 = vst [vmem:[%s2 + $0x48] sm:$0xff] %v213
  %250 = vst [vmem:[%s2 + $0x50] sm:$0xff] %v218
  %251 = vst [vmem:[%s2 + $0x58] sm:$0xff] %v221
  %252 = vst [vmem:[%s2 + $0x60] sm:$0xff] %v226
  %253 = vst [vmem:[%s2 + $0x68] sm:$0xff] %v229
  %254 = vst [vmem:[%s2 + $0x70] sm:$0xff] %v234
  %255 = vst [vmem:[%s2 + $0x78] sm:$0xff] %v237
  %p256 = scmp.eq.s32.totalorder 0, 0
  // Predicated region
  $region10: #{bottleneck_forward.9} parent=0 // pred_check
    %p257 = pneg %p256
  $region11: #{bottleneck_forward.9} parent=0 // pred_check_branch
    %259 = sbr.rel (%p257) target = $region13
  $region12: #{bottleneck_forward.9} parent=0 // pred_region
    %260 = vst [vmem:[%s3] sm:$0x1] 0.0
    %261 = vst [vmem:[%s4] sm:$0x1] 0.0
  $region13: #{bottleneck_forward.9} parent=0 // pred_fallthru
    _
  %v262 = vld [vmem:[%s3] sm:$0x1]
  %v263 = vadd.f32 %v178, %v181
  %v264 = vadd.f32 %v263, %v186
  %v265 = vadd.f32 %v264, %v189
  %v266 = vadd.f32 %v265, %v194
  %v267 = vadd.f32 %v266, %v197
  %v268 = vadd.f32 %v267, %v202
  %v269 = vadd.f32 %v268, %v205
  %v270 = vadd.f32 %v269, %v210
  %v271 = vadd.f32 %v270, %v213
  %v272 = vadd.f32 %v271, %v218
  %v273 = vadd.f32 %v272, %v221
  %v274 = vadd.f32 %v273, %v226
  %v275 = vadd.f32 %v274, %v229
  %v276 = vadd.f32 %v275, %v234
  %v277 = vadd.f32 %v276, %v237
  %v278 = vrot.slane %v277, 4
  %v279 = vadd.f32 %v277, %v278
  %v280 = vrot.slane %v279, 2
  %v281 = vadd.f32 %v279, %v280
  %v282 = vrot.slane %v281, 1
  %v283 = vadd.f32 %v281, %v282
  %v284 = vadd.f32 %v262, %v283
  %285 = vst [vmem:[%s3] sm:$0x1] %v284
  %v286 = vld [vmem:[%s4] sm:$0x1]
  %v287 = vmul.f32 %v178, %v178
  %v288 = vmul.f32 %v181, %v181
  %v289 = vmul.f32 %v186, %v186
  %v290 = vmul.f32 %v189, %v189
  %v291 = vmul.f32 %v194, %v194
  %v292 = vmul.f32 %v197, %v197
  %v293 = vmul.f32 %v202, %v202
  %v294 = vmul.f32 %v205, %v205
  %v295 = vmul.f32 %v210, %v210
  %v296 = vmul.f32 %v213, %v213
  %v297 = vmul.f32 %v218, %v218
  %v298 = vmul.f32 %v221, %v221
  %v299 = vmul.f32 %v226, %v226
  %v300 = vmul.f32 %v229, %v229
  %v301 = vmul.f32 %v234, %v234
  %v302 = vmul.f32 %v237, %v237
  %v303 = vadd.f32 %v287, %v288
  %v304 = vadd.f32 %v303, %v289
  %v305 = vadd.f32 %v304, %v290
  %v306 = vadd.f32 %v305, %v291
  %v307 = vadd.f32 %v306, %v292
  %v308 = vadd.f32 %v307, %v293
  %v309 = vadd.f32 %v308, %v294
  %v310 = vadd.f32 %v309, %v295
  %v311 = vadd.f32 %v310, %v296
  %v312 = vadd.f32 %v311, %v297
  %v313 = vadd.f32 %v312, %v298
  %v314 = vadd.f32 %v313, %v299
  %v315 = vadd.f32 %v314, %v300
  %v316 = vadd.f32 %v315, %v301
  %v317 = vadd.f32 %v316, %v302
  %v318 = vrot.slane %v317, 4
  %v319 = vadd.f32 %v317, %v318
  %v320 = vrot.slane %v319, 2
  %v321 = vadd.f32 %v319, %v320
  %v322 = vrot.slane %v321, 1
  %v323 = vadd.f32 %v321, %v322
  %v324 = vadd.f32 %v286, %v323
  %325 = vst [vmem:[%s4] sm:$0x1] %v324
  // Predicated region
  $region14: #{bottleneck_forward.9} parent=0 // pred_check
    _
  $region15: #{bottleneck_forward.9} parent=0 // pred_check_branch
    %327 = sbr.rel (0) target = $region17
  $region16: #{bottleneck_forward.9} parent=0 // pred_region
    _
  $region17: #{bottleneck_forward.9} parent=0 // pred_fallthru
    _
  // Predicated region
  $region18: #{bottleneck_forward.9} parent=0 // pred_check
    _
  $region19: #{bottleneck_forward.9} parent=0 // pred_check_branch
    %329 = sbr.rel (0) target = $region21
  $region20: #{bottleneck_forward.9} parent=0 // pred_region
    _
  $region21: #{bottleneck_forward.9} parent=0 // pred_fallthru
    _
  // Predicated region
  $region22: #{bottleneck_forward.9} parent=0 // pred_check
    _
  $region23: #{bottleneck_forward.9} parent=0 // pred_check_branch
    %331 = sbr.rel (0) target = $region25
  $region24: #{bottleneck_forward.9} parent=0 // pred_region
    _
  $region25: #{bottleneck_forward.9} parent=0 // pred_fallthru
    _
  // Predicated region
  $region26: #{bottleneck_forward.9} parent=0 // pred_check
    _
  $region27: #{bottleneck_forward.9} parent=0 // pred_check_branch
    %333 = sbr.rel (0) target = $region29
  $region28: #{bottleneck_forward.9} parent=0 // pred_region
    _
  $region29: #{bottleneck_forward.9} parent=0 // pred_fallthru
    _
  // Predicated region
  $region30: #{bottleneck_forward.9} parent=0 // pred_check
    _
  $region31: #{bottleneck_forward.9} parent=0 // pred_check_branch
    %335 = sbr.rel (0) target = $region33
  $region32: #{bottleneck_forward.9} parent=0 // pred_region
    _
  $region33: #{bottleneck_forward.9} parent=0 // pred_fallthru
    _
  // Predicated region
  $region34: #{bottleneck_forward.9} parent=0 // pred_check
    _
  $region35: #{bottleneck_forward.9} parent=0 // pred_check_branch
    %337 = sbr.rel (0) target = $region37
  $region36: #{bottleneck_forward.9} parent=0 // pred_region
    _
  $region37: #{bottleneck_forward.9} parent=0 // pred_fallthru
    _

// kernel: bottleneck_forward.11
$region0: #{bottleneck_forward.11}
  #allocation0 [shape = 'u32[]', space=smem, size = 0x4, offset = 0x4, fixed_abs, tag = 'smem constant byte address 0x4 - core index']
  #allocation1 [shape = 'u32[144,128]{1,0:T(1,128)}', space=vmem, size = 0x12000, scoped, tag = 'internal scratch']
  %s0 = inlined_call_operand.vmem [shape: f32[128,128], index: 0, kind: input, shape index: {}]
  %s1 = inlined_call_operand.vmem [shape: f32[1,128], index: 1, kind: input, shape index: {}]
  %s2 = inlined_call_operand.vmem [shape: f32[1,128], index: 2, kind: input, shape index: {}]
  %s3 = inlined_call_operand.vmem [shape: f32[128,128], index: 3, kind: input, shape index: {}]
  %s4 = inlined_call_operand.vmem [shape: f32[1,128], index: 4, kind: input, shape index: {}]
  %s5 = inlined_call_operand.vmem [shape: f32[1,128], index: 5, kind: input, shape index: {}]
  %s6 = inlined_call_operand.hbm [shape: f32[128,128], index: 6, kind: output, shape index: {}]
  %s7 = sld [smem:[#allocation0]]
  $region34: #{bottleneck_forward.11} parent=0
    _
  %s9 = ssub.s32 1, %s7
  %s10 = scalar_select 0, %s9, %s7
  $region1: #{bottleneck_forward.11} parent=0
    #allocation2 [shape = 'u8[65536]{0}', space=vmem, size = 0x10000, scoped, tag = 'output window, operand 0, single buffered']
    #allocation3 [shape = 's32[1]{0}', space=sflag, size = 0x4, scoped, tag = 'scoped memory for bottleneck_forward.11']
    %11 = vsyncpa [#allocation3], 0
    // Predicated region
    $region2: #{bottleneck_forward.11} parent=1 // pred_check
      _
    $region3: #{bottleneck_forward.11} parent=1 // pred_check_branch
      %13 = sbr.rel (0) target = $region5
    $region4: #{bottleneck_forward.11} parent=1 // pred_region
      _
    $region5: #{bottleneck_forward.11} parent=1 // pred_fallthru
      _
    // Predicated region
    $region6: #{bottleneck_forward.11} parent=1 // pred_check
      _
    $region7: #{bottleneck_forward.11} parent=1 // pred_check_branch
      %15 = sbr.rel (0) target = $region9
    $region8: #{bottleneck_forward.11} parent=1 // pred_region
      _
    $region9: #{bottleneck_forward.11} parent=1 // pred_fallthru
      _
    // Predicated region
    $region10: #{bottleneck_forward.11} parent=1 // pred_check
      _
    $region11: #{bottleneck_forward.11} parent=1 // pred_check_branch
      %17 = sbr.rel (0) target = $region13
    $region12: #{bottleneck_forward.11} parent=1 // pred_region
      _
    $region13: #{bottleneck_forward.11} parent=1 // pred_fallthru
      _
    // Predicated region
    $region14: #{bottleneck_forward.11} parent=1 // pred_check
      _
    $region15: #{bottleneck_forward.11} parent=1 // pred_check_branch
      %19 = sbr.rel (0) target = $region17
    $region16: #{bottleneck_forward.11} parent=1 // pred_region
      _
    $region17: #{bottleneck_forward.11} parent=1 // pred_fallthru
      _
    // Predicated region
    $region18: #{bottleneck_forward.11} parent=1 // pred_check
      _
    $region19: #{bottleneck_forward.11} parent=1 // pred_check_branch
      %21 = sbr.rel (0) target = $region21
    $region20: #{bottleneck_forward.11} parent=1 // pred_region
      _
    $region21: #{bottleneck_forward.11} parent=1 // pred_fallthru
      _
    // Predicated region
    $region22: #{bottleneck_forward.11} parent=1 // pred_check
      _
    $region23: #{bottleneck_forward.11} parent=1 // pred_check_branch
      %23 = sbr.rel (0) target = $region25
    $region24: #{bottleneck_forward.11} parent=1 // pred_region
      _
    $region25: #{bottleneck_forward.11} parent=1 // pred_fallthru
      _
    %v24 = vld [vmem:[%s0] sm:$0xff]
    %v25 = vld [vmem:[%s0 + $0x8] sm:$0xff]
    %v26 = vld [vmem:[%s0 + $0x10] sm:$0xff]
    %v27 = vld [vmem:[%s0 + $0x18] sm:$0xff]
    %v28 = vld [vmem:[%s0 + $0x20] sm:$0xff]
    %v29 = vld [vmem:[%s0 + $0x28] sm:$0xff]
    %v30 = vld [vmem:[%s0 + $0x30] sm:$0xff]
    %v31 = vld [vmem:[%s0 + $0x38] sm:$0xff]
    %v32 = vld [vmem:[%s0 + $0x40] sm:$0xff]
    %v33 = vld [vmem:[%s0 + $0x48] sm:$0xff]
    %v34 = vld [vmem:[%s0 + $0x50] sm:$0xff]
    %v35 = vld [vmem:[%s0 + $0x58] sm:$0xff]
    %v36 = vld [vmem:[%s0 + $0x60] sm:$0xff]
    %v37 = vld [vmem:[%s0 + $0x68] sm:$0xff]
    %v38 = vld [vmem:[%s0 + $0x70] sm:$0xff]
    %v39 = vld [vmem:[%s0 + $0x78] sm:$0xff]
    %v40 = vld [vmem:[%s1] sm:$0x1]
    %v42 = vlaneseq
    %v43 = vshrl.u32 %v42, 7
    %v44 = vsub.s32 0, %v43
    %v45 = vrot.slane %v40, %v44
    %v47 = vmul.f32 %v24, %v45
    %v48 = vmul.f32 %v25, %v45
    %v49 = vmul.f32 %v26, %v45
    %v50 = vmul.f32 %v27, %v45
    %v51 = vmul.f32 %v28, %v45
    %v52 = vmul.f32 %v29, %v45
    %v53 = vmul.f32 %v30, %v45
    %v54 = vmul.f32 %v31, %v45
    %v55 = vmul.f32 %v32, %v45
    %v56 = vmul.f32 %v33, %v45
    %v57 = vmul.f32 %v34, %v45
    %v58 = vmul.f32 %v35, %v45
    %v59 = vmul.f32 %v36, %v45
    %v60 = vmul.f32 %v37, %v45
    %v61 = vmul.f32 %v38, %v45
    %v62 = vmul.f32 %v39, %v45
    %v63 = vld [vmem:[%s2] sm:$0x1]
    %v65 = vlaneseq
    %v66 = vshrl.u32 %v65, 7
    %v67 = vsub.s32 0, %v66
    %v68 = vrot.slane %v63, %v67
    %v70 = vadd.f32 %v47, %v68
    %v71 = vadd.f32 %v48, %v68
    %v72 = vadd.f32 %v49, %v68
    %v73 = vadd.f32 %v50, %v68
    %v74 = vadd.f32 %v51, %v68
    %v75 = vadd.f32 %v52, %v68
    %v76 = vadd.f32 %v53, %v68
    %v77 = vadd.f32 %v54, %v68
    %v78 = vadd.f32 %v55, %v68
    %v79 = vadd.f32 %v56, %v68
    %v80 = vadd.f32 %v57, %v68
    %v81 = vadd.f32 %v58, %v68
    %v82 = vadd.f32 %v59, %v68
    %v83 = vadd.f32 %v60, %v68
    %v84 = vadd.f32 %v61, %v68
    %v85 = vadd.f32 %v62, %v68
    %v86 = vld [vmem:[%s3] sm:$0xff]
    %v87 = vld [vmem:[%s3 + $0x8] sm:$0xff]
    %v88 = vld [vmem:[%s3 + $0x10] sm:$0xff]
    %v89 = vld [vmem:[%s3 + $0x18] sm:$0xff]
    %v90 = vld [vmem:[%s3 + $0x20] sm:$0xff]
    %v91 = vld [vmem:[%s3 + $0x28] sm:$0xff]
    %v92 = vld [vmem:[%s3 + $0x30] sm:$0xff]
    %v93 = vld [vmem:[%s3 + $0x38] sm:$0xff]
    %v94 = vld [vmem:[%s3 + $0x40] sm:$0xff]
    %v95 = vld [vmem:[%s3 + $0x48] sm:$0xff]
    %v96 = vld [vmem:[%s3 + $0x50] sm:$0xff]
    %v97 = vld [vmem:[%s3 + $0x58] sm:$0xff]
    %v98 = vld [vmem:[%s3 + $0x60] sm:$0xff]
    %v99 = vld [vmem:[%s3 + $0x68] sm:$0xff]
    %v100 = vld [vmem:[%s3 + $0x70] sm:$0xff]
    %v101 = vld [vmem:[%s3 + $0x78] sm:$0xff]
    %v102 = vld [vmem:[%s4] sm:$0x1]
    %v104 = vlaneseq
    %v105 = vshrl.u32 %v104, 7
    %v106 = vsub.s32 0, %v105
    %v107 = vrot.slane %v102, %v106
    %v109 = vmul.f32 %v86, %v107
    %v110 = vmul.f32 %v87, %v107
    %v111 = vmul.f32 %v88, %v107
    %v112 = vmul.f32 %v89, %v107
    %v113 = vmul.f32 %v90, %v107
    %v114 = vmul.f32 %v91, %v107
    %v115 = vmul.f32 %v92, %v107
    %v116 = vmul.f32 %v93, %v107
    %v117 = vmul.f32 %v94, %v107
    %v118 = vmul.f32 %v95, %v107
    %v119 = vmul.f32 %v96, %v107
    %v120 = vmul.f32 %v97, %v107
    %v121 = vmul.f32 %v98, %v107
    %v122 = vmul.f32 %v99, %v107
    %v123 = vmul.f32 %v100, %v107
    %v124 = vmul.f32 %v101, %v107
    %v125 = vld [vmem:[%s5] sm:$0x1]
    %v127 = vlaneseq
    %v128 = vshrl.u32 %v127, 7
    %v129 = vsub.s32 0, %v128
    %v130 = vrot.slane %v125, %v129
    %v132 = vadd.f32 %v109, %v130
    %v133 = vadd.f32 %v110, %v130
    %v134 = vadd.f32 %v111, %v130
    %v135 = vadd.f32 %v112, %v130
    %v136 = vadd.f32 %v113, %v130
    %v137 = vadd.f32 %v114, %v130
    %v138 = vadd.f32 %v115, %v130
    %v139 = vadd.f32 %v116, %v130
    %v140 = vadd.f32 %v117, %v130
    %v141 = vadd.f32 %v118, %v130
    %v142 = vadd.f32 %v119, %v130
    %v143 = vadd.f32 %v120, %v130
    %v144 = vadd.f32 %v121, %v130
    %v145 = vadd.f32 %v122, %v130
    %v146 = vadd.f32 %v123, %v130
    %v147 = vadd.f32 %v124, %v130
    %v148 = vadd.f32 %v70, %v132
    %v149 = vadd.f32 %v71, %v133
    %v150 = vadd.f32 %v72, %v134
    %v151 = vadd.f32 %v73, %v135
    %v152 = vadd.f32 %v74, %v136
    %v153 = vadd.f32 %v75, %v137
    %v154 = vadd.f32 %v76, %v138
    %v155 = vadd.f32 %v77, %v139
    %v156 = vadd.f32 %v78, %v140
    %v157 = vadd.f32 %v79, %v141
    %v158 = vadd.f32 %v80, %v142
    %v159 = vadd.f32 %v81, %v143
    %v160 = vadd.f32 %v82, %v144
    %v161 = vadd.f32 %v83, %v145
    %v162 = vadd.f32 %v84, %v146
    %v163 = vadd.f32 %v85, %v147
    %v164 = vmax.f32 %v148, 0.0
    %v165 = vmax.f32 %v149, 0.0
    %v166 = vmax.f32 %v150, 0.0
    %v167 = vmax.f32 %v151, 0.0
    %v168 = vmax.f32 %v152, 0.0
    %v169 = vmax.f32 %v153, 0.0
    %v170 = vmax.f32 %v154, 0.0
    %v171 = vmax.f32 %v155, 0.0
    %v172 = vmax.f32 %v156, 0.0
    %v173 = vmax.f32 %v157, 0.0
    %v174 = vmax.f32 %v158, 0.0
    %v175 = vmax.f32 %v159, 0.0
    %v176 = vmax.f32 %v160, 0.0
    %v177 = vmax.f32 %v161, 0.0
    %v178 = vmax.f32 %v162, 0.0
    %v179 = vmax.f32 %v163, 0.0
    %180 = vst [vmem:[#allocation2] sm:$0xff] %v164
    %181 = vst [vmem:[#allocation2 + $0x8] sm:$0xff] %v165
    %182 = vst [vmem:[#allocation2 + $0x10] sm:$0xff] %v166
    %183 = vst [vmem:[#allocation2 + $0x18] sm:$0xff] %v167
    %184 = vst [vmem:[#allocation2 + $0x20] sm:$0xff] %v168
    %185 = vst [vmem:[#allocation2 + $0x28] sm:$0xff] %v169
    %186 = vst [vmem:[#allocation2 + $0x30] sm:$0xff] %v170
    %187 = vst [vmem:[#allocation2 + $0x38] sm:$0xff] %v171
    %188 = vst [vmem:[#allocation2 + $0x40] sm:$0xff] %v172
    %189 = vst [vmem:[#allocation2 + $0x48] sm:$0xff] %v173
    %190 = vst [vmem:[#allocation2 + $0x50] sm:$0xff] %v174
    %191 = vst [vmem:[#allocation2 + $0x58] sm:$0xff] %v175
    %192 = vst [vmem:[#allocation2 + $0x60] sm:$0xff] %v176
    %193 = vst [vmem:[#allocation2 + $0x68] sm:$0xff] %v177
    %194 = vst [vmem:[#allocation2 + $0x70] sm:$0xff] %v178
    %195 = vst [vmem:[#allocation2 + $0x78] sm:$0xff] %v179
    // Predicated region
    $region26: #{bottleneck_forward.11} parent=1 // pred_check
      _
    $region27: #{bottleneck_forward.11} parent=1 // pred_check_branch
      %197 = sbr.rel (0) target = $region29
    $region28: #{bottleneck_forward.11} parent=1 // pred_region
      %s199 = ssub.s32 2048, 2048
      %200 = vsyncadd [#allocation3], %s199
      %s201 = sshll.u32 [#allocation2], 4
      %s202 = int_to_ptr.vmem [resolvable:$true] %s201
      %207 = dma.vmem_to_hbm [thread:$0]  %s202, 2048, %s6, [#allocation3], 128, 128, 8
    $region29: #{bottleneck_forward.11} parent=1 // pred_fallthru
      _
    // Predicated region
    $region30: #{bottleneck_forward.11} parent=1 // pred_check
      _
    $region31: #{bottleneck_forward.11} parent=1 // pred_check_branch
      %209 = sbr.rel (0) target = $region33
    $region32: #{bottleneck_forward.11} parent=1 // pred_region
      %210 = dma.done [#allocation3], 2048
    $region33: #{bottleneck_forward.11} parent=1 // pred_fallthru
      _
    %211 = vsyncpa [#allocation3], 1

</llo_original>
